<compile_context>
chip_gen: v7x
topology: tpu7x:2x2x1
jax: 0.10.0
libtpu: 0.0.40
codegen_flags: <defaults>
</compile_context>

<pallas_src>
import jax
import jax.numpy as jnp
from jax import lax
from jax.experimental import pallas as pl
from jax.experimental.pallas import tpu as pltpu

# ---- static configuration (stand-ins for config.*) ----
B, T, D_IN, A = 2, 8, 16, 4      # batch, seq len, input_dims, n_actions
H = 128                          # config.LSTM_HIDDEN_SIZE
L = 2                            # config.LSTM_NUM_LAYERS (wavefront hard-codes 2)
F1 = 128                         # fc1_state / fc1_action output size
F2 = 256                         # fc2 output size
B_PAD = 8                        # pad batch to one full sublane tile
assert L == 2, "wavefronted kernel is written for exactly 2 LSTM layers"


def critic_kernel(state_ref, action_ref, h_in_ref, c_in_ref,
                  w1s_ref, b1s_ref,
                  w_ih0_ref, w_hh0_ref, b0_ref,
                  w1f_ref, b1_ref,
                  w1a_ref, b1a_ref,
                  w2h_ref, w2a_ref, b2_ref,
                  wq_ref, bq_ref,
                  q_ref, h_out_ref, c_out_ref,
                  gates0_ref):
    """Weights arrive pre-transposed (in,out), gate-repacked (i,f,o,g), bf16."""

    # ---- action branch first: independent of the LSTM, hides under it ----
    ap = jnp.maximum(
        jnp.dot(action_ref[...].astype(jnp.bfloat16), w1a_ref[...],
                preferred_element_type=jnp.float32) + b1a_ref[...], 0.0)   # (B_PAD, F1)
    fc2_a = (jnp.dot(ap.astype(jnp.bfloat16), w2a_ref[...],
                     preferred_element_type=jnp.float32) + b2_ref[...])    # (B_PAD, F2)

    # ---- fc1_state + relu, then hoisted layer-0 input->hidden projection ----
    x0 = state_ref[...].astype(jnp.bfloat16)                               # (T*B_PAD, D_IN)
    sp = jnp.maximum(
        jnp.dot(x0, w1s_ref[...], preferred_element_type=jnp.float32)
        + b1s_ref[...], 0.0).astype(jnp.bfloat16)                          # (T*B_PAD, F1)
    gates0_ref[...] = (
        jnp.dot(sp, w_ih0_ref[...], preferred_element_type=jnp.float32)
        .reshape(T, B_PAD, 4 * H) + b0_ref[...])                           # (T, B_PAD, 4H)

    # ---- LSTM cell math on (i|f|o , g)-packed pre-activations ----
    def cell(gates, c):
        sig = jax.nn.sigmoid(gates[:, :3 * H])       # i | f | o in one EUP slab
        g = jnp.tanh(gates[:, 3 * H:])
        c_new = sig[:, H:2 * H] * c + sig[:, :H] * g
        h_new = sig[:, 2 * H:3 * H] * jnp.tanh(c_new)
        return h_new, c_new

    h0, c0 = h_in_ref[0], c_in_ref[0]                # (B_PAD, H) f32
    h1, c1 = h_in_ref[1], c_in_ref[1]

    # ---- warm-up: wavefront step 0 -> layer-0 @ t=0 only ----
    g0 = gates0_ref[0] + jnp.dot(h0.astype(jnp.bfloat16), w_hh0_ref[...],
                                 preferred_element_type=jnp.float32)
    h0, c0 = cell(g0, c0)

    # ---- steady wavefront: s = 1..T-1 -> layer-0 @ t=s and layer-1 @ t=s-1 ----
    def wstep(s, carry):
        h0, c0, h1, c1 = carry
        # layer-1 @ t = s-1: fused K=256 dot over [h0_{s-1} ; h1_{s-2}]
        x1 = jnp.concatenate(
            [h0.astype(jnp.bfloat16), h1.astype(jnp.bfloat16)], axis=1)    # (B_PAD, 2H)
        g1 = (jnp.dot(x1, w1f_ref[...], preferred_element_type=jnp.float32)
              + b1_ref[...])
        # layer-0 @ t = s: hoisted gates + hidden projection
        g0 = gates0_ref[s] + jnp.dot(h0.astype(jnp.bfloat16), w_hh0_ref[...],
                                     preferred_element_type=jnp.float32)
        h1n, c1n = cell(g1, c1)
        h0n, c0n = cell(g0, c0)
        return (h0n, c0n, h1n, c1n)

    h0, c0, h1, c1 = lax.fori_loop(1, T, wstep, (h0, c0, h1, c1), unroll=True)

    # ---- cool-down: wavefront step T -> layer-1 @ t=T-1 only ----
    x1 = jnp.concatenate(
        [h0.astype(jnp.bfloat16), h1.astype(jnp.bfloat16)], axis=1)
    g1 = (jnp.dot(x1, w1f_ref[...], preferred_element_type=jnp.float32)
          + b1_ref[...])
    h1, c1 = cell(g1, c1)

    h_out_ref[0] = h0
    c_out_ref[0] = c0
    h_out_ref[1] = h1
    c_out_ref[1] = c1

    # ---- fc2(concat([h_top, ap])) + relu, split weights, no concat ----
    x = jnp.maximum(
        jnp.dot(h1.astype(jnp.bfloat16), w2h_ref[...],
                preferred_element_type=jnp.float32) + fc2_a, 0.0)          # (B_PAD, F2)

    # ---- q head (lane-dense: padded to 128 output lanes, sliced in wrapper) ----
    q_ref[...] = (jnp.dot(x.astype(jnp.bfloat16), wq_ref[...],
                          preferred_element_type=jnp.float32) + bq_ref[...])


def prepare_params(params):
    """PyTorch-layout f32 params -> kernel layout: (in,out) transposed,
    LSTM gate rows repacked (i,f,g,o) -> (i,f,o,g), layer-1 W_ih/W_hh fused,
    weights cast to bf16, q head zero-padded to 128 lanes."""
    (w1s, b1s, w_ih, w_hh, b_ih, b_hh, w1a, b1a, w2, b2, wq, bq) = params

    def reorder(x, axis):
        i, f, g, o = jnp.split(x, 4, axis=axis)
        return jnp.concatenate([i, f, o, g], axis=axis)

    w_ih_t = jnp.transpose(reorder(w_ih, 1), (0, 2, 1)).astype(jnp.bfloat16)  # (L, F1, 4H)
    w_hh_t = jnp.transpose(reorder(w_hh, 1), (0, 2, 1)).astype(jnp.bfloat16)  # (L, H, 4H)
    b_l = reorder(b_ih + b_hh, 2)                                             # (L, 1, 4H) f32

    w1_fused = jnp.concatenate([w_ih_t[1], w_hh_t[1]], axis=0)                # (F1+H, 4H)

    wq_pad = jnp.zeros((F2, 128), jnp.float32).at[:, :1].set(wq.T)
    bq_pad = jnp.zeros((1, 128), jnp.float32).at[:, :1].set(bq)

    return (
        w1s.T.astype(jnp.bfloat16),           # (D_IN, F1)
        b1s,                                  # (1, F1)  f32
        w_ih_t[0],                            # (F1, 4H) layer-0 input->hidden
        w_hh_t[0],                            # (H, 4H)  layer-0 hidden->hidden
        b_l[0],                               # (1, 4H)  layer-0 bias (b_ih+b_hh)
        w1_fused.astype(jnp.bfloat16),        # (2H, 4H) layer-1 fused [W_ih;W_hh]
        b_l[1],                               # (1, 4H)  layer-1 bias
        w1a.T.astype(jnp.bfloat16),           # (A, F1)
        b1a,                                  # (1, F1)
        w2[:, :H].T.astype(jnp.bfloat16),     # (H, F2)  fc2 (hidden half)
        w2[:, H:].T.astype(jnp.bfloat16),     # (F1, F2) fc2 (action half)
        b2,                                   # (1, F2)
        wq_pad.astype(jnp.bfloat16),          # (F2, 128) lane-dense q head
        bq_pad,                               # (1, 128)
    )


@jax.jit
def critic_forward(state, action, h_in_pad, c_in_pad, kparams):
    """state (B,T,D_IN), action (B,A); h/c carried in padded (L,B_PAD,H) layout.
    Returns (q (B,1), h_out_pad, c_out_pad). Whole working set <1 MiB ->
    gridless single invocation (one TC); wrapper does the cheap layout work."""
    pad = B_PAD - B
    st = jnp.pad(jnp.transpose(state, (1, 0, 2)),
                 ((0, 0), (0, pad), (0, 0))).reshape(T * B_PAD, D_IN)
    ac = jnp.pad(action, ((0, pad), (0, 0)))

    q, h_out, c_out = pl.pallas_call(
        critic_kernel,
        out_shape=(jax.ShapeDtypeStruct((B_PAD, 128), jnp.float32),     # q (lane-dense)
                   jax.ShapeDtypeStruct((L, B_PAD, H), jnp.float32),    # hidden_out
                   jax.ShapeDtypeStruct((L, B_PAD, H), jnp.float32)),   # cell_out
        scratch_shapes=[pltpu.VMEM((T, B_PAD, 4 * H), jnp.float32)],    # hoisted layer-0 gates
    )(st, ac, h_in_pad, c_in_pad, *kparams)
    return q[:B, :1], h_out, c_out


def init_params(key):
    ks = jax.random.split(key, 12)

    def unif(k, shape, fan_in):
        bound = 1.0 / float(fan_in) ** 0.5
        return jax.random.uniform(k, shape, jnp.float32, -bound, bound)

    w1s = unif(ks[0], (F1, D_IN), D_IN)
    b1s = unif(ks[1], (1, F1), D_IN)
    # Layer 0 input size is F1 (=128) and deeper layers take H (=128): one stack works.
    w_ih = unif(ks[2], (L, 4 * H, F1), H)
    w_hh = unif(ks[3], (L, 4 * H, H), H)
    b_ih = unif(ks[4], (L, 1, 4 * H), H)
    b_hh = unif(ks[5], (L, 1, 4 * H), H)
    w1a = unif(ks[6], (F1, A), A)
    b1a = unif(ks[7], (1, F1), A)
    w2 = unif(ks[8], (F2, H + F1), H + F1)
    b2 = unif(ks[9], (1, F2), H + F1)
    wq = unif(ks[10], (1, F2), F2)
    bq = unif(ks[11], (1, 1), F2)
    return (w1s, b1s, w_ih, w_hh, b_ih, b_hh, w1a, b1a, w2, b2, wq, bq)


def reference(state, action, h_in, c_in, params):
    """Pure-JAX replica of the PyTorch forward, mirroring the kernel's
    bf16-weight / f32-accumulate matmul arithmetic."""
    (w1s, b1s, w_ih, w_hh, b_ih, b_hh, w1a, b1a, w2, b2, wq, bq) = params

    def mm(x, w):   # x f32, w (out, in) f32 -> bf16 MXU math, f32 accumulation
        return jnp.dot(x.astype(jnp.bfloat16), w.T.astype(jnp.bfloat16),
                       preferred_element_type=jnp.float32)

    x_seq = jax.nn.relu(
        mm(state.reshape(B * T, D_IN), w1s).reshape(B, T, F1) + b1s)
    h_fin, c_fin = [], []
    for l in range(L):
        h, c = h_in[l], c_in[l]
        b = b_ih[l] + b_hh[l]
        outs = []
        for t in range(T):
            g = mm(x_seq[:, t, :], w_ih[l]) + mm(h, w_hh[l]) + b
            i = jax.nn.sigmoid(g[:, :H])
            f = jax.nn.sigmoid(g[:, H:2 * H])
            gg = jnp.tanh(g[:, 2 * H:3 * H])
            o = jax.nn.sigmoid(g[:, 3 * H:])
            c = f * c + i * gg
            h = o * jnp.tanh(c)
            outs.append(h)
        x_seq = jnp.stack(outs, axis=1)
        h_fin.append(h)
        c_fin.append(c)
    lstm_feat = x_seq[:, -1, :]
    ap = jax.nn.relu(mm(action, w1a) + b1a)
    xx = jax.nn.relu(mm(jnp.concatenate([lstm_feat, ap], axis=1), w2) + b2)
    return mm(xx, wq) + bq, jnp.stack(h_fin), jnp.stack(c_fin)


if __name__ == "__main__":
    key = jax.random.PRNGKey(0)
    k_s, k_a, k_h, k_c, k_p = jax.random.split(key, 5)
    state = jax.random.normal(k_s, (B, T, D_IN), jnp.float32)
    action = jax.random.normal(k_a, (B, A), jnp.float32)
    hidden_in = jax.random.normal(k_h, (L, B, H), jnp.float32) * 0.1
    cell_in = jax.random.normal(k_c, (L, B, H), jnp.float32) * 0.1
    params = init_params(k_p)
    kparams = prepare_params(params)

    # Recurrent state lives in the padded (L, B_PAD, H) layout between calls
    # (pad once, outside the steady-state loop).
    pad = B_PAD - B
    h_pad = jnp.pad(hidden_in, ((0, 0), (0, pad), (0, 0)))
    c_pad = jnp.pad(cell_in, ((0, 0), (0, pad), (0, 0)))

    q, h_out, c_out = jax.block_until_ready(
        critic_forward(state, action, h_pad, c_pad, kparams))

    q_r, h_r, c_r = reference(state, action, hidden_in, cell_in, params)
    assert jnp.allclose(q, q_r, atol=2e-3, rtol=2e-3)
    assert jnp.allclose(h_out[:, :B], h_r, atol=2e-3, rtol=2e-3)
    assert jnp.allclose(c_out[:, :B], c_r, atol=2e-3, rtol=2e-3)
    print("KERNEL_OK")
</pallas_src>

<mosaic_0001>
module attributes {stable_mosaic.version = 11 : i64} {
  func.func @critic_kernel(%arg0: memref<64x16xf32, #tpu.memory_space<vmem>>, %arg1: memref<8x4xf32, #tpu.memory_space<vmem>>, %arg2: memref<2x8x128xf32, #tpu.memory_space<vmem>>, %arg3: memref<2x8x128xf32, #tpu.memory_space<vmem>>, %arg4: memref<16x128xbf16, #tpu.memory_space<vmem>>, %arg5: memref<1x128xf32, #tpu.memory_space<vmem>>, %arg6: memref<128x512xbf16, #tpu.memory_space<vmem>>, %arg7: memref<128x512xbf16, #tpu.memory_space<vmem>>, %arg8: memref<1x512xf32, #tpu.memory_space<vmem>>, %arg9: memref<256x512xbf16, #tpu.memory_space<vmem>>, %arg10: memref<1x512xf32, #tpu.memory_space<vmem>>, %arg11: memref<4x128xbf16, #tpu.memory_space<vmem>>, %arg12: memref<1x128xf32, #tpu.memory_space<vmem>>, %arg13: memref<128x256xbf16, #tpu.memory_space<vmem>>, %arg14: memref<128x256xbf16, #tpu.memory_space<vmem>>, %arg15: memref<1x256xf32, #tpu.memory_space<vmem>>, %arg16: memref<256x128xbf16, #tpu.memory_space<vmem>>, %arg17: memref<1x128xf32, #tpu.memory_space<vmem>>, %arg18: memref<8x128xf32, #tpu.memory_space<vmem>>, %arg19: memref<2x8x128xf32, #tpu.memory_space<vmem>>, %arg20: memref<2x8x128xf32, #tpu.memory_space<vmem>>, %arg21: memref<8x8x512xf32, #tpu.memory_space<vmem>>) attributes {dimension_semantics = [], scalar_prefetch = 0 : i64, scratch_operands = 1 : i64, tpu.core_type = #tpu.core_type<tc>} {
    %c0 = arith.constant 0 : index
    %c0_0 = arith.constant 0 : index
    %0 = vector.load %arg1[%c0, %c0_0] : memref<8x4xf32, #tpu.memory_space<vmem>>, vector<8x4xf32>
    %1 = arith.truncf %0 : vector<8x4xf32> to vector<8x4xbf16>
    %c0_1 = arith.constant 0 : index
    %c0_2 = arith.constant 0 : index
    %2 = vector.load %arg11[%c0_1, %c0_2] : memref<4x128xbf16, #tpu.memory_space<vmem>>, vector<4x128xbf16>
    %cst = arith.constant dense<0.000000e+00> : vector<8x128xf32>
    %3 = tpu.matmul %1, %2, %cst {dimension_numbers = #tpu.dot_dimension_numbers<[1], [0], [0], [1], [0, 0, 1, 1], [], []>} : vector<8x4xbf16>, vector<4x128xbf16>, vector<8x128xf32> -> vector<8x128xf32>
    %c0_3 = arith.constant 0 : index
    %c0_4 = arith.constant 0 : index
    %4 = vector.load %arg12[%c0_3, %c0_4] : memref<1x128xf32, #tpu.memory_space<vmem>>, vector<1x128xf32>
    %5 = vector.broadcast %4 : vector<1x128xf32> to vector<8x128xf32>
    %6 = arith.addf %3, %5 : vector<8x128xf32>
    %cst_5 = arith.constant 0.000000e+00 : f32
    %7 = vector.broadcast %cst_5 : f32 to vector<8x128xf32>
    %8 = arith.maximumf %6, %7 : vector<8x128xf32>
    %9 = arith.truncf %8 : vector<8x128xf32> to vector<8x128xbf16>
    %c0_6 = arith.constant 0 : index
    %c0_7 = arith.constant 0 : index
    %10 = vector.load %arg14[%c0_6, %c0_7] : memref<128x256xbf16, #tpu.memory_space<vmem>>, vector<128x256xbf16>
    %cst_8 = arith.constant dense<0.000000e+00> : vector<8x256xf32>
    %11 = tpu.matmul %9, %10, %cst_8 {dimension_numbers = #tpu.dot_dimension_numbers<[1], [0], [0], [1], [0, 0, 1, 1], [], []>} : vector<8x128xbf16>, vector<128x256xbf16>, vector<8x256xf32> -> vector<8x256xf32>
    %c0_9 = arith.constant 0 : index
    %c0_10 = arith.constant 0 : index
    %12 = vector.load %arg15[%c0_9, %c0_10] : memref<1x256xf32, #tpu.memory_space<vmem>>, vector<1x256xf32>
    %13 = vector.broadcast %12 : vector<1x256xf32> to vector<8x256xf32>
    %14 = arith.addf %11, %13 : vector<8x256xf32>
    %c0_11 = arith.constant 0 : index
    %c0_12 = arith.constant 0 : index
    %15 = vector.load %arg0[%c0_11, %c0_12] : memref<64x16xf32, #tpu.memory_space<vmem>>, vector<64x16xf32>
    %16 = arith.truncf %15 : vector<64x16xf32> to vector<64x16xbf16>
    %c0_13 = arith.constant 0 : index
    %c0_14 = arith.constant 0 : index
    %17 = vector.load %arg4[%c0_13, %c0_14] : memref<16x128xbf16, #tpu.memory_space<vmem>>, vector<16x128xbf16>
    %cst_15 = arith.constant dense<0.000000e+00> : vector<64x128xf32>
    %18 = tpu.matmul %16, %17, %cst_15 {dimension_numbers = #tpu.dot_dimension_numbers<[1], [0], [0], [1], [0, 0, 1, 1], [], []>} : vector<64x16xbf16>, vector<16x128xbf16>, vector<64x128xf32> -> vector<64x128xf32>
    %c0_16 = arith.constant 0 : index
    %c0_17 = arith.constant 0 : index
    %19 = vector.load %arg5[%c0_16, %c0_17] : memref<1x128xf32, #tpu.memory_space<vmem>>, vector<1x128xf32>
    %20 = vector.broadcast %19 : vector<1x128xf32> to vector<64x128xf32>
    %21 = arith.addf %18, %20 : vector<64x128xf32>
    %cst_18 = arith.constant 0.000000e+00 : f32
    %22 = vector.broadcast %cst_18 : f32 to vector<64x128xf32>
    %23 = arith.maximumf %21, %22 : vector<64x128xf32>
    %24 = arith.truncf %23 : vector<64x128xf32> to vector<64x128xbf16>
    %c0_19 = arith.constant 0 : index
    %c0_20 = arith.constant 0 : index
    %25 = vector.load %arg6[%c0_19, %c0_20] : memref<128x512xbf16, #tpu.memory_space<vmem>>, vector<128x512xbf16>
    %cst_21 = arith.constant dense<0.000000e+00> : vector<64x512xf32>
    %26 = tpu.matmul %24, %25, %cst_21 {dimension_numbers = #tpu.dot_dimension_numbers<[1], [0], [0], [1], [0, 0, 1, 1], [], []>} : vector<64x128xbf16>, vector<128x512xbf16>, vector<64x512xf32> -> vector<64x512xf32>
    %27 = vector.shape_cast %26 : vector<64x512xf32> to vector<8x8x512xf32>
    %c0_22 = arith.constant 0 : index
    %c0_23 = arith.constant 0 : index
    %28 = vector.load %arg8[%c0_22, %c0_23] : memref<1x512xf32, #tpu.memory_space<vmem>>, vector<1x512xf32>
    %29 = vector.shape_cast %28 : vector<1x512xf32> to vector<1x1x512xf32>
    %30 = vector.broadcast %29 : vector<1x1x512xf32> to vector<8x8x512xf32>
    %31 = arith.addf %27, %30 : vector<8x8x512xf32>
    %c0_24 = arith.constant 0 : index
    %c0_25 = arith.constant 0 : index
    %c0_26 = arith.constant 0 : index
    %32 = vector.load %arg21[%c0_24, %c0_25, %c0_26] : memref<8x8x512xf32, #tpu.memory_space<vmem>>, vector<8x8x512xf32>
    tpu.vector_store %arg21[%c0_24, %c0_25, %c0_26], %31 {strides = array<i32>} : memref<8x8x512xf32, #tpu.memory_space<vmem>>, vector<8x8x512xf32>,
    %c0_27 = arith.constant 0 : index
    %c0_28 = arith.constant 0 : index
    %c0_29 = arith.constant 0 : index
    %33 = vector.load %arg2[%c0_27, %c0_28, %c0_29] : memref<2x8x128xf32, #tpu.memory_space<vmem>>, vector<1x8x128xf32>
    %34 = vector.shape_cast %33 : vector<1x8x128xf32> to vector<8x128xf32>
    %c0_30 = arith.constant 0 : index
    %c0_31 = arith.constant 0 : index
    %c0_32 = arith.constant 0 : index
    %35 = vector.load %arg3[%c0_30, %c0_31, %c0_32] : memref<2x8x128xf32, #tpu.memory_space<vmem>>, vector<1x8x128xf32>
    %36 = vector.shape_cast %35 : vector<1x8x128xf32> to vector<8x128xf32>
    %c1 = arith.constant 1 : index
    %c0_33 = arith.constant 0 : index
    %c0_34 = arith.constant 0 : index
    %37 = vector.load %arg2[%c1, %c0_33, %c0_34] : memref<2x8x128xf32, #tpu.memory_space<vmem>>, vector<1x8x128xf32>
    %38 = vector.shape_cast %37 : vector<1x8x128xf32> to vector<8x128xf32>
    %c1_35 = arith.constant 1 : index
    %c0_36 = arith.constant 0 : index
    %c0_37 = arith.constant 0 : index
    %39 = vector.load %arg3[%c1_35, %c0_36, %c0_37] : memref<2x8x128xf32, #tpu.memory_space<vmem>>, vector<1x8x128xf32>
    %40 = vector.shape_cast %39 : vector<1x8x128xf32> to vector<8x128xf32>
    %c0_38 = arith.constant 0 : index
    %c0_39 = arith.constant 0 : index
    %c0_40 = arith.constant 0 : index
    %41 = vector.load %arg21[%c0_38, %c0_39, %c0_40] : memref<8x8x512xf32, #tpu.memory_space<vmem>>, vector<1x8x512xf32>
    %42 = vector.shape_cast %41 : vector<1x8x512xf32> to vector<8x512xf32>
    %43 = arith.truncf %34 : vector<8x128xf32> to vector<8x128xbf16>
    %c0_41 = arith.constant 0 : index
    %c0_42 = arith.constant 0 : index
    %44 = vector.load %arg7[%c0_41, %c0_42] : memref<128x512xbf16, #tpu.memory_space<vmem>>, vector<128x512xbf16>
    %cst_43 = arith.constant dense<0.000000e+00> : vector<8x512xf32>
    %45 = tpu.matmul %43, %44, %cst_43 {dimension_numbers = #tpu.dot_dimension_numbers<[1], [0], [0], [1], [0, 0, 1, 1], [], []>} : vector<8x128xbf16>, vector<128x512xbf16>, vector<8x512xf32> -> vector<8x512xf32>
    %46 = arith.addf %42, %45 : vector<8x512xf32>
    %47 = vector.extract_strided_slice %46 {offsets = [0, 0], sizes = [8, 384], strides = [1, 1]} : vector<8x512xf32> to vector<8x384xf32>
    %48 = arith.negf %47 : vector<8x384xf32>
    %49 = math.exp %48 : vector<8x384xf32>
    %cst_44 = arith.constant 1.000000e+00 : f32
    %50 = vector.broadcast %cst_44 : f32 to vector<8x384xf32>
    %51 = arith.addf %50, %49 : vector<8x384xf32>
    %52 = arith.divf %50, %51 : vector<8x384xf32>
    %53 = vector.extract_strided_slice %46 {offsets = [0, 384], sizes = [8, 128], strides = [1, 1]} : vector<8x512xf32> to vector<8x128xf32>
    %54 = math.tanh %53 : vector<8x128xf32>
    %55 = vector.extract_strided_slice %52 {offsets = [0, 128], sizes = [8, 128], strides = [1, 1]} : vector<8x384xf32> to vector<8x128xf32>
    %56 = arith.mulf %55, %36 : vector<8x128xf32>
    %57 = vector.extract_strided_slice %52 {offsets = [0, 0], sizes = [8, 128], strides = [1, 1]} : vector<8x384xf32> to vector<8x128xf32>
    %58 = arith.mulf %57, %54 : vector<8x128xf32>
    %59 = arith.addf %56, %58 : vector<8x128xf32>
    %60 = vector.extract_strided_slice %52 {offsets = [0, 256], sizes = [8, 128], strides = [1, 1]} : vector<8x384xf32> to vector<8x128xf32>
    %61 = math.tanh %59 : vector<8x128xf32>
    %62 = arith.mulf %60, %61 : vector<8x128xf32>
    %c1_i32 = arith.constant 1 : i32
    %63 = arith.truncf %62 : vector<8x128xf32> to vector<8x128xbf16>
    %64 = arith.truncf %38 : vector<8x128xf32> to vector<8x128xbf16>
    %65 = tpu.concatenate %63, %64 in 1 : vector<8x128xbf16>, vector<8x128xbf16> -> vector<8x256xbf16>
    %c0_45 = arith.constant 0 : index
    %c0_46 = arith.constant 0 : index
    %66 = vector.load %arg9[%c0_45, %c0_46] : memref<256x512xbf16, #tpu.memory_space<vmem>>, vector<256x512xbf16>
    %cst_47 = arith.constant dense<0.000000e+00> : vector<8x512xf32>
    %67 = tpu.matmul %65, %66, %cst_47 {dimension_numbers = #tpu.dot_dimension_numbers<[1], [0], [0], [1], [0, 0, 1, 1], [], []>} : vector<8x256xbf16>, vector<256x512xbf16>, vector<8x512xf32> -> vector<8x512xf32>
    %c0_48 = arith.constant 0 : index
    %c0_49 = arith.constant 0 : index
    %68 = vector.load %arg10[%c0_48, %c0_49] : memref<1x512xf32, #tpu.memory_space<vmem>>, vector<1x512xf32>
    %69 = vector.broadcast %68 : vector<1x512xf32> to vector<8x512xf32>
    %70 = arith.addf %67, %69 : vector<8x512xf32>
    %71 = arith.index_cast %c1_i32 : i32 to index
    %c0_50 = arith.constant 0 : index
    %c0_51 = arith.constant 0 : index
    %72 = vector.load %arg21[%71, %c0_50, %c0_51] : memref<8x8x512xf32, #tpu.memory_space<vmem>>, vector<1x8x512xf32>
    %73 = vector.shape_cast %72 : vector<1x8x512xf32> to vector<8x512xf32>
    %74 = arith.truncf %62 : vector<8x128xf32> to vector<8x128xbf16>
    %c0_52 = arith.constant 0 : index
    %c0_53 = arith.constant 0 : index
    %75 = vector.load %arg7[%c0_52, %c0_53] : memref<128x512xbf16, #tpu.memory_space<vmem>>, vector<128x512xbf16>
    %cst_54 = arith.constant dense<0.000000e+00> : vector<8x512xf32>
    %76 = tpu.matmul %74, %75, %cst_54 {dimension_numbers = #tpu.dot_dimension_numbers<[1], [0], [0], [1], [0, 0, 1, 1], [], []>} : vector<8x128xbf16>, vector<128x512xbf16>, vector<8x512xf32> -> vector<8x512xf32>
    %77 = arith.addf %73, %76 : vector<8x512xf32>
    %78 = vector.extract_strided_slice %70 {offsets = [0, 0], sizes = [8, 384], strides = [1, 1]} : vector<8x512xf32> to vector<8x384xf32>
    %79 = arith.negf %78 : vector<8x384xf32>
    %80 = math.exp %79 : vector<8x384xf32>
    %cst_55 = arith.constant 1.000000e+00 : f32
    %81 = vector.broadcast %cst_55 : f32 to vector<8x384xf32>
    %82 = arith.addf %81, %80 : vector<8x384xf32>
    %83 = arith.divf %81, %82 : vector<8x384xf32>
    %84 = vector.extract_strided_slice %70 {offsets = [0, 384], sizes = [8, 128], strides = [1, 1]} : vector<8x512xf32> to vector<8x128xf32>
    %85 = math.tanh %84 : vector<8x128xf32>
    %86 = vector.extract_strided_slice %83 {offsets = [0, 128], sizes = [8, 128], strides = [1, 1]} : vector<8x384xf32> to vector<8x128xf32>
    %87 = arith.mulf %86, %40 : vector<8x128xf32>
    %88 = vector.extract_strided_slice %83 {offsets = [0, 0], sizes = [8, 128], strides = [1, 1]} : vector<8x384xf32> to vector<8x128xf32>
    %89 = arith.mulf %88, %85 : vector<8x128xf32>
    %90 = arith.addf %87, %89 : vector<8x128xf32>
    %91 = vector.extract_strided_slice %83 {offsets = [0, 256], sizes = [8, 128], strides = [1, 1]} : vector<8x384xf32> to vector<8x128xf32>
    %92 = math.tanh %90 : vector<8x128xf32>
    %93 = arith.mulf %91, %92 : vector<8x128xf32>
    %94 = vector.extract_strided_slice %77 {offsets = [0, 0], sizes = [8, 384], strides = [1, 1]} : vector<8x512xf32> to vector<8x384xf32>
    %95 = arith.negf %94 : vector<8x384xf32>
    %96 = math.exp %95 : vector<8x384xf32>
    %cst_56 = arith.constant 1.000000e+00 : f32
    %97 = vector.broadcast %cst_56 : f32 to vector<8x384xf32>
    %98 = arith.addf %97, %96 : vector<8x384xf32>
    %99 = arith.divf %97, %98 : vector<8x384xf32>
    %100 = vector.extract_strided_slice %77 {offsets = [0, 384], sizes = [8, 128], strides = [1, 1]} : vector<8x512xf32> to vector<8x128xf32>
    %101 = math.tanh %100 : vector<8x128xf32>
    %102 = vector.extract_strided_slice %99 {offsets = [0, 128], sizes = [8, 128], strides = [1, 1]} : vector<8x384xf32> to vector<8x128xf32>
    %103 = arith.mulf %102, %59 : vector<8x128xf32>
    %104 = vector.extract_strided_slice %99 {offsets = [0, 0], sizes = [8, 128], strides = [1, 1]} : vector<8x384xf32> to vector<8x128xf32>
    %105 = arith.mulf %104, %101 : vector<8x128xf32>
    %106 = arith.addf %103, %105 : vector<8x128xf32>
    %107 = vector.extract_strided_slice %99 {offsets = [0, 256], sizes = [8, 128], strides = [1, 1]} : vector<8x384xf32> to vector<8x128xf32>
    %108 = math.tanh %106 : vector<8x128xf32>
    %109 = arith.mulf %107, %108 : vector<8x128xf32>
    %c2_i32 = arith.constant 2 : i32
    %110 = arith.truncf %109 : vector<8x128xf32> to vector<8x128xbf16>
    %111 = arith.truncf %93 : vector<8x128xf32> to vector<8x128xbf16>
    %112 = tpu.concatenate %110, %111 in 1 : vector<8x128xbf16>, vector<8x128xbf16> -> vector<8x256xbf16>
    %c0_57 = arith.constant 0 : index
    %c0_58 = arith.constant 0 : index
    %113 = vector.load %arg9[%c0_57, %c0_58] : memref<256x512xbf16, #tpu.memory_space<vmem>>, vector<256x512xbf16>
    %cst_59 = arith.constant dense<0.000000e+00> : vector<8x512xf32>
    %114 = tpu.matmul %112, %113, %cst_59 {dimension_numbers = #tpu.dot_dimension_numbers<[1], [0], [0], [1], [0, 0, 1, 1], [], []>} : vector<8x256xbf16>, vector<256x512xbf16>, vector<8x512xf32> -> vector<8x512xf32>
    %c0_60 = arith.constant 0 : index
    %c0_61 = arith.constant 0 : index
    %115 = vector.load %arg10[%c0_60, %c0_61] : memref<1x512xf32, #tpu.memory_space<vmem>>, vector<1x512xf32>
    %116 = vector.broadcast %115 : vector<1x512xf32> to vector<8x512xf32>
    %117 = arith.addf %114, %116 : vector<8x512xf32>
    %118 = arith.index_cast %c2_i32 : i32 to index
    %c0_62 = arith.constant 0 : index
    %c0_63 = arith.constant 0 : index
    %119 = vector.load %arg21[%118, %c0_62, %c0_63] : memref<8x8x512xf32, #tpu.memory_space<vmem>>, vector<1x8x512xf32>
    %120 = vector.shape_cast %119 : vector<1x8x512xf32> to vector<8x512xf32>
    %121 = arith.truncf %109 : vector<8x128xf32> to vector<8x128xbf16>
    %c0_64 = arith.constant 0 : index
    %c0_65 = arith.constant 0 : index
    %122 = vector.load %arg7[%c0_64, %c0_65] : memref<128x512xbf16, #tpu.memory_space<vmem>>, vector<128x512xbf16>
    %cst_66 = arith.constant dense<0.000000e+00> : vector<8x512xf32>
    %123 = tpu.matmul %121, %122, %cst_66 {dimension_numbers = #tpu.dot_dimension_numbers<[1], [0], [0], [1], [0, 0, 1, 1], [], []>} : vector<8x128xbf16>, vector<128x512xbf16>, vector<8x512xf32> -> vector<8x512xf32>
    %124 = arith.addf %120, %123 : vector<8x512xf32>
    %125 = vector.extract_strided_slice %117 {offsets = [0, 0], sizes = [8, 384], strides = [1, 1]} : vector<8x512xf32> to vector<8x384xf32>
    %126 = arith.negf %125 : vector<8x384xf32>
    %127 = math.exp %126 : vector<8x384xf32>
    %cst_67 = arith.constant 1.000000e+00 : f32
    %128 = vector.broadcast %cst_67 : f32 to vector<8x384xf32>
    %129 = arith.addf %128, %127 : vector<8x384xf32>
    %130 = arith.divf %128, %129 : vector<8x384xf32>
    %131 = vector.extract_strided_slice %117 {offsets = [0, 384], sizes = [8, 128], strides = [1, 1]} : vector<8x512xf32> to vector<8x128xf32>
    %132 = math.tanh %131 : vector<8x128xf32>
    %133 = vector.extract_strided_slice %130 {offsets = [0, 128], sizes = [8, 128], strides = [1, 1]} : vector<8x384xf32> to vector<8x128xf32>
    %134 = arith.mulf %133, %90 : vector<8x128xf32>
    %135 = vector.extract_strided_slice %130 {offsets = [0, 0], sizes = [8, 128], strides = [1, 1]} : vector<8x384xf32> to vector<8x128xf32>
    %136 = arith.mulf %135, %132 : vector<8x128xf32>
    %137 = arith.addf %134, %136 : vector<8x128xf32>
    %138 = vector.extract_strided_slice %130 {offsets = [0, 256], sizes = [8, 128], strides = [1, 1]} : vector<8x384xf32> to vector<8x128xf32>
    %139 = math.tanh %137 : vector<8x128xf32>
    %140 = arith.mulf %138, %139 : vector<8x128xf32>
    %141 = vector.extract_strided_slice %124 {offsets = [0, 0], sizes = [8, 384], strides = [1, 1]} : vector<8x512xf32> to vector<8x384xf32>
    %142 = arith.negf %141 : vector<8x384xf32>
    %143 = math.exp %142 : vector<8x384xf32>
    %cst_68 = arith.constant 1.000000e+00 : f32
    %144 = vector.broadcast %cst_68 : f32 to vector<8x384xf32>
    %145 = arith.addf %144, %143 : vector<8x384xf32>
    %146 = arith.divf %144, %145 : vector<8x384xf32>
    %147 = vector.extract_strided_slice %124 {offsets = [0, 384], sizes = [8, 128], strides = [1, 1]} : vector<8x512xf32> to vector<8x128xf32>
    %148 = math.tanh %147 : vector<8x128xf32>
    %149 = vector.extract_strided_slice %146 {offsets = [0, 128], sizes = [8, 128], strides = [1, 1]} : vector<8x384xf32> to vector<8x128xf32>
    %150 = arith.mulf %149, %106 : vector<8x128xf32>
    %151 = vector.extract_strided_slice %146 {offsets = [0, 0], sizes = [8, 128], strides = [1, 1]} : vector<8x384xf32> to vector<8x128xf32>
    %152 = arith.mulf %151, %148 : vector<8x128xf32>
    %153 = arith.addf %150, %152 : vector<8x128xf32>
    %154 = vector.extract_strided_slice %146 {offsets = [0, 256], sizes = [8, 128], strides = [1, 1]} : vector<8x384xf32> to vector<8x128xf32>
    %155 = math.tanh %153 : vector<8x128xf32>
    %156 = arith.mulf %154, %155 : vector<8x128xf32>
    %c3_i32 = arith.constant 3 : i32
    %157 = arith.truncf %156 : vector<8x128xf32> to vector<8x128xbf16>
    %158 = arith.truncf %140 : vector<8x128xf32> to vector<8x128xbf16>
    %159 = tpu.concatenate %157, %158 in 1 : vector<8x128xbf16>, vector<8x128xbf16> -> vector<8x256xbf16>
    %c0_69 = arith.constant 0 : index
    %c0_70 = arith.constant 0 : index
    %160 = vector.load %arg9[%c0_69, %c0_70] : memref<256x512xbf16, #tpu.memory_space<vmem>>, vector<256x512xbf16>
    %cst_71 = arith.constant dense<0.000000e+00> : vector<8x512xf32>
    %161 = tpu.matmul %159, %160, %cst_71 {dimension_numbers = #tpu.dot_dimension_numbers<[1], [0], [0], [1], [0, 0, 1, 1], [], []>} : vector<8x256xbf16>, vector<256x512xbf16>, vector<8x512xf32> -> vector<8x512xf32>
    %c0_72 = arith.constant 0 : index
    %c0_73 = arith.constant 0 : index
    %162 = vector.load %arg10[%c0_72, %c0_73] : memref<1x512xf32, #tpu.memory_space<vmem>>, vector<1x512xf32>
    %163 = vector.broadcast %162 : vector<1x512xf32> to vector<8x512xf32>
    %164 = arith.addf %161, %163 : vector<8x512xf32>
    %165 = arith.index_cast %c3_i32 : i32 to index
    %c0_74 = arith.constant 0 : index
    %c0_75 = arith.constant 0 : index
    %166 = vector.load %arg21[%165, %c0_74, %c0_75] : memref<8x8x512xf32, #tpu.memory_space<vmem>>, vector<1x8x512xf32>
    %167 = vector.shape_cast %166 : vector<1x8x512xf32> to vector<8x512xf32>
    %168 = arith.truncf %156 : vector<8x128xf32> to vector<8x128xbf16>
    %c0_76 = arith.constant 0 : index
    %c0_77 = arith.constant 0 : index
    %169 = vector.load %arg7[%c0_76, %c0_77] : memref<128x512xbf16, #tpu.memory_space<vmem>>, vector<128x512xbf16>
    %cst_78 = arith.constant dense<0.000000e+00> : vector<8x512xf32>
    %170 = tpu.matmul %168, %169, %cst_78 {dimension_numbers = #tpu.dot_dimension_numbers<[1], [0], [0], [1], [0, 0, 1, 1], [], []>} : vector<8x128xbf16>, vector<128x512xbf16>, vector<8x512xf32> -> vector<8x512xf32>
    %171 = arith.addf %167, %170 : vector<8x512xf32>
    %172 = vector.extract_strided_slice %164 {offsets = [0, 0], sizes = [8, 384], strides = [1, 1]} : vector<8x512xf32> to vector<8x384xf32>
    %173 = arith.negf %172 : vector<8x384xf32>
    %174 = math.exp %173 : vector<8x384xf32>
    %cst_79 = arith.constant 1.000000e+00 : f32
    %175 = vector.broadcast %cst_79 : f32 to vector<8x384xf32>
    %176 = arith.addf %175, %174 : vector<8x384xf32>
    %177 = arith.divf %175, %176 : vector<8x384xf32>
    %178 = vector.extract_strided_slice %164 {offsets = [0, 384], sizes = [8, 128], strides = [1, 1]} : vector<8x512xf32> to vector<8x128xf32>
    %179 = math.tanh %178 : vector<8x128xf32>
    %180 = vector.extract_strided_slice %177 {offsets = [0, 128], sizes = [8, 128], strides = [1, 1]} : vector<8x384xf32> to vector<8x128xf32>
    %181 = arith.mulf %180, %137 : vector<8x128xf32>
    %182 = vector.extract_strided_slice %177 {offsets = [0, 0], sizes = [8, 128], strides = [1, 1]} : vector<8x384xf32> to vector<8x128xf32>
    %183 = arith.mulf %182, %179 : vector<8x128xf32>
    %184 = arith.addf %181, %183 : vector<8x128xf32>
    %185 = vector.extract_strided_slice %177 {offsets = [0, 256], sizes = [8, 128], strides = [1, 1]} : vector<8x384xf32> to vector<8x128xf32>
    %186 = math.tanh %184 : vector<8x128xf32>
    %187 = arith.mulf %185, %186 : vector<8x128xf32>
    %188 = vector.extract_strided_slice %171 {offsets = [0, 0], sizes = [8, 384], strides = [1, 1]} : vector<8x512xf32> to vector<8x384xf32>
    %189 = arith.negf %188 : vector<8x384xf32>
    %190 = math.exp %189 : vector<8x384xf32>
    %cst_80 = arith.constant 1.000000e+00 : f32
    %191 = vector.broadcast %cst_80 : f32 to vector<8x384xf32>
    %192 = arith.addf %191, %190 : vector<8x384xf32>
    %193 = arith.divf %191, %192 : vector<8x384xf32>
    %194 = vector.extract_strided_slice %171 {offsets = [0, 384], sizes = [8, 128], strides = [1, 1]} : vector<8x512xf32> to vector<8x128xf32>
    %195 = math.tanh %194 : vector<8x128xf32>
    %196 = vector.extract_strided_slice %193 {offsets = [0, 128], sizes = [8, 128], strides = [1, 1]} : vector<8x384xf32> to vector<8x128xf32>
    %197 = arith.mulf %196, %153 : vector<8x128xf32>
    %198 = vector.extract_strided_slice %193 {offsets = [0, 0], sizes = [8, 128], strides = [1, 1]} : vector<8x384xf32> to vector<8x128xf32>
    %199 = arith.mulf %198, %195 : vector<8x128xf32>
    %200 = arith.addf %197, %199 : vector<8x128xf32>
    %201 = vector.extract_strided_slice %193 {offsets = [0, 256], sizes = [8, 128], strides = [1, 1]} : vector<8x384xf32> to vector<8x128xf32>
    %202 = math.tanh %200 : vector<8x128xf32>
    %203 = arith.mulf %201, %202 : vector<8x128xf32>
    %c4_i32 = arith.constant 4 : i32
    %204 = arith.truncf %203 : vector<8x128xf32> to vector<8x128xbf16>
    %205 = arith.truncf %187 : vector<8x128xf32> to vector<8x128xbf16>
    %206 = tpu.concatenate %204, %205 in 1 : vector<8x128xbf16>, vector<8x128xbf16> -> vector<8x256xbf16>
    %c0_81 = arith.constant 0 : index
    %c0_82 = arith.constant 0 : index
    %207 = vector.load %arg9[%c0_81, %c0_82] : memref<256x512xbf16, #tpu.memory_space<vmem>>, vector<256x512xbf16>
    %cst_83 = arith.constant dense<0.000000e+00> : vector<8x512xf32>
    %208 = tpu.matmul %206, %207, %cst_83 {dimension_numbers = #tpu.dot_dimension_numbers<[1], [0], [0], [1], [0, 0, 1, 1], [], []>} : vector<8x256xbf16>, vector<256x512xbf16>, vector<8x512xf32> -> vector<8x512xf32>
    %c0_84 = arith.constant 0 : index
    %c0_85 = arith.constant 0 : index
    %209 = vector.load %arg10[%c0_84, %c0_85] : memref<1x512xf32, #tpu.memory_space<vmem>>, vector<1x512xf32>
    %210 = vector.broadcast %209 : vector<1x512xf32> to vector<8x512xf32>
    %211 = arith.addf %208, %210 : vector<8x512xf32>
    %212 = arith.index_cast %c4_i32 : i32 to index
    %c0_86 = arith.constant 0 : index
    %c0_87 = arith.constant 0 : index
    %213 = vector.load %arg21[%212, %c0_86, %c0_87] : memref<8x8x512xf32, #tpu.memory_space<vmem>>, vector<1x8x512xf32>
    %214 = vector.shape_cast %213 : vector<1x8x512xf32> to vector<8x512xf32>
    %215 = arith.truncf %203 : vector<8x128xf32> to vector<8x128xbf16>
    %c0_88 = arith.constant 0 : index
    %c0_89 = arith.constant 0 : index
    %216 = vector.load %arg7[%c0_88, %c0_89] : memref<128x512xbf16, #tpu.memory_space<vmem>>, vector<128x512xbf16>
    %cst_90 = arith.constant dense<0.000000e+00> : vector<8x512xf32>
    %217 = tpu.matmul %215, %216, %cst_90 {dimension_numbers = #tpu.dot_dimension_numbers<[1], [0], [0], [1], [0, 0, 1, 1], [], []>} : vector<8x128xbf16>, vector<128x512xbf16>, vector<8x512xf32> -> vector<8x512xf32>
    %218 = arith.addf %214, %217 : vector<8x512xf32>
    %219 = vector.extract_strided_slice %211 {offsets = [0, 0], sizes = [8, 384], strides = [1, 1]} : vector<8x512xf32> to vector<8x384xf32>
    %220 = arith.negf %219 : vector<8x384xf32>
    %221 = math.exp %220 : vector<8x384xf32>
    %cst_91 = arith.constant 1.000000e+00 : f32
    %222 = vector.broadcast %cst_91 : f32 to vector<8x384xf32>
    %223 = arith.addf %222, %221 : vector<8x384xf32>
    %224 = arith.divf %222, %223 : vector<8x384xf32>
    %225 = vector.extract_strided_slice %211 {offsets = [0, 384], sizes = [8, 128], strides = [1, 1]} : vector<8x512xf32> to vector<8x128xf32>
    %226 = math.tanh %225 : vector<8x128xf32>
    %227 = vector.extract_strided_slice %224 {offsets = [0, 128], sizes = [8, 128], strides = [1, 1]} : vector<8x384xf32> to vector<8x128xf32>
    %228 = arith.mulf %227, %184 : vector<8x128xf32>
    %229 = vector.extract_strided_slice %224 {offsets = [0, 0], sizes = [8, 128], strides = [1, 1]} : vector<8x384xf32> to vector<8x128xf32>
    %230 = arith.mulf %229, %226 : vector<8x128xf32>
    %231 = arith.addf %228, %230 : vector<8x128xf32>
    %232 = vector.extract_strided_slice %224 {offsets = [0, 256], sizes = [8, 128], strides = [1, 1]} : vector<8x384xf32> to vector<8x128xf32>
    %233 = math.tanh %231 : vector<8x128xf32>
    %234 = arith.mulf %232, %233 : vector<8x128xf32>
    %235 = vector.extract_strided_slice %218 {offsets = [0, 0], sizes = [8, 384], strides = [1, 1]} : vector<8x512xf32> to vector<8x384xf32>
    %236 = arith.negf %235 : vector<8x384xf32>
    %237 = math.exp %236 : vector<8x384xf32>
    %cst_92 = arith.constant 1.000000e+00 : f32
    %238 = vector.broadcast %cst_92 : f32 to vector<8x384xf32>
    %239 = arith.addf %238, %237 : vector<8x384xf32>
    %240 = arith.divf %238, %239 : vector<8x384xf32>
    %241 = vector.extract_strided_slice %218 {offsets = [0, 384], sizes = [8, 128], strides = [1, 1]} : vector<8x512xf32> to vector<8x128xf32>
    %242 = math.tanh %241 : vector<8x128xf32>
    %243 = vector.extract_strided_slice %240 {offsets = [0, 128], sizes = [8, 128], strides = [1, 1]} : vector<8x384xf32> to vector<8x128xf32>
    %244 = arith.mulf %243, %200 : vector<8x128xf32>
    %245 = vector.extract_strided_slice %240 {offsets = [0, 0], sizes = [8, 128], strides = [1, 1]} : vector<8x384xf32> to vector<8x128xf32>
    %246 = arith.mulf %245, %242 : vector<8x128xf32>
    %247 = arith.addf %244, %246 : vector<8x128xf32>
    %248 = vector.extract_strided_slice %240 {offsets = [0, 256], sizes = [8, 128], strides = [1, 1]} : vector<8x384xf32> to vector<8x128xf32>
    %249 = math.tanh %247 : vector<8x128xf32>
    %250 = arith.mulf %248, %249 : vector<8x128xf32>
    %c5_i32 = arith.constant 5 : i32
    %251 = arith.truncf %250 : vector<8x128xf32> to vector<8x128xbf16>
    %252 = arith.truncf %234 : vector<8x128xf32> to vector<8x128xbf16>
    %253 = tpu.concatenate %251, %252 in 1 : vector<8x128xbf16>, vector<8x128xbf16> -> vector<8x256xbf16>
    %c0_93 = arith.constant 0 : index
    %c0_94 = arith.constant 0 : index
    %254 = vector.load %arg9[%c0_93, %c0_94] : memref<256x512xbf16, #tpu.memory_space<vmem>>, vector<256x512xbf16>
    %cst_95 = arith.constant dense<0.000000e+00> : vector<8x512xf32>
    %255 = tpu.matmul %253, %254, %cst_95 {dimension_numbers = #tpu.dot_dimension_numbers<[1], [0], [0], [1], [0, 0, 1, 1], [], []>} : vector<8x256xbf16>, vector<256x512xbf16>, vector<8x512xf32> -> vector<8x512xf32>
    %c0_96 = arith.constant 0 : index
    %c0_97 = arith.constant 0 : index
    %256 = vector.load %arg10[%c0_96, %c0_97] : memref<1x512xf32, #tpu.memory_space<vmem>>, vector<1x512xf32>
    %257 = vector.broadcast %256 : vector<1x512xf32> to vector<8x512xf32>
    %258 = arith.addf %255, %257 : vector<8x512xf32>
    %259 = arith.index_cast %c5_i32 : i32 to index
    %c0_98 = arith.constant 0 : index
    %c0_99 = arith.constant 0 : index
    %260 = vector.load %arg21[%259, %c0_98, %c0_99] : memref<8x8x512xf32, #tpu.memory_space<vmem>>, vector<1x8x512xf32>
    %261 = vector.shape_cast %260 : vector<1x8x512xf32> to vector<8x512xf32>
    %262 = arith.truncf %250 : vector<8x128xf32> to vector<8x128xbf16>
    %c0_100 = arith.constant 0 : index
    %c0_101 = arith.constant 0 : index
    %263 = vector.load %arg7[%c0_100, %c0_101] : memref<128x512xbf16, #tpu.memory_space<vmem>>, vector<128x512xbf16>
    %cst_102 = arith.constant dense<0.000000e+00> : vector<8x512xf32>
    %264 = tpu.matmul %262, %263, %cst_102 {dimension_numbers = #tpu.dot_dimension_numbers<[1], [0], [0], [1], [0, 0, 1, 1], [], []>} : vector<8x128xbf16>, vector<128x512xbf16>, vector<8x512xf32> -> vector<8x512xf32>
    %265 = arith.addf %261, %264 : vector<8x512xf32>
    %266 = vector.extract_strided_slice %258 {offsets = [0, 0], sizes = [8, 384], strides = [1, 1]} : vector<8x512xf32> to vector<8x384xf32>
    %267 = arith.negf %266 : vector<8x384xf32>
    %268 = math.exp %267 : vector<8x384xf32>
    %cst_103 = arith.constant 1.000000e+00 : f32
    %269 = vector.broadcast %cst_103 : f32 to vector<8x384xf32>
    %270 = arith.addf %269, %268 : vector<8x384xf32>
    %271 = arith.divf %269, %270 : vector<8x384xf32>
    %272 = vector.extract_strided_slice %258 {offsets = [0, 384], sizes = [8, 128], strides = [1, 1]} : vector<8x512xf32> to vector<8x128xf32>
    %273 = math.tanh %272 : vector<8x128xf32>
    %274 = vector.extract_strided_slice %271 {offsets = [0, 128], sizes = [8, 128], strides = [1, 1]} : vector<8x384xf32> to vector<8x128xf32>
    %275 = arith.mulf %274, %231 : vector<8x128xf32>
    %276 = vector.extract_strided_slice %271 {offsets = [0, 0], sizes = [8, 128], strides = [1, 1]} : vector<8x384xf32> to vector<8x128xf32>
    %277 = arith.mulf %276, %273 : vector<8x128xf32>
    %278 = arith.addf %275, %277 : vector<8x128xf32>
    %279 = vector.extract_strided_slice %271 {offsets = [0, 256], sizes = [8, 128], strides = [1, 1]} : vector<8x384xf32> to vector<8x128xf32>
    %280 = math.tanh %278 : vector<8x128xf32>
    %281 = arith.mulf %279, %280 : vector<8x128xf32>
    %282 = vector.extract_strided_slice %265 {offsets = [0, 0], sizes = [8, 384], strides = [1, 1]} : vector<8x512xf32> to vector<8x384xf32>
    %283 = arith.negf %282 : vector<8x384xf32>
    %284 = math.exp %283 : vector<8x384xf32>
    %cst_104 = arith.constant 1.000000e+00 : f32
    %285 = vector.broadcast %cst_104 : f32 to vector<8x384xf32>
    %286 = arith.addf %285, %284 : vector<8x384xf32>
    %287 = arith.divf %285, %286 : vector<8x384xf32>
    %288 = vector.extract_strided_slice %265 {offsets = [0, 384], sizes = [8, 128], strides = [1, 1]} : vector<8x512xf32> to vector<8x128xf32>
    %289 = math.tanh %288 : vector<8x128xf32>
    %290 = vector.extract_strided_slice %287 {offsets = [0, 128], sizes = [8, 128], strides = [1, 1]} : vector<8x384xf32> to vector<8x128xf32>
    %291 = arith.mulf %290, %247 : vector<8x128xf32>
    %292 = vector.extract_strided_slice %287 {offsets = [0, 0], sizes = [8, 128], strides = [1, 1]} : vector<8x384xf32> to vector<8x128xf32>
    %293 = arith.mulf %292, %289 : vector<8x128xf32>
    %294 = arith.addf %291, %293 : vector<8x128xf32>
    %295 = vector.extract_strided_slice %287 {offsets = [0, 256], sizes = [8, 128], strides = [1, 1]} : vector<8x384xf32> to vector<8x128xf32>
    %296 = math.tanh %294 : vector<8x128xf32>
    %297 = arith.mulf %295, %296 : vector<8x128xf32>
    %c6_i32 = arith.constant 6 : i32
    %298 = arith.truncf %297 : vector<8x128xf32> to vector<8x128xbf16>
    %299 = arith.truncf %281 : vector<8x128xf32> to vector<8x128xbf16>
    %300 = tpu.concatenate %298, %299 in 1 : vector<8x128xbf16>, vector<8x128xbf16> -> vector<8x256xbf16>
    %c0_105 = arith.constant 0 : index
    %c0_106 = arith.constant 0 : index
    %301 = vector.load %arg9[%c0_105, %c0_106] : memref<256x512xbf16, #tpu.memory_space<vmem>>, vector<256x512xbf16>
    %cst_107 = arith.constant dense<0.000000e+00> : vector<8x512xf32>
    %302 = tpu.matmul %300, %301, %cst_107 {dimension_numbers = #tpu.dot_dimension_numbers<[1], [0], [0], [1], [0, 0, 1, 1], [], []>} : vector<8x256xbf16>, vector<256x512xbf16>, vector<8x512xf32> -> vector<8x512xf32>
    %c0_108 = arith.constant 0 : index
    %c0_109 = arith.constant 0 : index
    %303 = vector.load %arg10[%c0_108, %c0_109] : memref<1x512xf32, #tpu.memory_space<vmem>>, vector<1x512xf32>
    %304 = vector.broadcast %303 : vector<1x512xf32> to vector<8x512xf32>
    %305 = arith.addf %302, %304 : vector<8x512xf32>
    %306 = arith.index_cast %c6_i32 : i32 to index
    %c0_110 = arith.constant 0 : index
    %c0_111 = arith.constant 0 : index
    %307 = vector.load %arg21[%306, %c0_110, %c0_111] : memref<8x8x512xf32, #tpu.memory_space<vmem>>, vector<1x8x512xf32>
    %308 = vector.shape_cast %307 : vector<1x8x512xf32> to vector<8x512xf32>
    %309 = arith.truncf %297 : vector<8x128xf32> to vector<8x128xbf16>
    %c0_112 = arith.constant 0 : index
    %c0_113 = arith.constant 0 : index
    %310 = vector.load %arg7[%c0_112, %c0_113] : memref<128x512xbf16, #tpu.memory_space<vmem>>, vector<128x512xbf16>
    %cst_114 = arith.constant dense<0.000000e+00> : vector<8x512xf32>
    %311 = tpu.matmul %309, %310, %cst_114 {dimension_numbers = #tpu.dot_dimension_numbers<[1], [0], [0], [1], [0, 0, 1, 1], [], []>} : vector<8x128xbf16>, vector<128x512xbf16>, vector<8x512xf32> -> vector<8x512xf32>
    %312 = arith.addf %308, %311 : vector<8x512xf32>
    %313 = vector.extract_strided_slice %305 {offsets = [0, 0], sizes = [8, 384], strides = [1, 1]} : vector<8x512xf32> to vector<8x384xf32>
    %314 = arith.negf %313 : vector<8x384xf32>
    %315 = math.exp %314 : vector<8x384xf32>
    %cst_115 = arith.constant 1.000000e+00 : f32
    %316 = vector.broadcast %cst_115 : f32 to vector<8x384xf32>
    %317 = arith.addf %316, %315 : vector<8x384xf32>
    %318 = arith.divf %316, %317 : vector<8x384xf32>
    %319 = vector.extract_strided_slice %305 {offsets = [0, 384], sizes = [8, 128], strides = [1, 1]} : vector<8x512xf32> to vector<8x128xf32>
    %320 = math.tanh %319 : vector<8x128xf32>
    %321 = vector.extract_strided_slice %318 {offsets = [0, 128], sizes = [8, 128], strides = [1, 1]} : vector<8x384xf32> to vector<8x128xf32>
    %322 = arith.mulf %321, %278 : vector<8x128xf32>
    %323 = vector.extract_strided_slice %318 {offsets = [0, 0], sizes = [8, 128], strides = [1, 1]} : vector<8x384xf32> to vector<8x128xf32>
    %324 = arith.mulf %323, %320 : vector<8x128xf32>
    %325 = arith.addf %322, %324 : vector<8x128xf32>
    %326 = vector.extract_strided_slice %318 {offsets = [0, 256], sizes = [8, 128], strides = [1, 1]} : vector<8x384xf32> to vector<8x128xf32>
    %327 = math.tanh %325 : vector<8x128xf32>
    %328 = arith.mulf %326, %327 : vector<8x128xf32>
    %329 = vector.extract_strided_slice %312 {offsets = [0, 0], sizes = [8, 384], strides = [1, 1]} : vector<8x512xf32> to vector<8x384xf32>
    %330 = arith.negf %329 : vector<8x384xf32>
    %331 = math.exp %330 : vector<8x384xf32>
    %cst_116 = arith.constant 1.000000e+00 : f32
    %332 = vector.broadcast %cst_116 : f32 to vector<8x384xf32>
    %333 = arith.addf %332, %331 : vector<8x384xf32>
    %334 = arith.divf %332, %333 : vector<8x384xf32>
    %335 = vector.extract_strided_slice %312 {offsets = [0, 384], sizes = [8, 128], strides = [1, 1]} : vector<8x512xf32> to vector<8x128xf32>
    %336 = math.tanh %335 : vector<8x128xf32>
    %337 = vector.extract_strided_slice %334 {offsets = [0, 128], sizes = [8, 128], strides = [1, 1]} : vector<8x384xf32> to vector<8x128xf32>
    %338 = arith.mulf %337, %294 : vector<8x128xf32>
    %339 = vector.extract_strided_slice %334 {offsets = [0, 0], sizes = [8, 128], strides = [1, 1]} : vector<8x384xf32> to vector<8x128xf32>
    %340 = arith.mulf %339, %336 : vector<8x128xf32>
    %341 = arith.addf %338, %340 : vector<8x128xf32>
    %342 = vector.extract_strided_slice %334 {offsets = [0, 256], sizes = [8, 128], strides = [1, 1]} : vector<8x384xf32> to vector<8x128xf32>
    %343 = math.tanh %341 : vector<8x128xf32>
    %344 = arith.mulf %342, %343 : vector<8x128xf32>
    %c7_i32 = arith.constant 7 : i32
    %345 = arith.truncf %344 : vector<8x128xf32> to vector<8x128xbf16>
    %346 = arith.truncf %328 : vector<8x128xf32> to vector<8x128xbf16>
    %347 = tpu.concatenate %345, %346 in 1 : vector<8x128xbf16>, vector<8x128xbf16> -> vector<8x256xbf16>
    %c0_117 = arith.constant 0 : index
    %c0_118 = arith.constant 0 : index
    %348 = vector.load %arg9[%c0_117, %c0_118] : memref<256x512xbf16, #tpu.memory_space<vmem>>, vector<256x512xbf16>
    %cst_119 = arith.constant dense<0.000000e+00> : vector<8x512xf32>
    %349 = tpu.matmul %347, %348, %cst_119 {dimension_numbers = #tpu.dot_dimension_numbers<[1], [0], [0], [1], [0, 0, 1, 1], [], []>} : vector<8x256xbf16>, vector<256x512xbf16>, vector<8x512xf32> -> vector<8x512xf32>
    %c0_120 = arith.constant 0 : index
    %c0_121 = arith.constant 0 : index
    %350 = vector.load %arg10[%c0_120, %c0_121] : memref<1x512xf32, #tpu.memory_space<vmem>>, vector<1x512xf32>
    %351 = vector.broadcast %350 : vector<1x512xf32> to vector<8x512xf32>
    %352 = arith.addf %349, %351 : vector<8x512xf32>
    %353 = arith.index_cast %c7_i32 : i32 to index
    %c0_122 = arith.constant 0 : index
    %c0_123 = arith.constant 0 : index
    %354 = vector.load %arg21[%353, %c0_122, %c0_123] : memref<8x8x512xf32, #tpu.memory_space<vmem>>, vector<1x8x512xf32>
    %355 = vector.shape_cast %354 : vector<1x8x512xf32> to vector<8x512xf32>
    %356 = arith.truncf %344 : vector<8x128xf32> to vector<8x128xbf16>
    %c0_124 = arith.constant 0 : index
    %c0_125 = arith.constant 0 : index
    %357 = vector.load %arg7[%c0_124, %c0_125] : memref<128x512xbf16, #tpu.memory_space<vmem>>, vector<128x512xbf16>
    %cst_126 = arith.constant dense<0.000000e+00> : vector<8x512xf32>
    %358 = tpu.matmul %356, %357, %cst_126 {dimension_numbers = #tpu.dot_dimension_numbers<[1], [0], [0], [1], [0, 0, 1, 1], [], []>} : vector<8x128xbf16>, vector<128x512xbf16>, vector<8x512xf32> -> vector<8x512xf32>
    %359 = arith.addf %355, %358 : vector<8x512xf32>
    %360 = vector.extract_strided_slice %352 {offsets = [0, 0], sizes = [8, 384], strides = [1, 1]} : vector<8x512xf32> to vector<8x384xf32>
    %361 = arith.negf %360 : vector<8x384xf32>
    %362 = math.exp %361 : vector<8x384xf32>
    %cst_127 = arith.constant 1.000000e+00 : f32
    %363 = vector.broadcast %cst_127 : f32 to vector<8x384xf32>
    %364 = arith.addf %363, %362 : vector<8x384xf32>
    %365 = arith.divf %363, %364 : vector<8x384xf32>
    %366 = vector.extract_strided_slice %352 {offsets = [0, 384], sizes = [8, 128], strides = [1, 1]} : vector<8x512xf32> to vector<8x128xf32>
    %367 = math.tanh %366 : vector<8x128xf32>
    %368 = vector.extract_strided_slice %365 {offsets = [0, 128], sizes = [8, 128], strides = [1, 1]} : vector<8x384xf32> to vector<8x128xf32>
    %369 = arith.mulf %368, %325 : vector<8x128xf32>
    %370 = vector.extract_strided_slice %365 {offsets = [0, 0], sizes = [8, 128], strides = [1, 1]} : vector<8x384xf32> to vector<8x128xf32>
    %371 = arith.mulf %370, %367 : vector<8x128xf32>
    %372 = arith.addf %369, %371 : vector<8x128xf32>
    %373 = vector.extract_strided_slice %365 {offsets = [0, 256], sizes = [8, 128], strides = [1, 1]} : vector<8x384xf32> to vector<8x128xf32>
    %374 = math.tanh %372 : vector<8x128xf32>
    %375 = arith.mulf %373, %374 : vector<8x128xf32>
    %376 = vector.extract_strided_slice %359 {offsets = [0, 0], sizes = [8, 384], strides = [1, 1]} : vector<8x512xf32> to vector<8x384xf32>
    %377 = arith.negf %376 : vector<8x384xf32>
    %378 = math.exp %377 : vector<8x384xf32>
    %cst_128 = arith.constant 1.000000e+00 : f32
    %379 = vector.broadcast %cst_128 : f32 to vector<8x384xf32>
    %380 = arith.addf %379, %378 : vector<8x384xf32>
    %381 = arith.divf %379, %380 : vector<8x384xf32>
    %382 = vector.extract_strided_slice %359 {offsets = [0, 384], sizes = [8, 128], strides = [1, 1]} : vector<8x512xf32> to vector<8x128xf32>
    %383 = math.tanh %382 : vector<8x128xf32>
    %384 = vector.extract_strided_slice %381 {offsets = [0, 128], sizes = [8, 128], strides = [1, 1]} : vector<8x384xf32> to vector<8x128xf32>
    %385 = arith.mulf %384, %341 : vector<8x128xf32>
    %386 = vector.extract_strided_slice %381 {offsets = [0, 0], sizes = [8, 128], strides = [1, 1]} : vector<8x384xf32> to vector<8x128xf32>
    %387 = arith.mulf %386, %383 : vector<8x128xf32>
    %388 = arith.addf %385, %387 : vector<8x128xf32>
    %389 = vector.extract_strided_slice %381 {offsets = [0, 256], sizes = [8, 128], strides = [1, 1]} : vector<8x384xf32> to vector<8x128xf32>
    %390 = math.tanh %388 : vector<8x128xf32>
    %391 = arith.mulf %389, %390 : vector<8x128xf32>
    %c7_i32_129 = arith.constant 7 : i32
    %392 = arith.truncf %391 : vector<8x128xf32> to vector<8x128xbf16>
    %393 = arith.truncf %375 : vector<8x128xf32> to vector<8x128xbf16>
    %394 = tpu.concatenate %392, %393 in 1 : vector<8x128xbf16>, vector<8x128xbf16> -> vector<8x256xbf16>
    %c0_130 = arith.constant 0 : index
    %c0_131 = arith.constant 0 : index
    %395 = vector.load %arg9[%c0_130, %c0_131] : memref<256x512xbf16, #tpu.memory_space<vmem>>, vector<256x512xbf16>
    %cst_132 = arith.constant dense<0.000000e+00> : vector<8x512xf32>
    %396 = tpu.matmul %394, %395, %cst_132 {dimension_numbers = #tpu.dot_dimension_numbers<[1], [0], [0], [1], [0, 0, 1, 1], [], []>} : vector<8x256xbf16>, vector<256x512xbf16>, vector<8x512xf32> -> vector<8x512xf32>
    %c0_133 = arith.constant 0 : index
    %c0_134 = arith.constant 0 : index
    %397 = vector.load %arg10[%c0_133, %c0_134] : memref<1x512xf32, #tpu.memory_space<vmem>>, vector<1x512xf32>
    %398 = vector.broadcast %397 : vector<1x512xf32> to vector<8x512xf32>
    %399 = arith.addf %396, %398 : vector<8x512xf32>
    %400 = vector.extract_strided_slice %399 {offsets = [0, 0], sizes = [8, 384], strides = [1, 1]} : vector<8x512xf32> to vector<8x384xf32>
    %401 = arith.negf %400 : vector<8x384xf32>
    %402 = math.exp %401 : vector<8x384xf32>
    %cst_135 = arith.constant 1.000000e+00 : f32
    %403 = vector.broadcast %cst_135 : f32 to vector<8x384xf32>
    %404 = arith.addf %403, %402 : vector<8x384xf32>
    %405 = arith.divf %403, %404 : vector<8x384xf32>
    %406 = vector.extract_strided_slice %399 {offsets = [0, 384], sizes = [8, 128], strides = [1, 1]} : vector<8x512xf32> to vector<8x128xf32>
    %407 = math.tanh %406 : vector<8x128xf32>
    %408 = vector.extract_strided_slice %405 {offsets = [0, 128], sizes = [8, 128], strides = [1, 1]} : vector<8x384xf32> to vector<8x128xf32>
    %409 = arith.mulf %408, %372 : vector<8x128xf32>
    %410 = vector.extract_strided_slice %405 {offsets = [0, 0], sizes = [8, 128], strides = [1, 1]} : vector<8x384xf32> to vector<8x128xf32>
    %411 = arith.mulf %410, %407 : vector<8x128xf32>
    %412 = arith.addf %409, %411 : vector<8x128xf32>
    %413 = vector.extract_strided_slice %405 {offsets = [0, 256], sizes = [8, 128], strides = [1, 1]} : vector<8x384xf32> to vector<8x128xf32>
    %414 = math.tanh %412 : vector<8x128xf32>
    %415 = arith.mulf %413, %414 : vector<8x128xf32>
    %c0_136 = arith.constant 0 : index
    %c0_137 = arith.constant 0 : index
    %c0_138 = arith.constant 0 : index
    %416 = vector.load %arg19[%c0_136, %c0_137, %c0_138] : memref<2x8x128xf32, #tpu.memory_space<vmem>>, vector<1x8x128xf32>
    %417 = vector.shape_cast %416 : vector<1x8x128xf32> to vector<8x128xf32>
    %418 = vector.shape_cast %391 : vector<8x128xf32> to vector<1x8x128xf32>
    tpu.vector_store %arg19[%c0_136, %c0_137, %c0_138], %418 {strides = array<i32>} : memref<2x8x128xf32, #tpu.memory_space<vmem>>, vector<1x8x128xf32>,
    %c0_139 = arith.constant 0 : index
    %c0_140 = arith.constant 0 : index
    %c0_141 = arith.constant 0 : index
    %419 = vector.load %arg20[%c0_139, %c0_140, %c0_141] : memref<2x8x128xf32, #tpu.memory_space<vmem>>, vector<1x8x128xf32>
    %420 = vector.shape_cast %419 : vector<1x8x128xf32> to vector<8x128xf32>
    %421 = vector.shape_cast %388 : vector<8x128xf32> to vector<1x8x128xf32>
    tpu.vector_store %arg20[%c0_139, %c0_140, %c0_141], %421 {strides = array<i32>} : memref<2x8x128xf32, #tpu.memory_space<vmem>>, vector<1x8x128xf32>,
    %c1_142 = arith.constant 1 : index
    %c0_143 = arith.constant 0 : index
    %c0_144 = arith.constant 0 : index
    %422 = vector.load %arg19[%c1_142, %c0_143, %c0_144] : memref<2x8x128xf32, #tpu.memory_space<vmem>>, vector<1x8x128xf32>
    %423 = vector.shape_cast %422 : vector<1x8x128xf32> to vector<8x128xf32>
    %424 = vector.shape_cast %415 : vector<8x128xf32> to vector<1x8x128xf32>
    tpu.vector_store %arg19[%c1_142, %c0_143, %c0_144], %424 {strides = array<i32>} : memref<2x8x128xf32, #tpu.memory_space<vmem>>, vector<1x8x128xf32>,
    %c1_145 = arith.constant 1 : index
    %c0_146 = arith.constant 0 : index
    %c0_147 = arith.constant 0 : index
    %425 = vector.load %arg20[%c1_145, %c0_146, %c0_147] : memref<2x8x128xf32, #tpu.memory_space<vmem>>, vector<1x8x128xf32>
    %426 = vector.shape_cast %425 : vector<1x8x128xf32> to vector<8x128xf32>
    %427 = vector.shape_cast %412 : vector<8x128xf32> to vector<1x8x128xf32>
    tpu.vector_store %arg20[%c1_145, %c0_146, %c0_147], %427 {strides = array<i32>} : memref<2x8x128xf32, #tpu.memory_space<vmem>>, vector<1x8x128xf32>,
    %428 = arith.truncf %415 : vector<8x128xf32> to vector<8x128xbf16>
    %c0_148 = arith.constant 0 : index
    %c0_149 = arith.constant 0 : index
    %429 = vector.load %arg13[%c0_148, %c0_149] : memref<128x256xbf16, #tpu.memory_space<vmem>>, vector<128x256xbf16>
    %cst_150 = arith.constant dense<0.000000e+00> : vector<8x256xf32>
    %430 = tpu.matmul %428, %429, %cst_150 {dimension_numbers = #tpu.dot_dimension_numbers<[1], [0], [0], [1], [0, 0, 1, 1], [], []>} : vector<8x128xbf16>, vector<128x256xbf16>, vector<8x256xf32> -> vector<8x256xf32>
    %431 = arith.addf %430, %14 : vector<8x256xf32>
    %cst_151 = arith.constant 0.000000e+00 : f32
    %432 = vector.broadcast %cst_151 : f32 to vector<8x256xf32>
    %433 = arith.maximumf %431, %432 : vector<8x256xf32>
    %434 = arith.truncf %433 : vector<8x256xf32> to vector<8x256xbf16>
    %c0_152 = arith.constant 0 : index
    %c0_153 = arith.constant 0 : index
    %435 = vector.load %arg16[%c0_152, %c0_153] : memref<256x128xbf16, #tpu.memory_space<vmem>>, vector<256x128xbf16>
    %cst_154 = arith.constant dense<0.000000e+00> : vector<8x128xf32>
    %436 = tpu.matmul %434, %435, %cst_154 {dimension_numbers = #tpu.dot_dimension_numbers<[1], [0], [0], [1], [0, 0, 1, 1], [], []>} : vector<8x256xbf16>, vector<256x128xbf16>, vector<8x128xf32> -> vector<8x128xf32>
    %c0_155 = arith.constant 0 : index
    %c0_156 = arith.constant 0 : index
    %437 = vector.load %arg17[%c0_155, %c0_156] : memref<1x128xf32, #tpu.memory_space<vmem>>, vector<1x128xf32>
    %438 = vector.broadcast %437 : vector<1x128xf32> to vector<8x128xf32>
    %439 = arith.addf %436, %438 : vector<8x128xf32>
    %c0_157 = arith.constant 0 : index
    %c0_158 = arith.constant 0 : index
    %440 = vector.load %arg18[%c0_157, %c0_158] : memref<8x128xf32, #tpu.memory_space<vmem>>, vector<8x128xf32>
    tpu.vector_store %arg18[%c0_157, %c0_158], %439 {strides = array<i32>} : memref<8x128xf32, #tpu.memory_space<vmem>>, vector<8x128xf32>,
    return
  }
}

</mosaic_0001>

<llo_original>
// kernel: critic_forward.1
$region0: #{critic_forward.1}
  #allocation0 [shape = 'u32[]', space=smem, size = 0x4, offset = 0x4, fixed_abs, tag = 'smem constant byte address 0x4 - core index']
  #allocation1 [shape = 'u32[144,128]{1,0:T(1,128)}', space=vmem, size = 0x12000, scoped, tag = 'internal scratch']
  #allocation2 [shape = 'f32[8,8,512]{2,1,0:T(8,128)}', space=vmem, size = 0x20000, scoped, tag = 'scratch operand']
  %s0 = inlined_call_operand.vmem [shape: f32[64,16], index: 0, kind: input, shape index: {}]
  %s1 = inlined_call_operand.vmem [shape: f32[8,4], index: 1, kind: input, shape index: {}]
  %s2 = inlined_call_operand.vmem [shape: f32[2,8,128], index: 2, kind: input, shape index: {}]
  %s3 = inlined_call_operand.vmem [shape: f32[2,8,128], index: 3, kind: input, shape index: {}]
  %s4 = inlined_call_operand.vmem [shape: bf16[16,128], index: 4, kind: input, shape index: {}]
  %s5 = inlined_call_operand.hbm [shape: f32[1,128], index: 5, kind: input, shape index: {}]
  %s6 = inlined_call_operand.hbm [shape: bf16[128,512], index: 6, kind: input, shape index: {}]
  %s7 = inlined_call_operand.hbm [shape: bf16[128,512], index: 7, kind: input, shape index: {}]
  %s8 = inlined_call_operand.vmem [shape: f32[1,512], index: 8, kind: input, shape index: {}]
  %s9 = inlined_call_operand.hbm [shape: bf16[256,512], index: 9, kind: input, shape index: {}]
  %s10 = inlined_call_operand.vmem [shape: f32[1,512], index: 10, kind: input, shape index: {}]
  %s11 = inlined_call_operand.hbm [shape: bf16[4,128], index: 11, kind: input, shape index: {}]
  %s12 = inlined_call_operand.hbm [shape: f32[1,128], index: 12, kind: input, shape index: {}]
  %s13 = inlined_call_operand.vmem [shape: bf16[128,256], index: 13, kind: input, shape index: {}]
  %s14 = inlined_call_operand.hbm [shape: bf16[128,256], index: 14, kind: input, shape index: {}]
  %s15 = inlined_call_operand.vmem [shape: f32[1,256], index: 15, kind: input, shape index: {}]
  %s16 = inlined_call_operand.hbm [shape: bf16[256,128], index: 16, kind: input, shape index: {}]
  %s17 = inlined_call_operand.vmem [shape: f32[1,128], index: 17, kind: input, shape index: {}]
  %s18 = inlined_call_operand.vmem [shape: f32[8,128], index: 18, kind: output, shape index: {0}]
  %s19 = inlined_call_operand.hbm [shape: f32[2,8,128], index: 19, kind: output, shape index: {1}]
  %s20 = inlined_call_operand.hbm [shape: f32[2,8,128], index: 20, kind: output, shape index: {2}]
  %21 = xla_tuple %s18, %s19, %s20
  %s22 = sld [smem:[#allocation0]]
  $region130: #{critic_forward.1} parent=0
    _
  %s24 = ssub.s32 1, %s22
  %s25 = scalar_select 0, %s24, %s22
  $region1: #{critic_forward.1} parent=0
    #allocation3 [shape = 'u8[512]{0}', space=vmem, size = 0x400, scoped, tag = 'input window, operand 5, single buffered']
    #allocation4 [shape = 's32[1]{0}', space=sflag, size = 0x4, scoped, tag = 'scoped memory for critic_forward.1']
    #allocation5 [shape = 's32[1]{0}', space=sflag, size = 0x4, scoped, tag = 'scoped memory for critic_forward.1']
    #allocation6 [shape = 'u8[131072]{0}', space=vmem, size = 0x20000, scoped, tag = 'input window, operand 6, single buffered']
    #allocation7 [shape = 's32[1]{0}', space=sflag, size = 0x4, scoped, tag = 'scoped memory for critic_forward.1']
    #allocation8 [shape = 'u8[131072]{0}', space=vmem, size = 0x20000, scoped, tag = 'input window, operand 7, single buffered']
    #allocation9 [shape = 'u8[262144]{0}', space=vmem, size = 0x40000, scoped, tag = 'input window, operand 9, single buffered']
    #allocation10 [shape = 's32[1]{0}', space=sflag, size = 0x4, scoped, tag = 'scoped memory for critic_forward.1']
    #allocation11 [shape = 'u8[1024]{0}', space=vmem, size = 0x400, scoped, tag = 'input window, operand 11, single buffered']
    #allocation12 [shape = 'u8[512]{0}', space=vmem, size = 0x400, scoped, tag = 'input window, operand 12, single buffered']
    #allocation13 [shape = 's32[1]{0}', space=sflag, size = 0x4, scoped, tag = 'scoped memory for critic_forward.1']
    #allocation14 [shape = 'u8[65536]{0}', space=vmem, size = 0x10000, scoped, tag = 'input window, operand 14, single buffered']
    #allocation15 [shape = 'u8[65536]{0}', space=vmem, size = 0x10000, scoped, tag = 'input window, operand 16, single buffered']
    #allocation16 [shape = 's32[1]{0}', space=sflag, size = 0x4, scoped, tag = 'scoped memory for critic_forward.1']
    #allocation17 [shape = 'u8[8192]{0}', space=vmem, size = 0x2000, scoped, tag = 'output window, operand 1, single buffered']
    #allocation18 [shape = 'u8[8192]{0}', space=vmem, size = 0x2000, scoped, tag = 'output window, operand 2, single buffered']
    #allocation19 [shape = 's32[1]{0}', space=sflag, size = 0x4, scoped, tag = 'scoped memory for critic_forward.1']
    %26 = vsyncpa [#allocation4], 0
    %27 = vsyncpa [#allocation7], 0
    %28 = vsyncpa [#allocation10], 0
    %29 = vsyncpa [#allocation13], 0
    %30 = vsyncpa [#allocation16], 0
    %31 = vsyncpa [#allocation5], 0
    %32 = vsyncpa [#allocation19], 0
    // Predicated region
    $region2: #{critic_forward.1} parent=1 // pred_check
      _
    $region3: #{critic_forward.1} parent=1 // pred_check_branch
      %34 = sbr.rel (0) target = $region5
    $region4: #{critic_forward.1} parent=1 // pred_region
      _
    $region5: #{critic_forward.1} parent=1 // pred_fallthru
      _
    // Predicated region
    $region6: #{critic_forward.1} parent=1 // pred_check
      _
    $region7: #{critic_forward.1} parent=1 // pred_check_branch
      %36 = sbr.rel (0) target = $region9
    $region8: #{critic_forward.1} parent=1 // pred_region
      _
    $region9: #{critic_forward.1} parent=1 // pred_fallthru
      _
    // Predicated region
    $region10: #{critic_forward.1} parent=1 // pred_check
      _
    $region11: #{critic_forward.1} parent=1 // pred_check_branch
      %38 = sbr.rel (0) target = $region13
    $region12: #{critic_forward.1} parent=1 // pred_region
      _
    $region13: #{critic_forward.1} parent=1 // pred_fallthru
      _
    // Predicated region
    $region14: #{critic_forward.1} parent=1 // pred_check
      _
    $region15: #{critic_forward.1} parent=1 // pred_check_branch
      %40 = sbr.rel (0) target = $region17
    $region16: #{critic_forward.1} parent=1 // pred_region
      _
    $region17: #{critic_forward.1} parent=1 // pred_fallthru
      _
    // Predicated region
    $region18: #{critic_forward.1} parent=1 // pred_check
      _
    $region19: #{critic_forward.1} parent=1 // pred_check_branch
      %42 = sbr.rel (0) target = $region21
    $region20: #{critic_forward.1} parent=1 // pred_region
      _
    $region21: #{critic_forward.1} parent=1 // pred_fallthru
      _
    // Predicated region
    $region22: #{critic_forward.1} parent=1 // pred_check
      _
    $region23: #{critic_forward.1} parent=1 // pred_check_branch
      %44 = sbr.rel (0) target = $region25
    $region24: #{critic_forward.1} parent=1 // pred_region
      %s46 = ssub.s32 16, 16
      %47 = vsyncadd [#allocation4], %s46
      %s49 = sshll.u32 [#allocation3], 4
      %s50 = int_to_ptr.vmem [resolvable:$true] %s49
      %52 = dma.hbm_to_vmem [thread:$0]  %s5, 16, %s50, [#allocation4]
    $region25: #{critic_forward.1} parent=1 // pred_fallthru
      _
    // Predicated region
    $region26: #{critic_forward.1} parent=1 // pred_check
      _
    $region27: #{critic_forward.1} parent=1 // pred_check_branch
      %54 = sbr.rel (0) target = $region29
    $region28: #{critic_forward.1} parent=1 // pred_region
      %s56 = ssub.s32 4096, 4096
      %57 = vsyncadd [#allocation7], %s56
      %s58 = sshll.u32 [#allocation6], 4
      %s59 = int_to_ptr.vmem [resolvable:$true] %s58
      %64 = dma.hbm_to_vmem [thread:$0]  %s6, 4096, %s59, [#allocation7], 256, 256, 16
    $region29: #{critic_forward.1} parent=1 // pred_fallthru
      _
    // Predicated region
    $region30: #{critic_forward.1} parent=1 // pred_check
      _
    $region31: #{critic_forward.1} parent=1 // pred_check_branch
      %66 = sbr.rel (0) target = $region33
    $region32: #{critic_forward.1} parent=1 // pred_region
      %s68 = ssub.s32 4096, 4096
      %69 = vsyncadd [#allocation7], %s68
      %s70 = sshll.u32 [#allocation8], 4
      %s71 = int_to_ptr.vmem [resolvable:$true] %s70
      %76 = dma.hbm_to_vmem [thread:$0]  %s7, 4096, %s71, [#allocation7], 256, 256, 16
    $region33: #{critic_forward.1} parent=1 // pred_fallthru
      _
    // Predicated region
    $region34: #{critic_forward.1} parent=1 // pred_check
      _
    $region35: #{critic_forward.1} parent=1 // pred_check_branch
      %78 = sbr.rel (0) target = $region37
    $region36: #{critic_forward.1} parent=1 // pred_region
      _
    $region37: #{critic_forward.1} parent=1 // pred_fallthru
      _
    // Predicated region
    $region38: #{critic_forward.1} parent=1 // pred_check
      _
    $region39: #{critic_forward.1} parent=1 // pred_check_branch
      %80 = sbr.rel (0) target = $region41
    $region40: #{critic_forward.1} parent=1 // pred_region
      %s82 = ssub.s32 8192, 8192
      %83 = vsyncadd [#allocation10], %s82
      %s84 = sshll.u32 [#allocation9], 4
      %s85 = int_to_ptr.vmem [resolvable:$true] %s84
      %90 = dma.hbm_to_vmem [thread:$0]  %s9, 8192, %s85, [#allocation10], 256, 256, 16
    $region41: #{critic_forward.1} parent=1 // pred_fallthru
      _
    // Predicated region
    $region42: #{critic_forward.1} parent=1 // pred_check
      _
    $region43: #{critic_forward.1} parent=1 // pred_check_branch
      %92 = sbr.rel (0) target = $region45
    $region44: #{critic_forward.1} parent=1 // pred_region
      _
    $region45: #{critic_forward.1} parent=1 // pred_fallthru
      _
    // Predicated region
    $region46: #{critic_forward.1} parent=1 // pred_check
      _
    $region47: #{critic_forward.1} parent=1 // pred_check_branch
      %94 = sbr.rel (0) target = $region49
    $region48: #{critic_forward.1} parent=1 // pred_region
      %s96 = ssub.s32 32, 32
      %97 = vsyncadd [#allocation10], %s96
      %s99 = sshll.u32 [#allocation11], 4
      %s100 = int_to_ptr.vmem [resolvable:$true] %s99
      %102 = dma.hbm_to_vmem [thread:$0]  %s11, 32, %s100, [#allocation10]
    $region49: #{critic_forward.1} parent=1 // pred_fallthru
      _
    // Predicated region
    $region50: #{critic_forward.1} parent=1 // pred_check
      _
    $region51: #{critic_forward.1} parent=1 // pred_check_branch
      %104 = sbr.rel (0) target = $region53
    $region52: #{critic_forward.1} parent=1 // pred_region
      %s106 = ssub.s32 16, 16
      %107 = vsyncadd [#allocation13], %s106
      %s109 = sshll.u32 [#allocation12], 4
      %s110 = int_to_ptr.vmem [resolvable:$true] %s109
      %112 = dma.hbm_to_vmem [thread:$0]  %s12, 16, %s110, [#allocation13]
    $region53: #{critic_forward.1} parent=1 // pred_fallthru
      _
    // Predicated region
    $region54: #{critic_forward.1} parent=1 // pred_check
      _
    $region55: #{critic_forward.1} parent=1 // pred_check_branch
      %114 = sbr.rel (0) target = $region57
    $region56: #{critic_forward.1} parent=1 // pred_region
      _
    $region57: #{critic_forward.1} parent=1 // pred_fallthru
      _
    // Predicated region
    $region58: #{critic_forward.1} parent=1 // pred_check
      _
    $region59: #{critic_forward.1} parent=1 // pred_check_branch
      %116 = sbr.rel (0) target = $region61
    $region60: #{critic_forward.1} parent=1 // pred_region
      %s118 = ssub.s32 2048, 2048
      %119 = vsyncadd [#allocation13], %s118
      %s120 = sshll.u32 [#allocation14], 4
      %s121 = int_to_ptr.vmem [resolvable:$true] %s120
      %126 = dma.hbm_to_vmem [thread:$0]  %s14, 2048, %s121, [#allocation13], 128, 128, 8
    $region61: #{critic_forward.1} parent=1 // pred_fallthru
      _
    // Predicated region
    $region62: #{critic_forward.1} parent=1 // pred_check
      _
    $region63: #{critic_forward.1} parent=1 // pred_check_branch
      %128 = sbr.rel (0) target = $region65
    $region64: #{critic_forward.1} parent=1 // pred_region
      _
    $region65: #{critic_forward.1} parent=1 // pred_fallthru
      _
    // Predicated region
    $region66: #{critic_forward.1} parent=1 // pred_check
      _
    $region67: #{critic_forward.1} parent=1 // pred_check_branch
      %130 = sbr.rel (0) target = $region69
    $region68: #{critic_forward.1} parent=1 // pred_region
      %s132 = ssub.s32 2048, 2048
      %133 = vsyncadd [#allocation16], %s132
      %s134 = sshll.u32 [#allocation15], 4
      %s135 = int_to_ptr.vmem [resolvable:$true] %s134
      %140 = dma.hbm_to_vmem [thread:$0]  %s16, 2048, %s135, [#allocation16], 64, 64, 4
    $region69: #{critic_forward.1} parent=1 // pred_fallthru
      _
    // Predicated region
    $region70: #{critic_forward.1} parent=1 // pred_check
      _
    $region71: #{critic_forward.1} parent=1 // pred_check_branch
      %142 = sbr.rel (0) target = $region73
    $region72: #{critic_forward.1} parent=1 // pred_region
      _
    $region73: #{critic_forward.1} parent=1 // pred_fallthru
      _
    // Predicated region
    $region74: #{critic_forward.1} parent=1 // pred_check
      _
    $region75: #{critic_forward.1} parent=1 // pred_check_branch
      %144 = sbr.rel (0) target = $region77
    $region76: #{critic_forward.1} parent=1 // pred_region
      %145 = dma.done [#allocation4], 16
    $region77: #{critic_forward.1} parent=1 // pred_fallthru
      _
    // Predicated region
    $region78: #{critic_forward.1} parent=1 // pred_check
      _
    $region79: #{critic_forward.1} parent=1 // pred_check_branch
      %147 = sbr.rel (0) target = $region81
    $region80: #{critic_forward.1} parent=1 // pred_region
      %148 = dma.done [#allocation7], 4096
    $region81: #{critic_forward.1} parent=1 // pred_fallthru
      _
    // Predicated region
    $region82: #{critic_forward.1} parent=1 // pred_check
      _
    $region83: #{critic_forward.1} parent=1 // pred_check_branch
      %150 = sbr.rel (0) target = $region85
    $region84: #{critic_forward.1} parent=1 // pred_region
      %151 = dma.done [#allocation7], 4096
    $region85: #{critic_forward.1} parent=1 // pred_fallthru
      _
    // Predicated region
    $region86: #{critic_forward.1} parent=1 // pred_check
      _
    $region87: #{critic_forward.1} parent=1 // pred_check_branch
      %153 = sbr.rel (0) target = $region89
    $region88: #{critic_forward.1} parent=1 // pred_region
      %154 = dma.done [#allocation10], 8192
    $region89: #{critic_forward.1} parent=1 // pred_fallthru
      _
    // Predicated region
    $region90: #{critic_forward.1} parent=1 // pred_check
      _
    $region91: #{critic_forward.1} parent=1 // pred_check_branch
      %156 = sbr.rel (0) target = $region93
    $region92: #{critic_forward.1} parent=1 // pred_region
      %157 = dma.done [#allocation10], 32
    $region93: #{critic_forward.1} parent=1 // pred_fallthru
      _
    // Predicated region
    $region94: #{critic_forward.1} parent=1 // pred_check
      _
    $region95: #{critic_forward.1} parent=1 // pred_check_branch
      %159 = sbr.rel (0) target = $region97
    $region96: #{critic_forward.1} parent=1 // pred_region
      %160 = dma.done [#allocation13], 16
    $region97: #{critic_forward.1} parent=1 // pred_fallthru
      _
    // Predicated region
    $region98: #{critic_forward.1} parent=1 // pred_check
      _
    $region99: #{critic_forward.1} parent=1 // pred_check_branch
      %162 = sbr.rel (0) target = $region101
    $region100: #{critic_forward.1} parent=1 // pred_region
      %163 = dma.done [#allocation13], 2048
    $region101: #{critic_forward.1} parent=1 // pred_fallthru
      _
    // Predicated region
    $region102: #{critic_forward.1} parent=1 // pred_check
      _
    $region103: #{critic_forward.1} parent=1 // pred_check_branch
      %165 = sbr.rel (0) target = $region105
    $region104: #{critic_forward.1} parent=1 // pred_region
      %166 = dma.done [#allocation16], 2048
    $region105: #{critic_forward.1} parent=1 // pred_fallthru
      _
    %v168 = vld [vmem:[%s1] sm:$0xff]
    %v169 = vpack.c.bf16 %v168, %v168
    %v170 = vld [vmem:[#allocation11] sm:$0x3]
    %v171 = vld [vmem:[#allocation12] sm:$0x1]
    %v173 = vlaneseq
    %v174 = vshrl.u32 %v173, 7
    %v175 = vsub.s32 0, %v174
    %v176 = vrot.slane %v171, %v175
    %vm178 = vcmask 31744
    %v180 = vsel %vm178, %v169, 0
    %vm182 = vcmask 1041408
    %v184 = vsel %vm182, %v170, 0
    %186 = vmatprep.subr.bf16.mxu0 0
    %187 = vmatpush1.bf16.msra.mxu0 %v184
    %188 = vmatprep.subr.bf16.mxu0 0
    %189 = vmatpush1.bf16.msra.mxu0 0
    %190 = vmatprep.subr.bf16.mxu0 0
    %191 = vmatpush1.bf16.msra.mxu0 0
    %192 = vmatprep.subr.bf16.mxu0 0
    %193 = vmatpush1.bf16.msra.mxu0 0
    %194 = vmatprep.subr.bf16.mxu0 0
    %195 = vmatpush1.bf16.msra.mxu0 0
    %196 = vmatprep.subr.bf16.mxu0 0
    %197 = vmatpush1.bf16.msra.mxu0 0
    %198 = vmatprep.subr.bf16.mxu0 0
    %199 = vmatpush1.bf16.msra.mxu0 0
    %200 = vmatprep.subr.bf16.mxu0 0
    %201 = vmatpush1.bf16.msra.mxu0 0
    %202 = vmatprep.subr.bf16.mxu0 0
    %203 = vmatpush1.bf16.msra.mxu0 0
    %204 = vmatprep.subr.bf16.mxu0 0
    %205 = vmatpush1.bf16.msra.mxu0 0
    %206 = vmatprep.subr.bf16.mxu0 0
    %207 = vmatpush1.bf16.msra.mxu0 0
    %208 = vmatprep.subr.bf16.mxu0 0
    %209 = vmatpush1.bf16.msra.mxu0 0
    %210 = vmatprep.subr.bf16.mxu0 0
    %211 = vmatpush1.bf16.msra.mxu0 0
    %212 = vmatprep.subr.bf16.mxu0 0
    %213 = vmatpush1.bf16.msra.mxu0 0
    %214 = vmatprep.subr.bf16.mxu0 0
    %215 = vmatpush1.bf16.msra.mxu0 0
    %216 = vmatprep.subr.bf16.mxu0 0
    %217 = vmatpush1.bf16.msra.mxu0 0
    %218 = vmatprep.mubr.bf16.mxu0 0
    %219 = vmatmul.mubr.bf16.gmra.mrb[0].mxu0 %v180
    %v220 = vpop.f32.mrb[0].mxu0
    %v221 = vadd.f32 %v176, %v220
    %v222 = vpop.f32.mrb[0].mxu0
    %v223 = vpop.f32.mrb[0].mxu0
    %v224 = vpop.f32.mrb[0].mxu0
    %225 = vdwg.mxu0
    %v226 = vmax.f32 %v221, 0.0
    %v227 = vpack.c.bf16 %v226, %v226
    %v228 = vld [vmem:[#allocation14] sm:$0xff]
    %v229 = vld [vmem:[#allocation14 + $0x8] sm:$0xff]
    %v230 = vld [vmem:[#allocation14 + $0x10] sm:$0xff]
    %v231 = vld [vmem:[#allocation14 + $0x18] sm:$0xff]
    %v232 = vld [vmem:[#allocation14 + $0x20] sm:$0xff]
    %v233 = vld [vmem:[#allocation14 + $0x28] sm:$0xff]
    %v234 = vld [vmem:[#allocation14 + $0x30] sm:$0xff]
    %v235 = vld [vmem:[#allocation14 + $0x38] sm:$0xff]
    %v236 = vld [vmem:[#allocation14 + $0x40] sm:$0xff]
    %v237 = vld [vmem:[#allocation14 + $0x48] sm:$0xff]
    %v238 = vld [vmem:[#allocation14 + $0x50] sm:$0xff]
    %v239 = vld [vmem:[#allocation14 + $0x58] sm:$0xff]
    %v240 = vld [vmem:[#allocation14 + $0x60] sm:$0xff]
    %v241 = vld [vmem:[#allocation14 + $0x68] sm:$0xff]
    %v242 = vld [vmem:[#allocation14 + $0x70] sm:$0xff]
    %v243 = vld [vmem:[#allocation14 + $0x78] sm:$0xff]
    %v244 = vld [vmem:[%s15] sm:$0x3]
    %v246 = vlaneseq
    %v247 = vshrl.u32 %v246, 7
    %v248 = vsub.s32 0, %v247
    %v249 = vrot.slane %v244, %v248
    %v250 = vlaneseq
    %v251 = vshrl.u32 %v250, 7
    %v252 = vsub.s32 1, %v251
    %v253 = vrot.slane %v244, %v252
    %v272 = vunpack.c.l.b16 %v228
    %v273 = vunpack.c.h.b16 %v228
    %v274 = vunpack.c.l.b16 %v229
    %v275 = vunpack.c.h.b16 %v229
    %v276 = vunpack.c.l.b16 %v230
    %v277 = vunpack.c.h.b16 %v230
    %v278 = vunpack.c.l.b16 %v231
    %v279 = vunpack.c.h.b16 %v231
    %v280 = vunpack.c.l.b16 %v232
    %v281 = vunpack.c.h.b16 %v232
    %v282 = vunpack.c.l.b16 %v233
    %v283 = vunpack.c.h.b16 %v233
    %v284 = vunpack.c.l.b16 %v234
    %v285 = vunpack.c.h.b16 %v234
    %v286 = vunpack.c.l.b16 %v235
    %v287 = vunpack.c.h.b16 %v235
    %v288 = vunpack.c.l.b16 %v236
    %v289 = vunpack.c.h.b16 %v236
    %v290 = vunpack.c.l.b16 %v237
    %v291 = vunpack.c.h.b16 %v237
    %v292 = vunpack.c.l.b16 %v238
    %v293 = vunpack.c.h.b16 %v238
    %v294 = vunpack.c.l.b16 %v239
    %v295 = vunpack.c.h.b16 %v239
    %v296 = vunpack.c.l.b16 %v240
    %v297 = vunpack.c.h.b16 %v240
    %v298 = vunpack.c.l.b16 %v241
    %v299 = vunpack.c.h.b16 %v241
    %v300 = vunpack.c.l.b16 %v242
    %v301 = vunpack.c.h.b16 %v242
    %v302 = vunpack.c.l.b16 %v243
    %v303 = vunpack.c.h.b16 %v243
    %v304 = vpack.c.b16 %v274, %v272
    %v305 = vpack.c.b16 %v275, %v273
    %v306 = vpack.c.b16 %v278, %v276
    %v307 = vpack.c.b16 %v279, %v277
    %v308 = vpack.c.b16 %v282, %v280
    %v309 = vpack.c.b16 %v283, %v281
    %v310 = vpack.c.b16 %v286, %v284
    %v311 = vpack.c.b16 %v287, %v285
    %v312 = vpack.c.b16 %v290, %v288
    %v313 = vpack.c.b16 %v291, %v289
    %v314 = vpack.c.b16 %v294, %v292
    %v315 = vpack.c.b16 %v295, %v293
    %v316 = vpack.c.b16 %v298, %v296
    %v317 = vpack.c.b16 %v299, %v297
    %v318 = vpack.c.b16 %v302, %v300
    %v319 = vpack.c.b16 %v303, %v301
    %336 = vmatprep.subr.bf16.mxu0 %v305
    %337 = vmatpush1.bf16.msra.mxu0 %v304
    %338 = vmatprep.subr.bf16.mxu0 %v307
    %339 = vmatpush1.bf16.msra.mxu0 %v306
    %340 = vmatprep.subr.bf16.mxu0 %v309
    %341 = vmatpush1.bf16.msra.mxu0 %v308
    %342 = vmatprep.subr.bf16.mxu0 %v311
    %343 = vmatpush1.bf16.msra.mxu0 %v310
    %344 = vmatprep.subr.bf16.mxu0 %v313
    %345 = vmatpush1.bf16.msra.mxu0 %v312
    %346 = vmatprep.subr.bf16.mxu0 %v315
    %347 = vmatpush1.bf16.msra.mxu0 %v314
    %348 = vmatprep.subr.bf16.mxu0 %v317
    %349 = vmatpush1.bf16.msra.mxu0 %v316
    %350 = vmatprep.subr.bf16.mxu0 %v319
    %351 = vmatpush1.bf16.msra.mxu0 %v318
    %352 = vmatprep.subr.bf16.mxu0 0
    %353 = vmatpush1.bf16.msra.mxu0 0
    %354 = vmatprep.subr.bf16.mxu0 0
    %355 = vmatpush1.bf16.msra.mxu0 0
    %356 = vmatprep.subr.bf16.mxu0 0
    %357 = vmatpush1.bf16.msra.mxu0 0
    %358 = vmatprep.subr.bf16.mxu0 0
    %359 = vmatpush1.bf16.msra.mxu0 0
    %360 = vmatprep.subr.bf16.mxu0 0
    %361 = vmatpush1.bf16.msra.mxu0 0
    %362 = vmatprep.subr.bf16.mxu0 0
    %363 = vmatpush1.bf16.msra.mxu0 0
    %364 = vmatprep.subr.bf16.mxu0 0
    %365 = vmatpush1.bf16.msra.mxu0 0
    %366 = vmatprep.subr.bf16.mxu0 0
    %367 = vmatpush1.bf16.msra.mxu0 0
    %368 = vmatprep.mubr.bf16.mxu0 0
    %369 = vmatmul.mubr.bf16.gmra.mrb[0].mxu0 %v227
    %v370 = vpop.f32.mrb[0].mxu0
    %v371 = vadd.f32 %v249, %v370
    %v372 = vpop.f32.mrb[0].mxu0
    %v373 = vadd.f32 %v253, %v372
    %v374 = vpop.f32.mrb[0].mxu0
    %v375 = vpop.f32.mrb[0].mxu0
    %376 = vdwg.mxu0
    %v377 = vld [vmem:[%s0] sm:$0xff]
    %v378 = vld [vmem:[%s0 + $0x8] sm:$0xff]
    %v379 = vld [vmem:[%s0 + $0x10] sm:$0xff]
    %v380 = vld [vmem:[%s0 + $0x18] sm:$0xff]
    %v381 = vld [vmem:[%s0 + $0x20] sm:$0xff]
    %v382 = vld [vmem:[%s0 + $0x28] sm:$0xff]
    %v383 = vld [vmem:[%s0 + $0x30] sm:$0xff]
    %v384 = vld [vmem:[%s0 + $0x38] sm:$0xff]
    %v385 = vpack.c.bf16 %v378, %v377
    %v386 = vpack.c.bf16 %v380, %v379
    %v387 = vpack.c.bf16 %v382, %v381
    %v388 = vpack.c.bf16 %v384, %v383
    %v389 = vld [vmem:[%s4] sm:$0xf]
    %v390 = vld [vmem:[%s4 + $0x4] sm:$0xf]
    %v391 = vld [vmem:[#allocation3] sm:$0x1]
    %v393 = vlaneseq
    %v394 = vshrl.u32 %v393, 7
    %v395 = vsub.s32 0, %v394
    %v396 = vrot.slane %v391, %v395
    %v400 = vunpack.c.l.b16 %v389
    %v401 = vunpack.c.l.b16 %v390
    %v402 = vpack.c.b16 %v401, %v400
    %vm404 = vcmask 130048
    %v406 = vsel %vm404, %v385, 0
    %v409 = vsel %vm404, %v386, 0
    %v412 = vsel %vm404, %v387, 0
    %v415 = vsel %vm404, %v388, 0
    %417 = vmatprep.subr.bf16.mxu0 0
    %418 = vmatpush1.bf16.msra.mxu0 %v402
    %419 = vmatprep.subr.bf16.mxu0 0
    %420 = vmatpush1.bf16.msra.mxu0 0
    %421 = vmatprep.subr.bf16.mxu0 0
    %422 = vmatpush1.bf16.msra.mxu0 0
    %423 = vmatprep.subr.bf16.mxu0 0
    %424 = vmatpush1.bf16.msra.mxu0 0
    %425 = vmatprep.subr.bf16.mxu0 0
    %426 = vmatpush1.bf16.msra.mxu0 0
    %427 = vmatprep.subr.bf16.mxu0 0
    %428 = vmatpush1.bf16.msra.mxu0 0
    %429 = vmatprep.subr.bf16.mxu0 0
    %430 = vmatpush1.bf16.msra.mxu0 0
    %431 = vmatprep.subr.bf16.mxu0 0
    %432 = vmatpush1.bf16.msra.mxu0 0
    %433 = vmatprep.subr.bf16.mxu0 0
    %434 = vmatpush1.bf16.msra.mxu0 0
    %435 = vmatprep.subr.bf16.mxu0 0
    %436 = vmatpush1.bf16.msra.mxu0 0
    %437 = vmatprep.subr.bf16.mxu0 0
    %438 = vmatpush1.bf16.msra.mxu0 0
    %439 = vmatprep.subr.bf16.mxu0 0
    %440 = vmatpush1.bf16.msra.mxu0 0
    %441 = vmatprep.subr.bf16.mxu0 0
    %442 = vmatpush1.bf16.msra.mxu0 0
    %443 = vmatprep.subr.bf16.mxu0 0
    %444 = vmatpush1.bf16.msra.mxu0 0
    %445 = vmatprep.subr.bf16.mxu0 0
    %446 = vmatpush1.bf16.msra.mxu0 0
    %447 = vmatprep.subr.bf16.mxu0 0
    %448 = vmatpush1.bf16.msra.mxu0 0
    %449 = vmatprep.mubr.bf16.mxu0 0
    %450 = vmatmul.mubr.bf16.gmra.mrb[0].mxu0 %v406
    %v451 = vpop.f32.mrb[0].mxu0
    %v452 = vadd.f32 %v396, %v451
    %v453 = vpop.f32.mrb[0].mxu0
    %v454 = vpop.f32.mrb[0].mxu0
    %v455 = vadd.f32 %v396, %v454
    %v456 = vpop.f32.mrb[0].mxu0
    %457 = vmatprep.mubr.bf16.mxu0 0
    %458 = vmatmul.mubr.bf16.gmra.mrb[0].mxu0 %v409
    %v459 = vpop.f32.mrb[0].mxu0
    %v460 = vadd.f32 %v396, %v459
    %v461 = vpop.f32.mrb[0].mxu0
    %v462 = vpop.f32.mrb[0].mxu0
    %v463 = vadd.f32 %v396, %v462
    %v464 = vpop.f32.mrb[0].mxu0
    %465 = vmatprep.mubr.bf16.mxu0 0
    %466 = vmatmul.mubr.bf16.gmra.mrb[0].mxu0 %v412
    %v467 = vpop.f32.mrb[0].mxu0
    %v468 = vadd.f32 %v396, %v467
    %v469 = vpop.f32.mrb[0].mxu0
    %v470 = vpop.f32.mrb[0].mxu0
    %v471 = vadd.f32 %v396, %v470
    %v472 = vpop.f32.mrb[0].mxu0
    %473 = vmatprep.mubr.bf16.mxu0 0
    %474 = vmatmul.mubr.bf16.gmra.mrb[0].mxu0 %v415
    %v475 = vpop.f32.mrb[0].mxu0
    %v476 = vadd.f32 %v396, %v475
    %v477 = vpop.f32.mrb[0].mxu0
    %v478 = vpop.f32.mrb[0].mxu0
    %v479 = vadd.f32 %v396, %v478
    %v480 = vpop.f32.mrb[0].mxu0
    %481 = vdwg.mxu0
    %v482 = vmax.f32 %v452, 0.0
    %v483 = vmax.f32 %v455, 0.0
    %v484 = vmax.f32 %v460, 0.0
    %v485 = vmax.f32 %v463, 0.0
    %v486 = vmax.f32 %v468, 0.0
    %v487 = vmax.f32 %v471, 0.0
    %v488 = vmax.f32 %v476, 0.0
    %v489 = vmax.f32 %v479, 0.0
    %v490 = vpack.c.bf16 %v483, %v482
    %v491 = vpack.c.bf16 %v485, %v484
    %v492 = vpack.c.bf16 %v487, %v486
    %v493 = vpack.c.bf16 %v489, %v488
    %v494 = vld [vmem:[#allocation6] sm:$0xff]
    %v495 = vld [vmem:[#allocation6 + $0x8] sm:$0xff]
    %v496 = vld [vmem:[#allocation6 + $0x10] sm:$0xff]
    %v497 = vld [vmem:[#allocation6 + $0x18] sm:$0xff]
    %v498 = vld [vmem:[#allocation6 + $0x20] sm:$0xff]
    %v499 = vld [vmem:[#allocation6 + $0x28] sm:$0xff]
    %v500 = vld [vmem:[#allocation6 + $0x30] sm:$0xff]
    %v501 = vld [vmem:[#allocation6 + $0x38] sm:$0xff]
    %v502 = vld [vmem:[#allocation6 + $0x40] sm:$0xff]
    %v503 = vld [vmem:[#allocation6 + $0x48] sm:$0xff]
    %v504 = vld [vmem:[#allocation6 + $0x50] sm:$0xff]
    %v505 = vld [vmem:[#allocation6 + $0x58] sm:$0xff]
    %v506 = vld [vmem:[#allocation6 + $0x60] sm:$0xff]
    %v507 = vld [vmem:[#allocation6 + $0x68] sm:$0xff]
    %v508 = vld [vmem:[#allocation6 + $0x70] sm:$0xff]
    %v509 = vld [vmem:[#allocation6 + $0x78] sm:$0xff]
    %v510 = vld [vmem:[#allocation6 + $0x80] sm:$0xff]
    %v511 = vld [vmem:[#allocation6 + $0x88] sm:$0xff]
    %v512 = vld [vmem:[#allocation6 + $0x90] sm:$0xff]
    %v513 = vld [vmem:[#allocation6 + $0x98] sm:$0xff]
    %v514 = vld [vmem:[#allocation6 + $0xa0] sm:$0xff]
    %v515 = vld [vmem:[#allocation6 + $0xa8] sm:$0xff]
    %v516 = vld [vmem:[#allocation6 + $0xb0] sm:$0xff]
    %v517 = vld [vmem:[#allocation6 + $0xb8] sm:$0xff]
    %v518 = vld [vmem:[#allocation6 + $0xc0] sm:$0xff]
    %v519 = vld [vmem:[#allocation6 + $0xc8] sm:$0xff]
    %v520 = vld [vmem:[#allocation6 + $0xd0] sm:$0xff]
    %v521 = vld [vmem:[#allocation6 + $0xd8] sm:$0xff]
    %v522 = vld [vmem:[#allocation6 + $0xe0] sm:$0xff]
    %v523 = vld [vmem:[#allocation6 + $0xe8] sm:$0xff]
    %v524 = vld [vmem:[#allocation6 + $0xf0] sm:$0xff]
    %v525 = vld [vmem:[#allocation6 + $0xf8] sm:$0xff]
    %v558 = vunpack.c.l.b16 %v494
    %v559 = vunpack.c.h.b16 %v494
    %v560 = vunpack.c.l.b16 %v495
    %v561 = vunpack.c.h.b16 %v495
    %v562 = vunpack.c.l.b16 %v496
    %v563 = vunpack.c.h.b16 %v496
    %v564 = vunpack.c.l.b16 %v497
    %v565 = vunpack.c.h.b16 %v497
    %v566 = vunpack.c.l.b16 %v498
    %v567 = vunpack.c.h.b16 %v498
    %v568 = vunpack.c.l.b16 %v499
    %v569 = vunpack.c.h.b16 %v499
    %v570 = vunpack.c.l.b16 %v500
    %v571 = vunpack.c.h.b16 %v500
    %v572 = vunpack.c.l.b16 %v501
    %v573 = vunpack.c.h.b16 %v501
    %v574 = vunpack.c.l.b16 %v502
    %v575 = vunpack.c.h.b16 %v502
    %v576 = vunpack.c.l.b16 %v503
    %v577 = vunpack.c.h.b16 %v503
    %v578 = vunpack.c.l.b16 %v504
    %v579 = vunpack.c.h.b16 %v504
    %v580 = vunpack.c.l.b16 %v505
    %v581 = vunpack.c.h.b16 %v505
    %v582 = vunpack.c.l.b16 %v506
    %v583 = vunpack.c.h.b16 %v506
    %v584 = vunpack.c.l.b16 %v507
    %v585 = vunpack.c.h.b16 %v507
    %v586 = vunpack.c.l.b16 %v508
    %v587 = vunpack.c.h.b16 %v508
    %v588 = vunpack.c.l.b16 %v509
    %v589 = vunpack.c.h.b16 %v509
    %v590 = vunpack.c.l.b16 %v510
    %v591 = vunpack.c.h.b16 %v510
    %v592 = vunpack.c.l.b16 %v511
    %v593 = vunpack.c.h.b16 %v511
    %v594 = vunpack.c.l.b16 %v512
    %v595 = vunpack.c.h.b16 %v512
    %v596 = vunpack.c.l.b16 %v513
    %v597 = vunpack.c.h.b16 %v513
    %v598 = vunpack.c.l.b16 %v514
    %v599 = vunpack.c.h.b16 %v514
    %v600 = vunpack.c.l.b16 %v515
    %v601 = vunpack.c.h.b16 %v515
    %v602 = vunpack.c.l.b16 %v516
    %v603 = vunpack.c.h.b16 %v516
    %v604 = vunpack.c.l.b16 %v517
    %v605 = vunpack.c.h.b16 %v517
    %v606 = vunpack.c.l.b16 %v518
    %v607 = vunpack.c.h.b16 %v518
    %v608 = vunpack.c.l.b16 %v519
    %v609 = vunpack.c.h.b16 %v519
    %v610 = vunpack.c.l.b16 %v520
    %v611 = vunpack.c.h.b16 %v520
    %v612 = vunpack.c.l.b16 %v521
    %v613 = vunpack.c.h.b16 %v521
    %v614 = vunpack.c.l.b16 %v522
    %v615 = vunpack.c.h.b16 %v522
    %v616 = vunpack.c.l.b16 %v523
    %v617 = vunpack.c.h.b16 %v523
    %v618 = vunpack.c.l.b16 %v524
    %v619 = vunpack.c.h.b16 %v524
    %v620 = vunpack.c.l.b16 %v525
    %v621 = vunpack.c.h.b16 %v525
    %v622 = vpack.c.b16 %v562, %v558
    %v623 = vpack.c.b16 %v563, %v559
    %v624 = vpack.c.b16 %v564, %v560
    %v625 = vpack.c.b16 %v565, %v561
    %v626 = vpack.c.b16 %v570, %v566
    %v627 = vpack.c.b16 %v571, %v567
    %v628 = vpack.c.b16 %v572, %v568
    %v629 = vpack.c.b16 %v573, %v569
    %v630 = vpack.c.b16 %v578, %v574
    %v631 = vpack.c.b16 %v579, %v575
    %v632 = vpack.c.b16 %v580, %v576
    %v633 = vpack.c.b16 %v581, %v577
    %v634 = vpack.c.b16 %v586, %v582
    %v635 = vpack.c.b16 %v587, %v583
    %v636 = vpack.c.b16 %v588, %v584
    %v637 = vpack.c.b16 %v589, %v585
    %v638 = vpack.c.b16 %v594, %v590
    %v639 = vpack.c.b16 %v595, %v591
    %v640 = vpack.c.b16 %v596, %v592
    %v641 = vpack.c.b16 %v597, %v593
    %v642 = vpack.c.b16 %v602, %v598
    %v643 = vpack.c.b16 %v603, %v599
    %v644 = vpack.c.b16 %v604, %v600
    %v645 = vpack.c.b16 %v605, %v601
    %v646 = vpack.c.b16 %v610, %v606
    %v647 = vpack.c.b16 %v611, %v607
    %v648 = vpack.c.b16 %v612, %v608
    %v649 = vpack.c.b16 %v613, %v609
    %v650 = vpack.c.b16 %v618, %v614
    %v651 = vpack.c.b16 %v619, %v615
    %v652 = vpack.c.b16 %v620, %v616
    %v653 = vpack.c.b16 %v621, %v617
    %686 = vmatprep.subr.bf16.mxu0 %v623
    %687 = vmatpush1.bf16.msra.mxu0 %v622
    %688 = vmatprep.subr.bf16.mxu0 %v627
    %689 = vmatpush1.bf16.msra.mxu0 %v626
    %690 = vmatprep.subr.bf16.mxu0 %v631
    %691 = vmatpush1.bf16.msra.mxu0 %v630
    %692 = vmatprep.subr.bf16.mxu0 %v635
    %693 = vmatpush1.bf16.msra.mxu0 %v634
    %694 = vmatprep.subr.bf16.mxu0 %v639
    %695 = vmatpush1.bf16.msra.mxu0 %v638
    %696 = vmatprep.subr.bf16.mxu0 %v643
    %697 = vmatpush1.bf16.msra.mxu0 %v642
    %698 = vmatprep.subr.bf16.mxu0 %v647
    %699 = vmatpush1.bf16.msra.mxu0 %v646
    %700 = vmatprep.subr.bf16.mxu0 %v651
    %701 = vmatpush1.bf16.msra.mxu0 %v650
    %702 = vmatprep.subr.bf16.mxu0 0
    %703 = vmatpush1.bf16.msra.mxu0 0
    %704 = vmatprep.subr.bf16.mxu0 0
    %705 = vmatpush1.bf16.msra.mxu0 0
    %706 = vmatprep.subr.bf16.mxu0 0
    %707 = vmatpush1.bf16.msra.mxu0 0
    %708 = vmatprep.subr.bf16.mxu0 0
    %709 = vmatpush1.bf16.msra.mxu0 0
    %710 = vmatprep.subr.bf16.mxu0 0
    %711 = vmatpush1.bf16.msra.mxu0 0
    %712 = vmatprep.subr.bf16.mxu0 0
    %713 = vmatpush1.bf16.msra.mxu0 0
    %714 = vmatprep.subr.bf16.mxu0 0
    %715 = vmatpush1.bf16.msra.mxu0 0
    %716 = vmatprep.subr.bf16.mxu0 0
    %717 = vmatpush1.bf16.msra.mxu0 0
    %718 = vmatprep.mubr.bf16.mxu0 0
    %719 = vmatmul.mubr.bf16.gmra.mrb[0].mxu0 %v490
    %v720 = vpop.f32.mrb[0].mxu0
    %v721 = vadd.f32 0.0, %v720
    %v722 = vpop.f32.mrb[0].mxu0
    %v723 = vadd.f32 0.0, %v722
    %v724 = vpop.f32.mrb[0].mxu0
    %v725 = vadd.f32 0.0, %v724
    %v726 = vpop.f32.mrb[0].mxu0
    %v727 = vadd.f32 0.0, %v726
    %728 = vmatprep.mubr.bf16.mxu0 0
    %729 = vmatmul.mubr.bf16.gmra.mrb[0].mxu0 %v491
    %v730 = vpop.f32.mrb[0].mxu0
    %v731 = vadd.f32 0.0, %v730
    %v732 = vpop.f32.mrb[0].mxu0
    %v733 = vadd.f32 0.0, %v732
    %v734 = vpop.f32.mrb[0].mxu0
    %v735 = vadd.f32 0.0, %v734
    %v736 = vpop.f32.mrb[0].mxu0
    %v737 = vadd.f32 0.0, %v736
    %738 = vmatprep.mubr.bf16.mxu0 0
    %739 = vmatmul.mubr.bf16.gmra.mrb[0].mxu0 %v492
    %v740 = vpop.f32.mrb[0].mxu0
    %v741 = vadd.f32 0.0, %v740
    %v742 = vpop.f32.mrb[0].mxu0
    %v743 = vadd.f32 0.0, %v742
    %v744 = vpop.f32.mrb[0].mxu0
    %v745 = vadd.f32 0.0, %v744
    %v746 = vpop.f32.mrb[0].mxu0
    %v747 = vadd.f32 0.0, %v746
    %748 = vmatprep.mubr.bf16.mxu0 0
    %749 = vmatmul.mubr.bf16.gmra.mrb[0].mxu0 %v493
    %v750 = vpop.f32.mrb[0].mxu0
    %v751 = vadd.f32 0.0, %v750
    %v752 = vpop.f32.mrb[0].mxu0
    %v753 = vadd.f32 0.0, %v752
    %v754 = vpop.f32.mrb[0].mxu0
    %v755 = vadd.f32 0.0, %v754
    %v756 = vpop.f32.mrb[0].mxu0
    %v757 = vadd.f32 0.0, %v756
    %758 = vdwg.mxu0
    %759 = vmatprep.subr.bf16.mxu0 %v625
    %760 = vmatpush1.bf16.msra.mxu0 %v624
    %761 = vmatprep.subr.bf16.mxu0 %v629
    %762 = vmatpush1.bf16.msra.mxu0 %v628
    %763 = vmatprep.subr.bf16.mxu0 %v633
    %764 = vmatpush1.bf16.msra.mxu0 %v632
    %765 = vmatprep.subr.bf16.mxu0 %v637
    %766 = vmatpush1.bf16.msra.mxu0 %v636
    %767 = vmatprep.subr.bf16.mxu0 %v641
    %768 = vmatpush1.bf16.msra.mxu0 %v640
    %769 = vmatprep.subr.bf16.mxu0 %v645
    %770 = vmatpush1.bf16.msra.mxu0 %v644
    %771 = vmatprep.subr.bf16.mxu0 %v649
    %772 = vmatpush1.bf16.msra.mxu0 %v648
    %773 = vmatprep.subr.bf16.mxu0 %v653
    %774 = vmatpush1.bf16.msra.mxu0 %v652
    %775 = vmatprep.subr.bf16.mxu0 0
    %776 = vmatpush1.bf16.msra.mxu0 0
    %777 = vmatprep.subr.bf16.mxu0 0
    %778 = vmatpush1.bf16.msra.mxu0 0
    %779 = vmatprep.subr.bf16.mxu0 0
    %780 = vmatpush1.bf16.msra.mxu0 0
    %781 = vmatprep.subr.bf16.mxu0 0
    %782 = vmatpush1.bf16.msra.mxu0 0
    %783 = vmatprep.subr.bf16.mxu0 0
    %784 = vmatpush1.bf16.msra.mxu0 0
    %785 = vmatprep.subr.bf16.mxu0 0
    %786 = vmatpush1.bf16.msra.mxu0 0
    %787 = vmatprep.subr.bf16.mxu0 0
    %788 = vmatpush1.bf16.msra.mxu0 0
    %789 = vmatprep.subr.bf16.mxu0 0
    %790 = vmatpush1.bf16.msra.mxu0 0
    %791 = vmatprep.mubr.bf16.mxu0 0
    %792 = vmatmul.mubr.bf16.gmra.mrb[0].mxu0 %v490
    %v793 = vpop.f32.mrb[0].mxu0
    %v794 = vadd.f32 0.0, %v793
    %v795 = vpop.f32.mrb[0].mxu0
    %v796 = vadd.f32 0.0, %v795
    %v797 = vpop.f32.mrb[0].mxu0
    %v798 = vadd.f32 0.0, %v797
    %v799 = vpop.f32.mrb[0].mxu0
    %v800 = vadd.f32 0.0, %v799
    %801 = vmatprep.mubr.bf16.mxu0 0
    %802 = vmatmul.mubr.bf16.gmra.mrb[0].mxu0 %v491
    %v803 = vpop.f32.mrb[0].mxu0
    %v804 = vadd.f32 0.0, %v803
    %v805 = vpop.f32.mrb[0].mxu0
    %v806 = vadd.f32 0.0, %v805
    %v807 = vpop.f32.mrb[0].mxu0
    %v808 = vadd.f32 0.0, %v807
    %v809 = vpop.f32.mrb[0].mxu0
    %v810 = vadd.f32 0.0, %v809
    %811 = vmatprep.mubr.bf16.mxu0 0
    %812 = vmatmul.mubr.bf16.gmra.mrb[0].mxu0 %v492
    %v813 = vpop.f32.mrb[0].mxu0
    %v814 = vadd.f32 0.0, %v813
    %v815 = vpop.f32.mrb[0].mxu0
    %v816 = vadd.f32 0.0, %v815
    %v817 = vpop.f32.mrb[0].mxu0
    %v818 = vadd.f32 0.0, %v817
    %v819 = vpop.f32.mrb[0].mxu0
    %v820 = vadd.f32 0.0, %v819
    %821 = vmatprep.mubr.bf16.mxu0 0
    %822 = vmatmul.mubr.bf16.gmra.mrb[0].mxu0 %v493
    %v823 = vpop.f32.mrb[0].mxu0
    %v824 = vadd.f32 0.0, %v823
    %v825 = vpop.f32.mrb[0].mxu0
    %v826 = vadd.f32 0.0, %v825
    %v827 = vpop.f32.mrb[0].mxu0
    %v828 = vadd.f32 0.0, %v827
    %v829 = vpop.f32.mrb[0].mxu0
    %v830 = vadd.f32 0.0, %v829
    %831 = vdwg.mxu0
    %v832 = vld [vmem:[%s8] sm:$0xf]
    %v834 = vlaneseq
    %v835 = vshrl.u32 %v834, 7
    %v836 = vsub.s32 0, %v835
    %v837 = vrot.slane %v832, %v836
    %v838 = vlaneseq
    %v839 = vshrl.u32 %v838, 7
    %v840 = vsub.s32 1, %v839
    %v841 = vrot.slane %v832, %v840
    %v842 = vlaneseq
    %v843 = vshrl.u32 %v842, 7
    %v844 = vsub.s32 2, %v843
    %v845 = vrot.slane %v832, %v844
    %v846 = vlaneseq
    %v847 = vshrl.u32 %v846, 7
    %v848 = vsub.s32 3, %v847
    %v849 = vrot.slane %v832, %v848
    %v854 = vadd.f32 %v721, %v837
    %v855 = vadd.f32 %v723, %v841
    %v856 = vadd.f32 %v794, %v845
    %v857 = vadd.f32 %v796, %v849
    %v858 = vadd.f32 %v725, %v837
    %v859 = vadd.f32 %v727, %v841
    %v860 = vadd.f32 %v798, %v845
    %v861 = vadd.f32 %v800, %v849
    %v862 = vadd.f32 %v731, %v837
    %v863 = vadd.f32 %v733, %v841
    %v864 = vadd.f32 %v804, %v845
    %v865 = vadd.f32 %v806, %v849
    %v866 = vadd.f32 %v735, %v837
    %v867 = vadd.f32 %v737, %v841
    %v868 = vadd.f32 %v808, %v845
    %v869 = vadd.f32 %v810, %v849
    %v870 = vadd.f32 %v741, %v837
    %v871 = vadd.f32 %v743, %v841
    %v872 = vadd.f32 %v814, %v845
    %v873 = vadd.f32 %v816, %v849
    %v874 = vadd.f32 %v745, %v837
    %v875 = vadd.f32 %v747, %v841
    %v876 = vadd.f32 %v818, %v845
    %v877 = vadd.f32 %v820, %v849
    %v878 = vadd.f32 %v751, %v837
    %v879 = vadd.f32 %v753, %v841
    %v880 = vadd.f32 %v824, %v845
    %v881 = vadd.f32 %v826, %v849
    %v882 = vadd.f32 %v755, %v837
    %v883 = vadd.f32 %v757, %v841
    %v884 = vadd.f32 %v828, %v845
    %v885 = vadd.f32 %v830, %v849
    %886 = vst [vmem:[#allocation2] sm:$0xff] %v854
    %887 = vst [vmem:[#allocation2 + $0x8] sm:$0xff] %v855
    %888 = vst [vmem:[#allocation2 + $0x10] sm:$0xff] %v856
    %889 = vst [vmem:[#allocation2 + $0x18] sm:$0xff] %v857
    %890 = vst [vmem:[#allocation2 + $0x20] sm:$0xff] %v858
    %891 = vst [vmem:[#allocation2 + $0x28] sm:$0xff] %v859
    %892 = vst [vmem:[#allocation2 + $0x30] sm:$0xff] %v860
    %893 = vst [vmem:[#allocation2 + $0x38] sm:$0xff] %v861
    %894 = vst [vmem:[#allocation2 + $0x40] sm:$0xff] %v862
    %895 = vst [vmem:[#allocation2 + $0x48] sm:$0xff] %v863
    %896 = vst [vmem:[#allocation2 + $0x50] sm:$0xff] %v864
    %897 = vst [vmem:[#allocation2 + $0x58] sm:$0xff] %v865
    %898 = vst [vmem:[#allocation2 + $0x60] sm:$0xff] %v866
    %899 = vst [vmem:[#allocation2 + $0x68] sm:$0xff] %v867
    %900 = vst [vmem:[#allocation2 + $0x70] sm:$0xff] %v868
    %901 = vst [vmem:[#allocation2 + $0x78] sm:$0xff] %v869
    %902 = vst [vmem:[#allocation2 + $0x80] sm:$0xff] %v870
    %903 = vst [vmem:[#allocation2 + $0x88] sm:$0xff] %v871
    %904 = vst [vmem:[#allocation2 + $0x90] sm:$0xff] %v872
    %905 = vst [vmem:[#allocation2 + $0x98] sm:$0xff] %v873
    %906 = vst [vmem:[#allocation2 + $0xa0] sm:$0xff] %v874
    %907 = vst [vmem:[#allocation2 + $0xa8] sm:$0xff] %v875
    %908 = vst [vmem:[#allocation2 + $0xb0] sm:$0xff] %v876
    %909 = vst [vmem:[#allocation2 + $0xb8] sm:$0xff] %v877
    %910 = vst [vmem:[#allocation2 + $0xc0] sm:$0xff] %v878
    %911 = vst [vmem:[#allocation2 + $0xc8] sm:$0xff] %v879
    %912 = vst [vmem:[#allocation2 + $0xd0] sm:$0xff] %v880
    %913 = vst [vmem:[#allocation2 + $0xd8] sm:$0xff] %v881
    %914 = vst [vmem:[#allocation2 + $0xe0] sm:$0xff] %v882
    %915 = vst [vmem:[#allocation2 + $0xe8] sm:$0xff] %v883
    %916 = vst [vmem:[#allocation2 + $0xf0] sm:$0xff] %v884
    %917 = vst [vmem:[#allocation2 + $0xf8] sm:$0xff] %v885
    %v918 = vld [vmem:[%s2] sm:$0xff]
    %v919 = vld [vmem:[%s3] sm:$0xff]
    %s920 = scalar_lea.vmem %s2, 8
    %v921 = vld [vmem:[%s920] sm:$0xff]
    %s922 = scalar_lea.vmem %s3, 8
    %v923 = vld [vmem:[%s922] sm:$0xff]
    %v924 = vld [vmem:[#allocation2] sm:$0xff]
    %v925 = vld [vmem:[#allocation2 + $0x8] sm:$0xff]
    %v926 = vld [vmem:[#allocation2 + $0x10] sm:$0xff]
    %v927 = vld [vmem:[#allocation2 + $0x18] sm:$0xff]
    %v928 = vpack.c.bf16 %v918, %v918
    %v929 = vld [vmem:[#allocation8] sm:$0xff]
    %v930 = vld [vmem:[#allocation8 + $0x8] sm:$0xff]
    %v931 = vld [vmem:[#allocation8 + $0x10] sm:$0xff]
    %v932 = vld [vmem:[#allocation8 + $0x18] sm:$0xff]
    %v933 = vld [vmem:[#allocation8 + $0x20] sm:$0xff]
    %v934 = vld [vmem:[#allocation8 + $0x28] sm:$0xff]
    %v935 = vld [vmem:[#allocation8 + $0x30] sm:$0xff]
    %v936 = vld [vmem:[#allocation8 + $0x38] sm:$0xff]
    %v937 = vld [vmem:[#allocation8 + $0x40] sm:$0xff]
    %v938 = vld [vmem:[#allocation8 + $0x48] sm:$0xff]
    %v939 = vld [vmem:[#allocation8 + $0x50] sm:$0xff]
    %v940 = vld [vmem:[#allocation8 + $0x58] sm:$0xff]
    %v941 = vld [vmem:[#allocation8 + $0x60] sm:$0xff]
    %v942 = vld [vmem:[#allocation8 + $0x68] sm:$0xff]
    %v943 = vld [vmem:[#allocation8 + $0x70] sm:$0xff]
    %v944 = vld [vmem:[#allocation8 + $0x78] sm:$0xff]
    %v945 = vld [vmem:[#allocation8 + $0x80] sm:$0xff]
    %v946 = vld [vmem:[#allocation8 + $0x88] sm:$0xff]
    %v947 = vld [vmem:[#allocation8 + $0x90] sm:$0xff]
    %v948 = vld [vmem:[#allocation8 + $0x98] sm:$0xff]
    %v949 = vld [vmem:[#allocation8 + $0xa0] sm:$0xff]
    %v950 = vld [vmem:[#allocation8 + $0xa8] sm:$0xff]
    %v951 = vld [vmem:[#allocation8 + $0xb0] sm:$0xff]
    %v952 = vld [vmem:[#allocation8 + $0xb8] sm:$0xff]
    %v953 = vld [vmem:[#allocation8 + $0xc0] sm:$0xff]
    %v954 = vld [vmem:[#allocation8 + $0xc8] sm:$0xff]
    %v955 = vld [vmem:[#allocation8 + $0xd0] sm:$0xff]
    %v956 = vld [vmem:[#allocation8 + $0xd8] sm:$0xff]
    %v957 = vld [vmem:[#allocation8 + $0xe0] sm:$0xff]
    %v958 = vld [vmem:[#allocation8 + $0xe8] sm:$0xff]
    %v959 = vld [vmem:[#allocation8 + $0xf0] sm:$0xff]
    %v960 = vld [vmem:[#allocation8 + $0xf8] sm:$0xff]
    %v993 = vunpack.c.l.b16 %v929
    %v994 = vunpack.c.h.b16 %v929
    %v995 = vunpack.c.l.b16 %v930
    %v996 = vunpack.c.h.b16 %v930
    %v997 = vunpack.c.l.b16 %v931
    %v998 = vunpack.c.h.b16 %v931
    %v999 = vunpack.c.l.b16 %v932
    %v1000 = vunpack.c.h.b16 %v932
    %v1001 = vunpack.c.l.b16 %v933
    %v1002 = vunpack.c.h.b16 %v933
    %v1003 = vunpack.c.l.b16 %v934
    %v1004 = vunpack.c.h.b16 %v934
    %v1005 = vunpack.c.l.b16 %v935
    %v1006 = vunpack.c.h.b16 %v935
    %v1007 = vunpack.c.l.b16 %v936
    %v1008 = vunpack.c.h.b16 %v936
    %v1009 = vunpack.c.l.b16 %v937
    %v1010 = vunpack.c.h.b16 %v937
    %v1011 = vunpack.c.l.b16 %v938
    %v1012 = vunpack.c.h.b16 %v938
    %v1013 = vunpack.c.l.b16 %v939
    %v1014 = vunpack.c.h.b16 %v939
    %v1015 = vunpack.c.l.b16 %v940
    %v1016 = vunpack.c.h.b16 %v940
    %v1017 = vunpack.c.l.b16 %v941
    %v1018 = vunpack.c.h.b16 %v941
    %v1019 = vunpack.c.l.b16 %v942
    %v1020 = vunpack.c.h.b16 %v942
    %v1021 = vunpack.c.l.b16 %v943
    %v1022 = vunpack.c.h.b16 %v943
    %v1023 = vunpack.c.l.b16 %v944
    %v1024 = vunpack.c.h.b16 %v944
    %v1025 = vunpack.c.l.b16 %v945
    %v1026 = vunpack.c.h.b16 %v945
    %v1027 = vunpack.c.l.b16 %v946
    %v1028 = vunpack.c.h.b16 %v946
    %v1029 = vunpack.c.l.b16 %v947
    %v1030 = vunpack.c.h.b16 %v947
    %v1031 = vunpack.c.l.b16 %v948
    %v1032 = vunpack.c.h.b16 %v948
    %v1033 = vunpack.c.l.b16 %v949
    %v1034 = vunpack.c.h.b16 %v949
    %v1035 = vunpack.c.l.b16 %v950
    %v1036 = vunpack.c.h.b16 %v950
    %v1037 = vunpack.c.l.b16 %v951
    %v1038 = vunpack.c.h.b16 %v951
    %v1039 = vunpack.c.l.b16 %v952
    %v1040 = vunpack.c.h.b16 %v952
    %v1041 = vunpack.c.l.b16 %v953
    %v1042 = vunpack.c.h.b16 %v953
    %v1043 = vunpack.c.l.b16 %v954
    %v1044 = vunpack.c.h.b16 %v954
    %v1045 = vunpack.c.l.b16 %v955
    %v1046 = vunpack.c.h.b16 %v955
    %v1047 = vunpack.c.l.b16 %v956
    %v1048 = vunpack.c.h.b16 %v956
    %v1049 = vunpack.c.l.b16 %v957
    %v1050 = vunpack.c.h.b16 %v957
    %v1051 = vunpack.c.l.b16 %v958
    %v1052 = vunpack.c.h.b16 %v958
    %v1053 = vunpack.c.l.b16 %v959
    %v1054 = vunpack.c.h.b16 %v959
    %v1055 = vunpack.c.l.b16 %v960
    %v1056 = vunpack.c.h.b16 %v960
    %v1057 = vpack.c.b16 %v997, %v993
    %v1058 = vpack.c.b16 %v998, %v994
    %v1059 = vpack.c.b16 %v999, %v995
    %v1060 = vpack.c.b16 %v1000, %v996
    %v1061 = vpack.c.b16 %v1005, %v1001
    %v1062 = vpack.c.b16 %v1006, %v1002
    %v1063 = vpack.c.b16 %v1007, %v1003
    %v1064 = vpack.c.b16 %v1008, %v1004
    %v1065 = vpack.c.b16 %v1013, %v1009
    %v1066 = vpack.c.b16 %v1014, %v1010
    %v1067 = vpack.c.b16 %v1015, %v1011
    %v1068 = vpack.c.b16 %v1016, %v1012
    %v1069 = vpack.c.b16 %v1021, %v1017
    %v1070 = vpack.c.b16 %v1022, %v1018
    %v1071 = vpack.c.b16 %v1023, %v1019
    %v1072 = vpack.c.b16 %v1024, %v1020
    %v1073 = vpack.c.b16 %v1029, %v1025
    %v1074 = vpack.c.b16 %v1030, %v1026
    %v1075 = vpack.c.b16 %v1031, %v1027
    %v1076 = vpack.c.b16 %v1032, %v1028
    %v1077 = vpack.c.b16 %v1037, %v1033
    %v1078 = vpack.c.b16 %v1038, %v1034
    %v1079 = vpack.c.b16 %v1039, %v1035
    %v1080 = vpack.c.b16 %v1040, %v1036
    %v1081 = vpack.c.b16 %v1045, %v1041
    %v1082 = vpack.c.b16 %v1046, %v1042
    %v1083 = vpack.c.b16 %v1047, %v1043
    %v1084 = vpack.c.b16 %v1048, %v1044
    %v1085 = vpack.c.b16 %v1053, %v1049
    %v1086 = vpack.c.b16 %v1054, %v1050
    %v1087 = vpack.c.b16 %v1055, %v1051
    %v1088 = vpack.c.b16 %v1056, %v1052
    %1121 = vmatprep.subr.bf16.mxu0 %v1058
    %1122 = vmatpush1.bf16.msra.mxu0 %v1057
    %1123 = vmatprep.subr.bf16.mxu0 %v1062
    %1124 = vmatpush1.bf16.msra.mxu0 %v1061
    %1125 = vmatprep.subr.bf16.mxu0 %v1066
    %1126 = vmatpush1.bf16.msra.mxu0 %v1065
    %1127 = vmatprep.subr.bf16.mxu0 %v1070
    %1128 = vmatpush1.bf16.msra.mxu0 %v1069
    %1129 = vmatprep.subr.bf16.mxu0 %v1074
    %1130 = vmatpush1.bf16.msra.mxu0 %v1073
    %1131 = vmatprep.subr.bf16.mxu0 %v1078
    %1132 = vmatpush1.bf16.msra.mxu0 %v1077
    %1133 = vmatprep.subr.bf16.mxu0 %v1082
    %1134 = vmatpush1.bf16.msra.mxu0 %v1081
    %1135 = vmatprep.subr.bf16.mxu0 %v1086
    %1136 = vmatpush1.bf16.msra.mxu0 %v1085
    %1137 = vmatprep.subr.bf16.mxu0 0
    %1138 = vmatpush1.bf16.msra.mxu0 0
    %1139 = vmatprep.subr.bf16.mxu0 0
    %1140 = vmatpush1.bf16.msra.mxu0 0
    %1141 = vmatprep.subr.bf16.mxu0 0
    %1142 = vmatpush1.bf16.msra.mxu0 0
    %1143 = vmatprep.subr.bf16.mxu0 0
    %1144 = vmatpush1.bf16.msra.mxu0 0
    %1145 = vmatprep.subr.bf16.mxu0 0
    %1146 = vmatpush1.bf16.msra.mxu0 0
    %1147 = vmatprep.subr.bf16.mxu0 0
    %1148 = vmatpush1.bf16.msra.mxu0 0
    %1149 = vmatprep.subr.bf16.mxu0 0
    %1150 = vmatpush1.bf16.msra.mxu0 0
    %1151 = vmatprep.subr.bf16.mxu0 0
    %1152 = vmatpush1.bf16.msra.mxu0 0
    %1153 = vmatprep.mubr.bf16.mxu0 0
    %1154 = vmatmul.mubr.bf16.gmra.mrb[0].mxu0 %v928
    %v1155 = vpop.f32.mrb[0].mxu0
    %v1156 = vadd.f32 0.0, %v1155
    %v1157 = vpop.f32.mrb[0].mxu0
    %v1158 = vadd.f32 0.0, %v1157
    %v1159 = vpop.f32.mrb[0].mxu0
    %v1160 = vpop.f32.mrb[0].mxu0
    %1161 = vdwg.mxu0
    %1162 = vmatprep.subr.bf16.mxu0 %v1060
    %1163 = vmatpush1.bf16.msra.mxu0 %v1059
    %1164 = vmatprep.subr.bf16.mxu0 %v1064
    %1165 = vmatpush1.bf16.msra.mxu0 %v1063
    %1166 = vmatprep.subr.bf16.mxu0 %v1068
    %1167 = vmatpush1.bf16.msra.mxu0 %v1067
    %1168 = vmatprep.subr.bf16.mxu0 %v1072
    %1169 = vmatpush1.bf16.msra.mxu0 %v1071
    %1170 = vmatprep.subr.bf16.mxu0 %v1076
    %1171 = vmatpush1.bf16.msra.mxu0 %v1075
    %1172 = vmatprep.subr.bf16.mxu0 %v1080
    %1173 = vmatpush1.bf16.msra.mxu0 %v1079
    %1174 = vmatprep.subr.bf16.mxu0 %v1084
    %1175 = vmatpush1.bf16.msra.mxu0 %v1083
    %1176 = vmatprep.subr.bf16.mxu0 %v1088
    %1177 = vmatpush1.bf16.msra.mxu0 %v1087
    %1178 = vmatprep.subr.bf16.mxu0 0
    %1179 = vmatpush1.bf16.msra.mxu0 0
    %1180 = vmatprep.subr.bf16.mxu0 0
    %1181 = vmatpush1.bf16.msra.mxu0 0
    %1182 = vmatprep.subr.bf16.mxu0 0
    %1183 = vmatpush1.bf16.msra.mxu0 0
    %1184 = vmatprep.subr.bf16.mxu0 0
    %1185 = vmatpush1.bf16.msra.mxu0 0
    %1186 = vmatprep.subr.bf16.mxu0 0
    %1187 = vmatpush1.bf16.msra.mxu0 0
    %1188 = vmatprep.subr.bf16.mxu0 0
    %1189 = vmatpush1.bf16.msra.mxu0 0
    %1190 = vmatprep.subr.bf16.mxu0 0
    %1191 = vmatpush1.bf16.msra.mxu0 0
    %1192 = vmatprep.subr.bf16.mxu0 0
    %1193 = vmatpush1.bf16.msra.mxu0 0
    %1194 = vmatprep.mubr.bf16.mxu0 0
    %1195 = vmatmul.mubr.bf16.gmra.mrb[0].mxu0 %v928
    %v1196 = vpop.f32.mrb[0].mxu0
    %v1197 = vadd.f32 0.0, %v1196
    %v1198 = vpop.f32.mrb[0].mxu0
    %v1199 = vadd.f32 0.0, %v1198
    %v1200 = vpop.f32.mrb[0].mxu0
    %v1201 = vpop.f32.mrb[0].mxu0
    %1202 = vdwg.mxu0
    %v1203 = vadd.f32 %v924, %v1156
    %v1204 = vadd.f32 %v925, %v1158
    %v1205 = vadd.f32 %v926, %v1197
    %v1206 = vadd.f32 %v927, %v1199
    %v1207 = vxor.u32 %v1203, 2147483648
    %v1208 = vxor.u32 %v1204, 2147483648
    %v1209 = vxor.u32 %v1205, 2147483648
    %v1210 = vmul.f32 %v1207, 1.442695
    %v1211 = vpow.pop %v1210
    %v1212 = vmul.f32 %v1208, 1.442695
    %v1213 = vpow.pop %v1212
    %v1214 = vmul.f32 %v1209, 1.442695
    %v1215 = vpow.pop %v1214
    %v1216 = vadd.f32 %v1211, 1.0
    %v1217 = vadd.f32 %v1213, 1.0
    %v1218 = vadd.f32 %v1215, 1.0
    %v1219 = vrcp.pop %v1216
    %v1220 = vmul.f32 1.0, %v1219
    %v1221 = vrcp.pop %v1217
    %v1222 = vmul.f32 1.0, %v1221
    %v1223 = vrcp.pop %v1218
    %v1224 = vmul.f32 1.0, %v1223
    %v1225 = vtanh.pop %v1206
    %v1226 = vmul.f32 %v1222, %v919
    %v1227 = vmul.f32 %v1220, %v1225
    %v1228 = vadd.f32 %v1226, %v1227
    %v1229 = vtanh.pop %v1228
    %v1230 = vmul.f32 %v1224, %v1229
    %v1231 = vpack.c.bf16 %v1230, %v1230
    %v1232 = vpack.c.bf16 %v921, %v921
    %v1233 = vld [vmem:[#allocation9] sm:$0xff]
    %v1234 = vld [vmem:[#allocation9 + $0x8] sm:$0xff]
    %v1235 = vld [vmem:[#allocation9 + $0x10] sm:$0xff]
    %v1236 = vld [vmem:[#allocation9 + $0x18] sm:$0xff]
    %v1237 = vld [vmem:[#allocation9 + $0x20] sm:$0xff]
    %v1238 = vld [vmem:[#allocation9 + $0x28] sm:$0xff]
    %v1239 = vld [vmem:[#allocation9 + $0x30] sm:$0xff]
    %v1240 = vld [vmem:[#allocation9 + $0x38] sm:$0xff]
    %v1241 = vld [vmem:[#allocation9 + $0x40] sm:$0xff]
    %v1242 = vld [vmem:[#allocation9 + $0x48] sm:$0xff]
    %v1243 = vld [vmem:[#allocation9 + $0x50] sm:$0xff]
    %v1244 = vld [vmem:[#allocation9 + $0x58] sm:$0xff]
    %v1245 = vld [vmem:[#allocation9 + $0x60] sm:$0xff]
    %v1246 = vld [vmem:[#allocation9 + $0x68] sm:$0xff]
    %v1247 = vld [vmem:[#allocation9 + $0x70] sm:$0xff]
    %v1248 = vld [vmem:[#allocation9 + $0x78] sm:$0xff]
    %v1249 = vld [vmem:[#allocation9 + $0x80] sm:$0xff]
    %v1250 = vld [vmem:[#allocation9 + $0x88] sm:$0xff]
    %v1251 = vld [vmem:[#allocation9 + $0x90] sm:$0xff]
    %v1252 = vld [vmem:[#allocation9 + $0x98] sm:$0xff]
    %v1253 = vld [vmem:[#allocation9 + $0xa0] sm:$0xff]
    %v1254 = vld [vmem:[#allocation9 + $0xa8] sm:$0xff]
    %v1255 = vld [vmem:[#allocation9 + $0xb0] sm:$0xff]
    %v1256 = vld [vmem:[#allocation9 + $0xb8] sm:$0xff]
    %v1257 = vld [vmem:[#allocation9 + $0xc0] sm:$0xff]
    %v1258 = vld [vmem:[#allocation9 + $0xc8] sm:$0xff]
    %v1259 = vld [vmem:[#allocation9 + $0xd0] sm:$0xff]
    %v1260 = vld [vmem:[#allocation9 + $0xd8] sm:$0xff]
    %v1261 = vld [vmem:[#allocation9 + $0xe0] sm:$0xff]
    %v1262 = vld [vmem:[#allocation9 + $0xe8] sm:$0xff]
    %v1263 = vld [vmem:[#allocation9 + $0xf0] sm:$0xff]
    %v1264 = vld [vmem:[#allocation9 + $0xf8] sm:$0xff]
    %v1265 = vld [vmem:[#allocation9 + $0x100] sm:$0xff]
    %v1266 = vld [vmem:[#allocation9 + $0x108] sm:$0xff]
    %v1267 = vld [vmem:[#allocation9 + $0x110] sm:$0xff]
    %v1268 = vld [vmem:[#allocation9 + $0x118] sm:$0xff]
    %v1269 = vld [vmem:[#allocation9 + $0x120] sm:$0xff]
    %v1270 = vld [vmem:[#allocation9 + $0x128] sm:$0xff]
    %v1271 = vld [vmem:[#allocation9 + $0x130] sm:$0xff]
    %v1272 = vld [vmem:[#allocation9 + $0x138] sm:$0xff]
    %v1273 = vld [vmem:[#allocation9 + $0x140] sm:$0xff]
    %v1274 = vld [vmem:[#allocation9 + $0x148] sm:$0xff]
    %v1275 = vld [vmem:[#allocation9 + $0x150] sm:$0xff]
    %v1276 = vld [vmem:[#allocation9 + $0x158] sm:$0xff]
    %v1277 = vld [vmem:[#allocation9 + $0x160] sm:$0xff]
    %v1278 = vld [vmem:[#allocation9 + $0x168] sm:$0xff]
    %v1279 = vld [vmem:[#allocation9 + $0x170] sm:$0xff]
    %v1280 = vld [vmem:[#allocation9 + $0x178] sm:$0xff]
    %v1281 = vld [vmem:[#allocation9 + $0x180] sm:$0xff]
    %v1282 = vld [vmem:[#allocation9 + $0x188] sm:$0xff]
    %v1283 = vld [vmem:[#allocation9 + $0x190] sm:$0xff]
    %v1284 = vld [vmem:[#allocation9 + $0x198] sm:$0xff]
    %v1285 = vld [vmem:[#allocation9 + $0x1a0] sm:$0xff]
    %v1286 = vld [vmem:[#allocation9 + $0x1a8] sm:$0xff]
    %v1287 = vld [vmem:[#allocation9 + $0x1b0] sm:$0xff]
    %v1288 = vld [vmem:[#allocation9 + $0x1b8] sm:$0xff]
    %v1289 = vld [vmem:[#allocation9 + $0x1c0] sm:$0xff]
    %v1290 = vld [vmem:[#allocation9 + $0x1c8] sm:$0xff]
    %v1291 = vld [vmem:[#allocation9 + $0x1d0] sm:$0xff]
    %v1292 = vld [vmem:[#allocation9 + $0x1d8] sm:$0xff]
    %v1293 = vld [vmem:[#allocation9 + $0x1e0] sm:$0xff]
    %v1294 = vld [vmem:[#allocation9 + $0x1e8] sm:$0xff]
    %v1295 = vld [vmem:[#allocation9 + $0x1f0] sm:$0xff]
    %v1296 = vld [vmem:[#allocation9 + $0x1f8] sm:$0xff]
    %v1297 = vld [vmem:[%s10] sm:$0xf]
    %v1299 = vlaneseq
    %v1300 = vshrl.u32 %v1299, 7
    %v1301 = vsub.s32 0, %v1300
    %v1302 = vrot.slane %v1297, %v1301
    %v1303 = vlaneseq
    %v1304 = vshrl.u32 %v1303, 7
    %v1305 = vsub.s32 1, %v1304
    %v1306 = vrot.slane %v1297, %v1305
    %v1307 = vlaneseq
    %v1308 = vshrl.u32 %v1307, 7
    %v1309 = vsub.s32 2, %v1308
    %v1310 = vrot.slane %v1297, %v1309
    %v1311 = vlaneseq
    %v1312 = vshrl.u32 %v1311, 7
    %v1313 = vsub.s32 3, %v1312
    %v1314 = vrot.slane %v1297, %v1313
    %v1383 = vunpack.c.l.b16 %v1233
    %v1384 = vunpack.c.h.b16 %v1233
    %v1385 = vunpack.c.l.b16 %v1234
    %v1386 = vunpack.c.h.b16 %v1234
    %v1387 = vunpack.c.l.b16 %v1235
    %v1388 = vunpack.c.h.b16 %v1235
    %v1389 = vunpack.c.l.b16 %v1236
    %v1390 = vunpack.c.h.b16 %v1236
    %v1391 = vunpack.c.l.b16 %v1237
    %v1392 = vunpack.c.h.b16 %v1237
    %v1393 = vunpack.c.l.b16 %v1238
    %v1394 = vunpack.c.h.b16 %v1238
    %v1395 = vunpack.c.l.b16 %v1239
    %v1396 = vunpack.c.h.b16 %v1239
    %v1397 = vunpack.c.l.b16 %v1240
    %v1398 = vunpack.c.h.b16 %v1240
    %v1399 = vunpack.c.l.b16 %v1241
    %v1400 = vunpack.c.h.b16 %v1241
    %v1401 = vunpack.c.l.b16 %v1242
    %v1402 = vunpack.c.h.b16 %v1242
    %v1403 = vunpack.c.l.b16 %v1243
    %v1404 = vunpack.c.h.b16 %v1243
    %v1405 = vunpack.c.l.b16 %v1244
    %v1406 = vunpack.c.h.b16 %v1244
    %v1407 = vunpack.c.l.b16 %v1245
    %v1408 = vunpack.c.h.b16 %v1245
    %v1409 = vunpack.c.l.b16 %v1246
    %v1410 = vunpack.c.h.b16 %v1246
    %v1411 = vunpack.c.l.b16 %v1247
    %v1412 = vunpack.c.h.b16 %v1247
    %v1413 = vunpack.c.l.b16 %v1248
    %v1414 = vunpack.c.h.b16 %v1248
    %v1415 = vunpack.c.l.b16 %v1249
    %v1416 = vunpack.c.h.b16 %v1249
    %v1417 = vunpack.c.l.b16 %v1250
    %v1418 = vunpack.c.h.b16 %v1250
    %v1419 = vunpack.c.l.b16 %v1251
    %v1420 = vunpack.c.h.b16 %v1251
    %v1421 = vunpack.c.l.b16 %v1252
    %v1422 = vunpack.c.h.b16 %v1252
    %v1423 = vunpack.c.l.b16 %v1253
    %v1424 = vunpack.c.h.b16 %v1253
    %v1425 = vunpack.c.l.b16 %v1254
    %v1426 = vunpack.c.h.b16 %v1254
    %v1427 = vunpack.c.l.b16 %v1255
    %v1428 = vunpack.c.h.b16 %v1255
    %v1429 = vunpack.c.l.b16 %v1256
    %v1430 = vunpack.c.h.b16 %v1256
    %v1431 = vunpack.c.l.b16 %v1257
    %v1432 = vunpack.c.h.b16 %v1257
    %v1433 = vunpack.c.l.b16 %v1258
    %v1434 = vunpack.c.h.b16 %v1258
    %v1435 = vunpack.c.l.b16 %v1259
    %v1436 = vunpack.c.h.b16 %v1259
    %v1437 = vunpack.c.l.b16 %v1260
    %v1438 = vunpack.c.h.b16 %v1260
    %v1439 = vunpack.c.l.b16 %v1261
    %v1440 = vunpack.c.h.b16 %v1261
    %v1441 = vunpack.c.l.b16 %v1262
    %v1442 = vunpack.c.h.b16 %v1262
    %v1443 = vunpack.c.l.b16 %v1263
    %v1444 = vunpack.c.h.b16 %v1263
    %v1445 = vunpack.c.l.b16 %v1264
    %v1446 = vunpack.c.h.b16 %v1264
    %v1447 = vunpack.c.l.b16 %v1265
    %v1448 = vunpack.c.h.b16 %v1265
    %v1449 = vunpack.c.l.b16 %v1266
    %v1450 = vunpack.c.h.b16 %v1266
    %v1451 = vunpack.c.l.b16 %v1267
    %v1452 = vunpack.c.h.b16 %v1267
    %v1453 = vunpack.c.l.b16 %v1268
    %v1454 = vunpack.c.h.b16 %v1268
    %v1455 = vunpack.c.l.b16 %v1269
    %v1456 = vunpack.c.h.b16 %v1269
    %v1457 = vunpack.c.l.b16 %v1270
    %v1458 = vunpack.c.h.b16 %v1270
    %v1459 = vunpack.c.l.b16 %v1271
    %v1460 = vunpack.c.h.b16 %v1271
    %v1461 = vunpack.c.l.b16 %v1272
    %v1462 = vunpack.c.h.b16 %v1272
    %v1463 = vunpack.c.l.b16 %v1273
    %v1464 = vunpack.c.h.b16 %v1273
    %v1465 = vunpack.c.l.b16 %v1274
    %v1466 = vunpack.c.h.b16 %v1274
    %v1467 = vunpack.c.l.b16 %v1275
    %v1468 = vunpack.c.h.b16 %v1275
    %v1469 = vunpack.c.l.b16 %v1276
    %v1470 = vunpack.c.h.b16 %v1276
    %v1471 = vunpack.c.l.b16 %v1277
    %v1472 = vunpack.c.h.b16 %v1277
    %v1473 = vunpack.c.l.b16 %v1278
    %v1474 = vunpack.c.h.b16 %v1278
    %v1475 = vunpack.c.l.b16 %v1279
    %v1476 = vunpack.c.h.b16 %v1279
    %v1477 = vunpack.c.l.b16 %v1280
    %v1478 = vunpack.c.h.b16 %v1280
    %v1479 = vunpack.c.l.b16 %v1281
    %v1480 = vunpack.c.h.b16 %v1281
    %v1481 = vunpack.c.l.b16 %v1282
    %v1482 = vunpack.c.h.b16 %v1282
    %v1483 = vunpack.c.l.b16 %v1283
    %v1484 = vunpack.c.h.b16 %v1283
    %v1485 = vunpack.c.l.b16 %v1284
    %v1486 = vunpack.c.h.b16 %v1284
    %v1487 = vunpack.c.l.b16 %v1285
    %v1488 = vunpack.c.h.b16 %v1285
    %v1489 = vunpack.c.l.b16 %v1286
    %v1490 = vunpack.c.h.b16 %v1286
    %v1491 = vunpack.c.l.b16 %v1287
    %v1492 = vunpack.c.h.b16 %v1287
    %v1493 = vunpack.c.l.b16 %v1288
    %v1494 = vunpack.c.h.b16 %v1288
    %v1495 = vunpack.c.l.b16 %v1289
    %v1496 = vunpack.c.h.b16 %v1289
    %v1497 = vunpack.c.l.b16 %v1290
    %v1498 = vunpack.c.h.b16 %v1290
    %v1499 = vunpack.c.l.b16 %v1291
    %v1500 = vunpack.c.h.b16 %v1291
    %v1501 = vunpack.c.l.b16 %v1292
    %v1502 = vunpack.c.h.b16 %v1292
    %v1503 = vunpack.c.l.b16 %v1293
    %v1504 = vunpack.c.h.b16 %v1293
    %v1505 = vunpack.c.l.b16 %v1294
    %v1506 = vunpack.c.h.b16 %v1294
    %v1507 = vunpack.c.l.b16 %v1295
    %v1508 = vunpack.c.h.b16 %v1295
    %v1509 = vunpack.c.l.b16 %v1296
    %v1510 = vunpack.c.h.b16 %v1296
    %v1511 = vpack.c.b16 %v1387, %v1383
    %v1512 = vpack.c.b16 %v1388, %v1384
    %v1513 = vpack.c.b16 %v1389, %v1385
    %v1514 = vpack.c.b16 %v1390, %v1386
    %v1515 = vpack.c.b16 %v1395, %v1391
    %v1516 = vpack.c.b16 %v1396, %v1392
    %v1517 = vpack.c.b16 %v1397, %v1393
    %v1518 = vpack.c.b16 %v1398, %v1394
    %v1519 = vpack.c.b16 %v1403, %v1399
    %v1520 = vpack.c.b16 %v1404, %v1400
    %v1521 = vpack.c.b16 %v1405, %v1401
    %v1522 = vpack.c.b16 %v1406, %v1402
    %v1523 = vpack.c.b16 %v1411, %v1407
    %v1524 = vpack.c.b16 %v1412, %v1408
    %v1525 = vpack.c.b16 %v1413, %v1409
    %v1526 = vpack.c.b16 %v1414, %v1410
    %v1527 = vpack.c.b16 %v1419, %v1415
    %v1528 = vpack.c.b16 %v1420, %v1416
    %v1529 = vpack.c.b16 %v1421, %v1417
    %v1530 = vpack.c.b16 %v1422, %v1418
    %v1531 = vpack.c.b16 %v1427, %v1423
    %v1532 = vpack.c.b16 %v1428, %v1424
    %v1533 = vpack.c.b16 %v1429, %v1425
    %v1534 = vpack.c.b16 %v1430, %v1426
    %v1535 = vpack.c.b16 %v1435, %v1431
    %v1536 = vpack.c.b16 %v1436, %v1432
    %v1537 = vpack.c.b16 %v1437, %v1433
    %v1538 = vpack.c.b16 %v1438, %v1434
    %v1539 = vpack.c.b16 %v1443, %v1439
    %v1540 = vpack.c.b16 %v1444, %v1440
    %v1541 = vpack.c.b16 %v1445, %v1441
    %v1542 = vpack.c.b16 %v1446, %v1442
    %v1543 = vpack.c.b16 %v1451, %v1447
    %v1544 = vpack.c.b16 %v1452, %v1448
    %v1545 = vpack.c.b16 %v1453, %v1449
    %v1546 = vpack.c.b16 %v1454, %v1450
    %v1547 = vpack.c.b16 %v1459, %v1455
    %v1548 = vpack.c.b16 %v1460, %v1456
    %v1549 = vpack.c.b16 %v1461, %v1457
    %v1550 = vpack.c.b16 %v1462, %v1458
    %v1551 = vpack.c.b16 %v1467, %v1463
    %v1552 = vpack.c.b16 %v1468, %v1464
    %v1553 = vpack.c.b16 %v1469, %v1465
    %v1554 = vpack.c.b16 %v1470, %v1466
    %v1555 = vpack.c.b16 %v1475, %v1471
    %v1556 = vpack.c.b16 %v1476, %v1472
    %v1557 = vpack.c.b16 %v1477, %v1473
    %v1558 = vpack.c.b16 %v1478, %v1474
    %v1559 = vpack.c.b16 %v1483, %v1479
    %v1560 = vpack.c.b16 %v1484, %v1480
    %v1561 = vpack.c.b16 %v1485, %v1481
    %v1562 = vpack.c.b16 %v1486, %v1482
    %v1563 = vpack.c.b16 %v1491, %v1487
    %v1564 = vpack.c.b16 %v1492, %v1488
    %v1565 = vpack.c.b16 %v1493, %v1489
    %v1566 = vpack.c.b16 %v1494, %v1490
    %v1567 = vpack.c.b16 %v1499, %v1495
    %v1568 = vpack.c.b16 %v1500, %v1496
    %v1569 = vpack.c.b16 %v1501, %v1497
    %v1570 = vpack.c.b16 %v1502, %v1498
    %v1571 = vpack.c.b16 %v1507, %v1503
    %v1572 = vpack.c.b16 %v1508, %v1504
    %v1573 = vpack.c.b16 %v1509, %v1505
    %v1574 = vpack.c.b16 %v1510, %v1506
    %1639 = vmatprep.subr.bf16.mxu0 %v1512
    %1640 = vmatpush1.bf16.msra.mxu0 %v1511
    %1641 = vmatprep.subr.bf16.mxu0 %v1516
    %1642 = vmatpush1.bf16.msra.mxu0 %v1515
    %1643 = vmatprep.subr.bf16.mxu0 %v1520
    %1644 = vmatpush1.bf16.msra.mxu0 %v1519
    %1645 = vmatprep.subr.bf16.mxu0 %v1524
    %1646 = vmatpush1.bf16.msra.mxu0 %v1523
    %1647 = vmatprep.subr.bf16.mxu0 %v1528
    %1648 = vmatpush1.bf16.msra.mxu0 %v1527
    %1649 = vmatprep.subr.bf16.mxu0 %v1532
    %1650 = vmatpush1.bf16.msra.mxu0 %v1531
    %1651 = vmatprep.subr.bf16.mxu0 %v1536
    %1652 = vmatpush1.bf16.msra.mxu0 %v1535
    %1653 = vmatprep.subr.bf16.mxu0 %v1540
    %1654 = vmatpush1.bf16.msra.mxu0 %v1539
    %1655 = vmatprep.subr.bf16.mxu0 %v1544
    %1656 = vmatpush1.bf16.msra.mxu0 %v1543
    %1657 = vmatprep.subr.bf16.mxu0 %v1548
    %1658 = vmatpush1.bf16.msra.mxu0 %v1547
    %1659 = vmatprep.subr.bf16.mxu0 %v1552
    %1660 = vmatpush1.bf16.msra.mxu0 %v1551
    %1661 = vmatprep.subr.bf16.mxu0 %v1556
    %1662 = vmatpush1.bf16.msra.mxu0 %v1555
    %1663 = vmatprep.subr.bf16.mxu0 %v1560
    %1664 = vmatpush1.bf16.msra.mxu0 %v1559
    %1665 = vmatprep.subr.bf16.mxu0 %v1564
    %1666 = vmatpush1.bf16.msra.mxu0 %v1563
    %1667 = vmatprep.subr.bf16.mxu0 %v1568
    %1668 = vmatpush1.bf16.msra.mxu0 %v1567
    %1669 = vmatprep.subr.bf16.mxu0 %v1572
    %1670 = vmatpush1.bf16.msra.mxu0 %v1571
    %1671 = vmatprep.mubr.bf16.mxu0 %v1232
    %1672 = vmatmul.mubr.bf16.gmra.mrb[0].mxu0 %v1231
    %v1673 = vpop.f32.mrb[0].mxu0
    %v1674 = vadd.f32 %v1302, %v1673
    %v1675 = vpop.f32.mrb[0].mxu0
    %v1676 = vadd.f32 %v1306, %v1675
    %v1677 = vpop.f32.mrb[0].mxu0
    %v1678 = vpop.f32.mrb[0].mxu0
    %1679 = vdwg.mxu0
    %1680 = vmatprep.subr.bf16.mxu0 %v1514
    %1681 = vmatpush1.bf16.msra.mxu0 %v1513
    %1682 = vmatprep.subr.bf16.mxu0 %v1518
    %1683 = vmatpush1.bf16.msra.mxu0 %v1517
    %1684 = vmatprep.subr.bf16.mxu0 %v1522
    %1685 = vmatpush1.bf16.msra.mxu0 %v1521
    %1686 = vmatprep.subr.bf16.mxu0 %v1526
    %1687 = vmatpush1.bf16.msra.mxu0 %v1525
    %1688 = vmatprep.subr.bf16.mxu0 %v1530
    %1689 = vmatpush1.bf16.msra.mxu0 %v1529
    %1690 = vmatprep.subr.bf16.mxu0 %v1534
    %1691 = vmatpush1.bf16.msra.mxu0 %v1533
    %1692 = vmatprep.subr.bf16.mxu0 %v1538
    %1693 = vmatpush1.bf16.msra.mxu0 %v1537
    %1694 = vmatprep.subr.bf16.mxu0 %v1542
    %1695 = vmatpush1.bf16.msra.mxu0 %v1541
    %1696 = vmatprep.subr.bf16.mxu0 %v1546
    %1697 = vmatpush1.bf16.msra.mxu0 %v1545
    %1698 = vmatprep.subr.bf16.mxu0 %v1550
    %1699 = vmatpush1.bf16.msra.mxu0 %v1549
    %1700 = vmatprep.subr.bf16.mxu0 %v1554
    %1701 = vmatpush1.bf16.msra.mxu0 %v1553
    %1702 = vmatprep.subr.bf16.mxu0 %v1558
    %1703 = vmatpush1.bf16.msra.mxu0 %v1557
    %1704 = vmatprep.subr.bf16.mxu0 %v1562
    %1705 = vmatpush1.bf16.msra.mxu0 %v1561
    %1706 = vmatprep.subr.bf16.mxu0 %v1566
    %1707 = vmatpush1.bf16.msra.mxu0 %v1565
    %1708 = vmatprep.subr.bf16.mxu0 %v1570
    %1709 = vmatpush1.bf16.msra.mxu0 %v1569
    %1710 = vmatprep.subr.bf16.mxu0 %v1574
    %1711 = vmatpush1.bf16.msra.mxu0 %v1573
    %1712 = vmatprep.mubr.bf16.mxu0 %v1232
    %1713 = vmatmul.mubr.bf16.gmra.mrb[0].mxu0 %v1231
    %v1714 = vpop.f32.mrb[0].mxu0
    %v1715 = vadd.f32 %v1310, %v1714
    %v1716 = vpop.f32.mrb[0].mxu0
    %v1717 = vadd.f32 %v1314, %v1716
    %v1718 = vpop.f32.mrb[0].mxu0
    %v1719 = vpop.f32.mrb[0].mxu0
    %1720 = vdwg.mxu0
    %s1721 = scalar_lea.vmem [#allocation2], 32
    %v1722 = vld [vmem:[%s1721] sm:$0xff]
    %v1723 = vld [vmem:[%s1721 + $0x8] sm:$0xff]
    %v1724 = vld [vmem:[%s1721 + $0x10] sm:$0xff]
    %v1725 = vld [vmem:[%s1721 + $0x18] sm:$0xff]
    %1726 = vmatprep.subr.bf16.mxu0 %v1058
    %1727 = vmatpush1.bf16.msra.mxu0 %v1057
    %1728 = vmatprep.subr.bf16.mxu0 %v1062
    %1729 = vmatpush1.bf16.msra.mxu0 %v1061
    %1730 = vmatprep.subr.bf16.mxu0 %v1066
    %1731 = vmatpush1.bf16.msra.mxu0 %v1065
    %1732 = vmatprep.subr.bf16.mxu0 %v1070
    %1733 = vmatpush1.bf16.msra.mxu0 %v1069
    %1734 = vmatprep.subr.bf16.mxu0 %v1074
    %1735 = vmatpush1.bf16.msra.mxu0 %v1073
    %1736 = vmatprep.subr.bf16.mxu0 %v1078
    %1737 = vmatpush1.bf16.msra.mxu0 %v1077
    %1738 = vmatprep.subr.bf16.mxu0 %v1082
    %1739 = vmatpush1.bf16.msra.mxu0 %v1081
    %1740 = vmatprep.subr.bf16.mxu0 %v1086
    %1741 = vmatpush1.bf16.msra.mxu0 %v1085
    %1742 = vmatprep.subr.bf16.mxu0 0
    %1743 = vmatpush1.bf16.msra.mxu0 0
    %1744 = vmatprep.subr.bf16.mxu0 0
    %1745 = vmatpush1.bf16.msra.mxu0 0
    %1746 = vmatprep.subr.bf16.mxu0 0
    %1747 = vmatpush1.bf16.msra.mxu0 0
    %1748 = vmatprep.subr.bf16.mxu0 0
    %1749 = vmatpush1.bf16.msra.mxu0 0
    %1750 = vmatprep.subr.bf16.mxu0 0
    %1751 = vmatpush1.bf16.msra.mxu0 0
    %1752 = vmatprep.subr.bf16.mxu0 0
    %1753 = vmatpush1.bf16.msra.mxu0 0
    %1754 = vmatprep.subr.bf16.mxu0 0
    %1755 = vmatpush1.bf16.msra.mxu0 0
    %1756 = vmatprep.subr.bf16.mxu0 0
    %1757 = vmatpush1.bf16.msra.mxu0 0
    %1758 = vmatprep.mubr.bf16.mxu0 0
    %1759 = vmatmul.mubr.bf16.gmra.mrb[0].mxu0 %v1231
    %v1760 = vpop.f32.mrb[0].mxu0
    %v1761 = vadd.f32 0.0, %v1760
    %v1762 = vpop.f32.mrb[0].mxu0
    %v1763 = vadd.f32 0.0, %v1762
    %v1764 = vpop.f32.mrb[0].mxu0
    %v1765 = vpop.f32.mrb[0].mxu0
    %1766 = vdwg.mxu0
    %1767 = vmatprep.subr.bf16.mxu0 %v1060
    %1768 = vmatpush1.bf16.msra.mxu0 %v1059
    %1769 = vmatprep.subr.bf16.mxu0 %v1064
    %1770 = vmatpush1.bf16.msra.mxu0 %v1063
    %1771 = vmatprep.subr.bf16.mxu0 %v1068
    %1772 = vmatpush1.bf16.msra.mxu0 %v1067
    %1773 = vmatprep.subr.bf16.mxu0 %v1072
    %1774 = vmatpush1.bf16.msra.mxu0 %v1071
    %1775 = vmatprep.subr.bf16.mxu0 %v1076
    %1776 = vmatpush1.bf16.msra.mxu0 %v1075
    %1777 = vmatprep.subr.bf16.mxu0 %v1080
    %1778 = vmatpush1.bf16.msra.mxu0 %v1079
    %1779 = vmatprep.subr.bf16.mxu0 %v1084
    %1780 = vmatpush1.bf16.msra.mxu0 %v1083
    %1781 = vmatprep.subr.bf16.mxu0 %v1088
    %1782 = vmatpush1.bf16.msra.mxu0 %v1087
    %1783 = vmatprep.subr.bf16.mxu0 0
    %1784 = vmatpush1.bf16.msra.mxu0 0
    %1785 = vmatprep.subr.bf16.mxu0 0
    %1786 = vmatpush1.bf16.msra.mxu0 0
    %1787 = vmatprep.subr.bf16.mxu0 0
    %1788 = vmatpush1.bf16.msra.mxu0 0
    %1789 = vmatprep.subr.bf16.mxu0 0
    %1790 = vmatpush1.bf16.msra.mxu0 0
    %1791 = vmatprep.subr.bf16.mxu0 0
    %1792 = vmatpush1.bf16.msra.mxu0 0
    %1793 = vmatprep.subr.bf16.mxu0 0
    %1794 = vmatpush1.bf16.msra.mxu0 0
    %1795 = vmatprep.subr.bf16.mxu0 0
    %1796 = vmatpush1.bf16.msra.mxu0 0
    %1797 = vmatprep.subr.bf16.mxu0 0
    %1798 = vmatpush1.bf16.msra.mxu0 0
    %1799 = vmatprep.mubr.bf16.mxu0 0
    %1800 = vmatmul.mubr.bf16.gmra.mrb[0].mxu0 %v1231
    %v1801 = vpop.f32.mrb[0].mxu0
    %v1802 = vadd.f32 0.0, %v1801
    %v1803 = vpop.f32.mrb[0].mxu0
    %v1804 = vadd.f32 0.0, %v1803
    %v1805 = vpop.f32.mrb[0].mxu0
    %v1806 = vpop.f32.mrb[0].mxu0
    %1807 = vdwg.mxu0
    %v1808 = vadd.f32 %v1722, %v1761
    %v1809 = vadd.f32 %v1723, %v1763
    %v1810 = vadd.f32 %v1724, %v1802
    %v1811 = vadd.f32 %v1725, %v1804
    %v1812 = vxor.u32 %v1674, 2147483648
    %v1813 = vxor.u32 %v1676, 2147483648
    %v1814 = vxor.u32 %v1715, 2147483648
    %v1815 = vmul.f32 %v1812, 1.442695
    %v1816 = vpow.pop %v1815
    %v1817 = vmul.f32 %v1813, 1.442695
    %v1818 = vpow.pop %v1817
    %v1819 = vmul.f32 %v1814, 1.442695
    %v1820 = vpow.pop %v1819
    %v1821 = vadd.f32 %v1816, 1.0
    %v1822 = vadd.f32 %v1818, 1.0
    %v1823 = vadd.f32 %v1820, 1.0
    %v1824 = vrcp.pop %v1821
    %v1825 = vmul.f32 1.0, %v1824
    %v1826 = vrcp.pop %v1822
    %v1827 = vmul.f32 1.0, %v1826
    %v1828 = vrcp.pop %v1823
    %v1829 = vmul.f32 1.0, %v1828
    %v1830 = vtanh.pop %v1717
    %v1831 = vmul.f32 %v1827, %v923
    %v1832 = vmul.f32 %v1825, %v1830
    %v1833 = vadd.f32 %v1831, %v1832
    %v1834 = vtanh.pop %v1833
    %v1835 = vmul.f32 %v1829, %v1834
    %v1836 = vxor.u32 %v1808, 2147483648
    %v1837 = vxor.u32 %v1809, 2147483648
    %v1838 = vxor.u32 %v1810, 2147483648
    %v1839 = vmul.f32 %v1836, 1.442695
    %v1840 = vpow.pop %v1839
    %v1841 = vmul.f32 %v1837, 1.442695
    %v1842 = vpow.pop %v1841
    %v1843 = vmul.f32 %v1838, 1.442695
    %v1844 = vpow.pop %v1843
    %v1845 = vadd.f32 %v1840, 1.0
    %v1846 = vadd.f32 %v1842, 1.0
    %v1847 = vadd.f32 %v1844, 1.0
    %v1848 = vrcp.pop %v1845
    %v1849 = vmul.f32 1.0, %v1848
    %v1850 = vrcp.pop %v1846
    %v1851 = vmul.f32 1.0, %v1850
    %v1852 = vrcp.pop %v1847
    %v1853 = vmul.f32 1.0, %v1852
    %v1854 = vtanh.pop %v1811
    %v1855 = vmul.f32 %v1851, %v1228
    %v1856 = vmul.f32 %v1849, %v1854
    %v1857 = vadd.f32 %v1855, %v1856
    %v1858 = vtanh.pop %v1857
    %v1859 = vmul.f32 %v1853, %v1858
    %v1860 = vpack.c.bf16 %v1859, %v1859
    %v1861 = vpack.c.bf16 %v1835, %v1835
    %1862 = vmatprep.subr.bf16.mxu0 %v1512
    %1863 = vmatpush1.bf16.msra.mxu0 %v1511
    %1864 = vmatprep.subr.bf16.mxu0 %v1516
    %1865 = vmatpush1.bf16.msra.mxu0 %v1515
    %1866 = vmatprep.subr.bf16.mxu0 %v1520
    %1867 = vmatpush1.bf16.msra.mxu0 %v1519
    %1868 = vmatprep.subr.bf16.mxu0 %v1524
    %1869 = vmatpush1.bf16.msra.mxu0 %v1523
    %1870 = vmatprep.subr.bf16.mxu0 %v1528
    %1871 = vmatpush1.bf16.msra.mxu0 %v1527
    %1872 = vmatprep.subr.bf16.mxu0 %v1532
    %1873 = vmatpush1.bf16.msra.mxu0 %v1531
    %1874 = vmatprep.subr.bf16.mxu0 %v1536
    %1875 = vmatpush1.bf16.msra.mxu0 %v1535
    %1876 = vmatprep.subr.bf16.mxu0 %v1540
    %1877 = vmatpush1.bf16.msra.mxu0 %v1539
    %1878 = vmatprep.subr.bf16.mxu0 %v1544
    %1879 = vmatpush1.bf16.msra.mxu0 %v1543
    %1880 = vmatprep.subr.bf16.mxu0 %v1548
    %1881 = vmatpush1.bf16.msra.mxu0 %v1547
    %1882 = vmatprep.subr.bf16.mxu0 %v1552
    %1883 = vmatpush1.bf16.msra.mxu0 %v1551
    %1884 = vmatprep.subr.bf16.mxu0 %v1556
    %1885 = vmatpush1.bf16.msra.mxu0 %v1555
    %1886 = vmatprep.subr.bf16.mxu0 %v1560
    %1887 = vmatpush1.bf16.msra.mxu0 %v1559
    %1888 = vmatprep.subr.bf16.mxu0 %v1564
    %1889 = vmatpush1.bf16.msra.mxu0 %v1563
    %1890 = vmatprep.subr.bf16.mxu0 %v1568
    %1891 = vmatpush1.bf16.msra.mxu0 %v1567
    %1892 = vmatprep.subr.bf16.mxu0 %v1572
    %1893 = vmatpush1.bf16.msra.mxu0 %v1571
    %1894 = vmatprep.mubr.bf16.mxu0 %v1861
    %1895 = vmatmul.mubr.bf16.gmra.mrb[0].mxu0 %v1860
    %v1896 = vpop.f32.mrb[0].mxu0
    %v1897 = vadd.f32 %v1302, %v1896
    %v1898 = vpop.f32.mrb[0].mxu0
    %v1899 = vadd.f32 %v1306, %v1898
    %v1900 = vpop.f32.mrb[0].mxu0
    %v1901 = vpop.f32.mrb[0].mxu0
    %1902 = vdwg.mxu0
    %1903 = vmatprep.subr.bf16.mxu0 %v1514
    %1904 = vmatpush1.bf16.msra.mxu0 %v1513
    %1905 = vmatprep.subr.bf16.mxu0 %v1518
    %1906 = vmatpush1.bf16.msra.mxu0 %v1517
    %1907 = vmatprep.subr.bf16.mxu0 %v1522
    %1908 = vmatpush1.bf16.msra.mxu0 %v1521
    %1909 = vmatprep.subr.bf16.mxu0 %v1526
    %1910 = vmatpush1.bf16.msra.mxu0 %v1525
    %1911 = vmatprep.subr.bf16.mxu0 %v1530
    %1912 = vmatpush1.bf16.msra.mxu0 %v1529
    %1913 = vmatprep.subr.bf16.mxu0 %v1534
    %1914 = vmatpush1.bf16.msra.mxu0 %v1533
    %1915 = vmatprep.subr.bf16.mxu0 %v1538
    %1916 = vmatpush1.bf16.msra.mxu0 %v1537
    %1917 = vmatprep.subr.bf16.mxu0 %v1542
    %1918 = vmatpush1.bf16.msra.mxu0 %v1541
    %1919 = vmatprep.subr.bf16.mxu0 %v1546
    %1920 = vmatpush1.bf16.msra.mxu0 %v1545
    %1921 = vmatprep.subr.bf16.mxu0 %v1550
    %1922 = vmatpush1.bf16.msra.mxu0 %v1549
    %1923 = vmatprep.subr.bf16.mxu0 %v1554
    %1924 = vmatpush1.bf16.msra.mxu0 %v1553
    %1925 = vmatprep.subr.bf16.mxu0 %v1558
    %1926 = vmatpush1.bf16.msra.mxu0 %v1557
    %1927 = vmatprep.subr.bf16.mxu0 %v1562
    %1928 = vmatpush1.bf16.msra.mxu0 %v1561
    %1929 = vmatprep.subr.bf16.mxu0 %v1566
    %1930 = vmatpush1.bf16.msra.mxu0 %v1565
    %1931 = vmatprep.subr.bf16.mxu0 %v1570
    %1932 = vmatpush1.bf16.msra.mxu0 %v1569
    %1933 = vmatprep.subr.bf16.mxu0 %v1574
    %1934 = vmatpush1.bf16.msra.mxu0 %v1573
    %1935 = vmatprep.mubr.bf16.mxu0 %v1861
    %1936 = vmatmul.mubr.bf16.gmra.mrb[0].mxu0 %v1860
    %v1937 = vpop.f32.mrb[0].mxu0
    %v1938 = vadd.f32 %v1310, %v1937
    %v1939 = vpop.f32.mrb[0].mxu0
    %v1940 = vadd.f32 %v1314, %v1939
    %v1941 = vpop.f32.mrb[0].mxu0
    %v1942 = vpop.f32.mrb[0].mxu0
    %1943 = vdwg.mxu0
    %s1944 = scalar_lea.vmem [#allocation2], 64
    %v1945 = vld [vmem:[%s1944] sm:$0xff]
    %v1946 = vld [vmem:[%s1944 + $0x8] sm:$0xff]
    %v1947 = vld [vmem:[%s1944 + $0x10] sm:$0xff]
    %v1948 = vld [vmem:[%s1944 + $0x18] sm:$0xff]
    %1949 = vmatprep.subr.bf16.mxu0 %v1058
    %1950 = vmatpush1.bf16.msra.mxu0 %v1057
    %1951 = vmatprep.subr.bf16.mxu0 %v1062
    %1952 = vmatpush1.bf16.msra.mxu0 %v1061
    %1953 = vmatprep.subr.bf16.mxu0 %v1066
    %1954 = vmatpush1.bf16.msra.mxu0 %v1065
    %1955 = vmatprep.subr.bf16.mxu0 %v1070
    %1956 = vmatpush1.bf16.msra.mxu0 %v1069
    %1957 = vmatprep.subr.bf16.mxu0 %v1074
    %1958 = vmatpush1.bf16.msra.mxu0 %v1073
    %1959 = vmatprep.subr.bf16.mxu0 %v1078
    %1960 = vmatpush1.bf16.msra.mxu0 %v1077
    %1961 = vmatprep.subr.bf16.mxu0 %v1082
    %1962 = vmatpush1.bf16.msra.mxu0 %v1081
    %1963 = vmatprep.subr.bf16.mxu0 %v1086
    %1964 = vmatpush1.bf16.msra.mxu0 %v1085
    %1965 = vmatprep.subr.bf16.mxu0 0
    %1966 = vmatpush1.bf16.msra.mxu0 0
    %1967 = vmatprep.subr.bf16.mxu0 0
    %1968 = vmatpush1.bf16.msra.mxu0 0
    %1969 = vmatprep.subr.bf16.mxu0 0
    %1970 = vmatpush1.bf16.msra.mxu0 0
    %1971 = vmatprep.subr.bf16.mxu0 0
    %1972 = vmatpush1.bf16.msra.mxu0 0
    %1973 = vmatprep.subr.bf16.mxu0 0
    %1974 = vmatpush1.bf16.msra.mxu0 0
    %1975 = vmatprep.subr.bf16.mxu0 0
    %1976 = vmatpush1.bf16.msra.mxu0 0
    %1977 = vmatprep.subr.bf16.mxu0 0
    %1978 = vmatpush1.bf16.msra.mxu0 0
    %1979 = vmatprep.subr.bf16.mxu0 0
    %1980 = vmatpush1.bf16.msra.mxu0 0
    %1981 = vmatprep.mubr.bf16.mxu0 0
    %1982 = vmatmul.mubr.bf16.gmra.mrb[0].mxu0 %v1860
    %v1983 = vpop.f32.mrb[0].mxu0
    %v1984 = vadd.f32 0.0, %v1983
    %v1985 = vpop.f32.mrb[0].mxu0
    %v1986 = vadd.f32 0.0, %v1985
    %v1987 = vpop.f32.mrb[0].mxu0
    %v1988 = vpop.f32.mrb[0].mxu0
    %1989 = vdwg.mxu0
    %1990 = vmatprep.subr.bf16.mxu0 %v1060
    %1991 = vmatpush1.bf16.msra.mxu0 %v1059
    %1992 = vmatprep.subr.bf16.mxu0 %v1064
    %1993 = vmatpush1.bf16.msra.mxu0 %v1063
    %1994 = vmatprep.subr.bf16.mxu0 %v1068
    %1995 = vmatpush1.bf16.msra.mxu0 %v1067
    %1996 = vmatprep.subr.bf16.mxu0 %v1072
    %1997 = vmatpush1.bf16.msra.mxu0 %v1071
    %1998 = vmatprep.subr.bf16.mxu0 %v1076
    %1999 = vmatpush1.bf16.msra.mxu0 %v1075
    %2000 = vmatprep.subr.bf16.mxu0 %v1080
    %2001 = vmatpush1.bf16.msra.mxu0 %v1079
    %2002 = vmatprep.subr.bf16.mxu0 %v1084
    %2003 = vmatpush1.bf16.msra.mxu0 %v1083
    %2004 = vmatprep.subr.bf16.mxu0 %v1088
    %2005 = vmatpush1.bf16.msra.mxu0 %v1087
    %2006 = vmatprep.subr.bf16.mxu0 0
    %2007 = vmatpush1.bf16.msra.mxu0 0
    %2008 = vmatprep.subr.bf16.mxu0 0
    %2009 = vmatpush1.bf16.msra.mxu0 0
    %2010 = vmatprep.subr.bf16.mxu0 0
    %2011 = vmatpush1.bf16.msra.mxu0 0
    %2012 = vmatprep.subr.bf16.mxu0 0
    %2013 = vmatpush1.bf16.msra.mxu0 0
    %2014 = vmatprep.subr.bf16.mxu0 0
    %2015 = vmatpush1.bf16.msra.mxu0 0
    %2016 = vmatprep.subr.bf16.mxu0 0
    %2017 = vmatpush1.bf16.msra.mxu0 0
    %2018 = vmatprep.subr.bf16.mxu0 0
    %2019 = vmatpush1.bf16.msra.mxu0 0
    %2020 = vmatprep.subr.bf16.mxu0 0
    %2021 = vmatpush1.bf16.msra.mxu0 0
    %2022 = vmatprep.mubr.bf16.mxu0 0
    %2023 = vmatmul.mubr.bf16.gmra.mrb[0].mxu0 %v1860
    %v2024 = vpop.f32.mrb[0].mxu0
    %v2025 = vadd.f32 0.0, %v2024
    %v2026 = vpop.f32.mrb[0].mxu0
    %v2027 = vadd.f32 0.0, %v2026
    %v2028 = vpop.f32.mrb[0].mxu0
    %v2029 = vpop.f32.mrb[0].mxu0
    %2030 = vdwg.mxu0
    %v2031 = vadd.f32 %v1945, %v1984
    %v2032 = vadd.f32 %v1946, %v1986
    %v2033 = vadd.f32 %v1947, %v2025
    %v2034 = vadd.f32 %v1948, %v2027
    %v2035 = vxor.u32 %v1897, 2147483648
    %v2036 = vxor.u32 %v1899, 2147483648
    %v2037 = vxor.u32 %v1938, 2147483648
    %v2038 = vmul.f32 %v2035, 1.442695
    %v2039 = vpow.pop %v2038
    %v2040 = vmul.f32 %v2036, 1.442695
    %v2041 = vpow.pop %v2040
    %v2042 = vmul.f32 %v2037, 1.442695
    %v2043 = vpow.pop %v2042
    %v2044 = vadd.f32 %v2039, 1.0
    %v2045 = vadd.f32 %v2041, 1.0
    %v2046 = vadd.f32 %v2043, 1.0
    %v2047 = vrcp.pop %v2044
    %v2048 = vmul.f32 1.0, %v2047
    %v2049 = vrcp.pop %v2045
    %v2050 = vmul.f32 1.0, %v2049
    %v2051 = vrcp.pop %v2046
    %v2052 = vmul.f32 1.0, %v2051
    %v2053 = vtanh.pop %v1940
    %v2054 = vmul.f32 %v2050, %v1833
    %v2055 = vmul.f32 %v2048, %v2053
    %v2056 = vadd.f32 %v2054, %v2055
    %v2057 = vtanh.pop %v2056
    %v2058 = vmul.f32 %v2052, %v2057
    %v2059 = vxor.u32 %v2031, 2147483648
    %v2060 = vxor.u32 %v2032, 2147483648
    %v2061 = vxor.u32 %v2033, 2147483648
    %v2062 = vmul.f32 %v2059, 1.442695
    %v2063 = vpow.pop %v2062
    %v2064 = vmul.f32 %v2060, 1.442695
    %v2065 = vpow.pop %v2064
    %v2066 = vmul.f32 %v2061, 1.442695
    %v2067 = vpow.pop %v2066
    %v2068 = vadd.f32 %v2063, 1.0
    %v2069 = vadd.f32 %v2065, 1.0
    %v2070 = vadd.f32 %v2067, 1.0
    %v2071 = vrcp.pop %v2068
    %v2072 = vmul.f32 1.0, %v2071
    %v2073 = vrcp.pop %v2069
    %v2074 = vmul.f32 1.0, %v2073
    %v2075 = vrcp.pop %v2070
    %v2076 = vmul.f32 1.0, %v2075
    %v2077 = vtanh.pop %v2034
    %v2078 = vmul.f32 %v2074, %v1857
    %v2079 = vmul.f32 %v2072, %v2077
    %v2080 = vadd.f32 %v2078, %v2079
    %v2081 = vtanh.pop %v2080
    %v2082 = vmul.f32 %v2076, %v2081
    %v2083 = vpack.c.bf16 %v2082, %v2082
    %v2084 = vpack.c.bf16 %v2058, %v2058
    %2085 = vmatprep.subr.bf16.mxu0 %v1512
    %2086 = vmatpush1.bf16.msra.mxu0 %v1511
    %2087 = vmatprep.subr.bf16.mxu0 %v1516
    %2088 = vmatpush1.bf16.msra.mxu0 %v1515
    %2089 = vmatprep.subr.bf16.mxu0 %v1520
    %2090 = vmatpush1.bf16.msra.mxu0 %v1519
    %2091 = vmatprep.subr.bf16.mxu0 %v1524
    %2092 = vmatpush1.bf16.msra.mxu0 %v1523
    %2093 = vmatprep.subr.bf16.mxu0 %v1528
    %2094 = vmatpush1.bf16.msra.mxu0 %v1527
    %2095 = vmatprep.subr.bf16.mxu0 %v1532
    %2096 = vmatpush1.bf16.msra.mxu0 %v1531
    %2097 = vmatprep.subr.bf16.mxu0 %v1536
    %2098 = vmatpush1.bf16.msra.mxu0 %v1535
    %2099 = vmatprep.subr.bf16.mxu0 %v1540
    %2100 = vmatpush1.bf16.msra.mxu0 %v1539
    %2101 = vmatprep.subr.bf16.mxu0 %v1544
    %2102 = vmatpush1.bf16.msra.mxu0 %v1543
    %2103 = vmatprep.subr.bf16.mxu0 %v1548
    %2104 = vmatpush1.bf16.msra.mxu0 %v1547
    %2105 = vmatprep.subr.bf16.mxu0 %v1552
    %2106 = vmatpush1.bf16.msra.mxu0 %v1551
    %2107 = vmatprep.subr.bf16.mxu0 %v1556
    %2108 = vmatpush1.bf16.msra.mxu0 %v1555
    %2109 = vmatprep.subr.bf16.mxu0 %v1560
    %2110 = vmatpush1.bf16.msra.mxu0 %v1559
    %2111 = vmatprep.subr.bf16.mxu0 %v1564
    %2112 = vmatpush1.bf16.msra.mxu0 %v1563
    %2113 = vmatprep.subr.bf16.mxu0 %v1568
    %2114 = vmatpush1.bf16.msra.mxu0 %v1567
    %2115 = vmatprep.subr.bf16.mxu0 %v1572
    %2116 = vmatpush1.bf16.msra.mxu0 %v1571
    %2117 = vmatprep.mubr.bf16.mxu0 %v2084
    %2118 = vmatmul.mubr.bf16.gmra.mrb[0].mxu0 %v2083
    %v2119 = vpop.f32.mrb[0].mxu0
    %v2120 = vadd.f32 %v1302, %v2119
    %v2121 = vpop.f32.mrb[0].mxu0
    %v2122 = vadd.f32 %v1306, %v2121
    %v2123 = vpop.f32.mrb[0].mxu0
    %v2124 = vpop.f32.mrb[0].mxu0
    %2125 = vdwg.mxu0
    %2126 = vmatprep.subr.bf16.mxu0 %v1514
    %2127 = vmatpush1.bf16.msra.mxu0 %v1513
    %2128 = vmatprep.subr.bf16.mxu0 %v1518
    %2129 = vmatpush1.bf16.msra.mxu0 %v1517
    %2130 = vmatprep.subr.bf16.mxu0 %v1522
    %2131 = vmatpush1.bf16.msra.mxu0 %v1521
    %2132 = vmatprep.subr.bf16.mxu0 %v1526
    %2133 = vmatpush1.bf16.msra.mxu0 %v1525
    %2134 = vmatprep.subr.bf16.mxu0 %v1530
    %2135 = vmatpush1.bf16.msra.mxu0 %v1529
    %2136 = vmatprep.subr.bf16.mxu0 %v1534
    %2137 = vmatpush1.bf16.msra.mxu0 %v1533
    %2138 = vmatprep.subr.bf16.mxu0 %v1538
    %2139 = vmatpush1.bf16.msra.mxu0 %v1537
    %2140 = vmatprep.subr.bf16.mxu0 %v1542
    %2141 = vmatpush1.bf16.msra.mxu0 %v1541
    %2142 = vmatprep.subr.bf16.mxu0 %v1546
    %2143 = vmatpush1.bf16.msra.mxu0 %v1545
    %2144 = vmatprep.subr.bf16.mxu0 %v1550
    %2145 = vmatpush1.bf16.msra.mxu0 %v1549
    %2146 = vmatprep.subr.bf16.mxu0 %v1554
    %2147 = vmatpush1.bf16.msra.mxu0 %v1553
    %2148 = vmatprep.subr.bf16.mxu0 %v1558
    %2149 = vmatpush1.bf16.msra.mxu0 %v1557
    %2150 = vmatprep.subr.bf16.mxu0 %v1562
    %2151 = vmatpush1.bf16.msra.mxu0 %v1561
    %2152 = vmatprep.subr.bf16.mxu0 %v1566
    %2153 = vmatpush1.bf16.msra.mxu0 %v1565
    %2154 = vmatprep.subr.bf16.mxu0 %v1570
    %2155 = vmatpush1.bf16.msra.mxu0 %v1569
    %2156 = vmatprep.subr.bf16.mxu0 %v1574
    %2157 = vmatpush1.bf16.msra.mxu0 %v1573
    %2158 = vmatprep.mubr.bf16.mxu0 %v2084
    %2159 = vmatmul.mubr.bf16.gmra.mrb[0].mxu0 %v2083
    %v2160 = vpop.f32.mrb[0].mxu0
    %v2161 = vadd.f32 %v1310, %v2160
    %v2162 = vpop.f32.mrb[0].mxu0
    %v2163 = vadd.f32 %v1314, %v2162
    %v2164 = vpop.f32.mrb[0].mxu0
    %v2165 = vpop.f32.mrb[0].mxu0
    %2166 = vdwg.mxu0
    %s2167 = scalar_lea.vmem [#allocation2], 96
    %v2168 = vld [vmem:[%s2167] sm:$0xff]
    %v2169 = vld [vmem:[%s2167 + $0x8] sm:$0xff]
    %v2170 = vld [vmem:[%s2167 + $0x10] sm:$0xff]
    %v2171 = vld [vmem:[%s2167 + $0x18] sm:$0xff]
    %2172 = vmatprep.subr.bf16.mxu0 %v1058
    %2173 = vmatpush1.bf16.msra.mxu0 %v1057
    %2174 = vmatprep.subr.bf16.mxu0 %v1062
    %2175 = vmatpush1.bf16.msra.mxu0 %v1061
    %2176 = vmatprep.subr.bf16.mxu0 %v1066
    %2177 = vmatpush1.bf16.msra.mxu0 %v1065
    %2178 = vmatprep.subr.bf16.mxu0 %v1070
    %2179 = vmatpush1.bf16.msra.mxu0 %v1069
    %2180 = vmatprep.subr.bf16.mxu0 %v1074
    %2181 = vmatpush1.bf16.msra.mxu0 %v1073
    %2182 = vmatprep.subr.bf16.mxu0 %v1078
    %2183 = vmatpush1.bf16.msra.mxu0 %v1077
    %2184 = vmatprep.subr.bf16.mxu0 %v1082
    %2185 = vmatpush1.bf16.msra.mxu0 %v1081
    %2186 = vmatprep.subr.bf16.mxu0 %v1086
    %2187 = vmatpush1.bf16.msra.mxu0 %v1085
    %2188 = vmatprep.subr.bf16.mxu0 0
    %2189 = vmatpush1.bf16.msra.mxu0 0
    %2190 = vmatprep.subr.bf16.mxu0 0
    %2191 = vmatpush1.bf16.msra.mxu0 0
    %2192 = vmatprep.subr.bf16.mxu0 0
    %2193 = vmatpush1.bf16.msra.mxu0 0
    %2194 = vmatprep.subr.bf16.mxu0 0
    %2195 = vmatpush1.bf16.msra.mxu0 0
    %2196 = vmatprep.subr.bf16.mxu0 0
    %2197 = vmatpush1.bf16.msra.mxu0 0
    %2198 = vmatprep.subr.bf16.mxu0 0
    %2199 = vmatpush1.bf16.msra.mxu0 0
    %2200 = vmatprep.subr.bf16.mxu0 0
    %2201 = vmatpush1.bf16.msra.mxu0 0
    %2202 = vmatprep.subr.bf16.mxu0 0
    %2203 = vmatpush1.bf16.msra.mxu0 0
    %2204 = vmatprep.mubr.bf16.mxu0 0
    %2205 = vmatmul.mubr.bf16.gmra.mrb[0].mxu0 %v2083
    %v2206 = vpop.f32.mrb[0].mxu0
    %v2207 = vadd.f32 0.0, %v2206
    %v2208 = vpop.f32.mrb[0].mxu0
    %v2209 = vadd.f32 0.0, %v2208
    %v2210 = vpop.f32.mrb[0].mxu0
    %v2211 = vpop.f32.mrb[0].mxu0
    %2212 = vdwg.mxu0
    %2213 = vmatprep.subr.bf16.mxu0 %v1060
    %2214 = vmatpush1.bf16.msra.mxu0 %v1059
    %2215 = vmatprep.subr.bf16.mxu0 %v1064
    %2216 = vmatpush1.bf16.msra.mxu0 %v1063
    %2217 = vmatprep.subr.bf16.mxu0 %v1068
    %2218 = vmatpush1.bf16.msra.mxu0 %v1067
    %2219 = vmatprep.subr.bf16.mxu0 %v1072
    %2220 = vmatpush1.bf16.msra.mxu0 %v1071
    %2221 = vmatprep.subr.bf16.mxu0 %v1076
    %2222 = vmatpush1.bf16.msra.mxu0 %v1075
    %2223 = vmatprep.subr.bf16.mxu0 %v1080
    %2224 = vmatpush1.bf16.msra.mxu0 %v1079
    %2225 = vmatprep.subr.bf16.mxu0 %v1084
    %2226 = vmatpush1.bf16.msra.mxu0 %v1083
    %2227 = vmatprep.subr.bf16.mxu0 %v1088
    %2228 = vmatpush1.bf16.msra.mxu0 %v1087
    %2229 = vmatprep.subr.bf16.mxu0 0
    %2230 = vmatpush1.bf16.msra.mxu0 0
    %2231 = vmatprep.subr.bf16.mxu0 0
    %2232 = vmatpush1.bf16.msra.mxu0 0
    %2233 = vmatprep.subr.bf16.mxu0 0
    %2234 = vmatpush1.bf16.msra.mxu0 0
    %2235 = vmatprep.subr.bf16.mxu0 0
    %2236 = vmatpush1.bf16.msra.mxu0 0
    %2237 = vmatprep.subr.bf16.mxu0 0
    %2238 = vmatpush1.bf16.msra.mxu0 0
    %2239 = vmatprep.subr.bf16.mxu0 0
    %2240 = vmatpush1.bf16.msra.mxu0 0
    %2241 = vmatprep.subr.bf16.mxu0 0
    %2242 = vmatpush1.bf16.msra.mxu0 0
    %2243 = vmatprep.subr.bf16.mxu0 0
    %2244 = vmatpush1.bf16.msra.mxu0 0
    %2245 = vmatprep.mubr.bf16.mxu0 0
    %2246 = vmatmul.mubr.bf16.gmra.mrb[0].mxu0 %v2083
    %v2247 = vpop.f32.mrb[0].mxu0
    %v2248 = vadd.f32 0.0, %v2247
    %v2249 = vpop.f32.mrb[0].mxu0
    %v2250 = vadd.f32 0.0, %v2249
    %v2251 = vpop.f32.mrb[0].mxu0
    %v2252 = vpop.f32.mrb[0].mxu0
    %2253 = vdwg.mxu0
    %v2254 = vadd.f32 %v2168, %v2207
    %v2255 = vadd.f32 %v2169, %v2209
    %v2256 = vadd.f32 %v2170, %v2248
    %v2257 = vadd.f32 %v2171, %v2250
    %v2258 = vxor.u32 %v2120, 2147483648
    %v2259 = vxor.u32 %v2122, 2147483648
    %v2260 = vxor.u32 %v2161, 2147483648
    %v2261 = vmul.f32 %v2258, 1.442695
    %v2262 = vpow.pop %v2261
    %v2263 = vmul.f32 %v2259, 1.442695
    %v2264 = vpow.pop %v2263
    %v2265 = vmul.f32 %v2260, 1.442695
    %v2266 = vpow.pop %v2265
    %v2267 = vadd.f32 %v2262, 1.0
    %v2268 = vadd.f32 %v2264, 1.0
    %v2269 = vadd.f32 %v2266, 1.0
    %v2270 = vrcp.pop %v2267
    %v2271 = vmul.f32 1.0, %v2270
    %v2272 = vrcp.pop %v2268
    %v2273 = vmul.f32 1.0, %v2272
    %v2274 = vrcp.pop %v2269
    %v2275 = vmul.f32 1.0, %v2274
    %v2276 = vtanh.pop %v2163
    %v2277 = vmul.f32 %v2273, %v2056
    %v2278 = vmul.f32 %v2271, %v2276
    %v2279 = vadd.f32 %v2277, %v2278
    %v2280 = vtanh.pop %v2279
    %v2281 = vmul.f32 %v2275, %v2280
    %v2282 = vxor.u32 %v2254, 2147483648
    %v2283 = vxor.u32 %v2255, 2147483648
    %v2284 = vxor.u32 %v2256, 2147483648
    %v2285 = vmul.f32 %v2282, 1.442695
    %v2286 = vpow.pop %v2285
    %v2287 = vmul.f32 %v2283, 1.442695
    %v2288 = vpow.pop %v2287
    %v2289 = vmul.f32 %v2284, 1.442695
    %v2290 = vpow.pop %v2289
    %v2291 = vadd.f32 %v2286, 1.0
    %v2292 = vadd.f32 %v2288, 1.0
    %v2293 = vadd.f32 %v2290, 1.0
    %v2294 = vrcp.pop %v2291
    %v2295 = vmul.f32 1.0, %v2294
    %v2296 = vrcp.pop %v2292
    %v2297 = vmul.f32 1.0, %v2296
    %v2298 = vrcp.pop %v2293
    %v2299 = vmul.f32 1.0, %v2298
    %v2300 = vtanh.pop %v2257
    %v2301 = vmul.f32 %v2297, %v2080
    %v2302 = vmul.f32 %v2295, %v2300
    %v2303 = vadd.f32 %v2301, %v2302
    %v2304 = vtanh.pop %v2303
    %v2305 = vmul.f32 %v2299, %v2304
    %v2306 = vpack.c.bf16 %v2305, %v2305
    %v2307 = vpack.c.bf16 %v2281, %v2281
    %2308 = vmatprep.subr.bf16.mxu0 %v1512
    %2309 = vmatpush1.bf16.msra.mxu0 %v1511
    %2310 = vmatprep.subr.bf16.mxu0 %v1516
    %2311 = vmatpush1.bf16.msra.mxu0 %v1515
    %2312 = vmatprep.subr.bf16.mxu0 %v1520
    %2313 = vmatpush1.bf16.msra.mxu0 %v1519
    %2314 = vmatprep.subr.bf16.mxu0 %v1524
    %2315 = vmatpush1.bf16.msra.mxu0 %v1523
    %2316 = vmatprep.subr.bf16.mxu0 %v1528
    %2317 = vmatpush1.bf16.msra.mxu0 %v1527
    %2318 = vmatprep.subr.bf16.mxu0 %v1532
    %2319 = vmatpush1.bf16.msra.mxu0 %v1531
    %2320 = vmatprep.subr.bf16.mxu0 %v1536
    %2321 = vmatpush1.bf16.msra.mxu0 %v1535
    %2322 = vmatprep.subr.bf16.mxu0 %v1540
    %2323 = vmatpush1.bf16.msra.mxu0 %v1539
    %2324 = vmatprep.subr.bf16.mxu0 %v1544
    %2325 = vmatpush1.bf16.msra.mxu0 %v1543
    %2326 = vmatprep.subr.bf16.mxu0 %v1548
    %2327 = vmatpush1.bf16.msra.mxu0 %v1547
    %2328 = vmatprep.subr.bf16.mxu0 %v1552
    %2329 = vmatpush1.bf16.msra.mxu0 %v1551
    %2330 = vmatprep.subr.bf16.mxu0 %v1556
    %2331 = vmatpush1.bf16.msra.mxu0 %v1555
    %2332 = vmatprep.subr.bf16.mxu0 %v1560
    %2333 = vmatpush1.bf16.msra.mxu0 %v1559
    %2334 = vmatprep.subr.bf16.mxu0 %v1564
    %2335 = vmatpush1.bf16.msra.mxu0 %v1563
    %2336 = vmatprep.subr.bf16.mxu0 %v1568
    %2337 = vmatpush1.bf16.msra.mxu0 %v1567
    %2338 = vmatprep.subr.bf16.mxu0 %v1572
    %2339 = vmatpush1.bf16.msra.mxu0 %v1571
    %2340 = vmatprep.mubr.bf16.mxu0 %v2307
    %2341 = vmatmul.mubr.bf16.gmra.mrb[0].mxu0 %v2306
    %v2342 = vpop.f32.mrb[0].mxu0
    %v2343 = vadd.f32 %v1302, %v2342
    %v2344 = vpop.f32.mrb[0].mxu0
    %v2345 = vadd.f32 %v1306, %v2344
    %v2346 = vpop.f32.mrb[0].mxu0
    %v2347 = vpop.f32.mrb[0].mxu0
    %2348 = vdwg.mxu0
    %2349 = vmatprep.subr.bf16.mxu0 %v1514
    %2350 = vmatpush1.bf16.msra.mxu0 %v1513
    %2351 = vmatprep.subr.bf16.mxu0 %v1518
    %2352 = vmatpush1.bf16.msra.mxu0 %v1517
    %2353 = vmatprep.subr.bf16.mxu0 %v1522
    %2354 = vmatpush1.bf16.msra.mxu0 %v1521
    %2355 = vmatprep.subr.bf16.mxu0 %v1526
    %2356 = vmatpush1.bf16.msra.mxu0 %v1525
    %2357 = vmatprep.subr.bf16.mxu0 %v1530
    %2358 = vmatpush1.bf16.msra.mxu0 %v1529
    %2359 = vmatprep.subr.bf16.mxu0 %v1534
    %2360 = vmatpush1.bf16.msra.mxu0 %v1533
    %2361 = vmatprep.subr.bf16.mxu0 %v1538
    %2362 = vmatpush1.bf16.msra.mxu0 %v1537
    %2363 = vmatprep.subr.bf16.mxu0 %v1542
    %2364 = vmatpush1.bf16.msra.mxu0 %v1541
    %2365 = vmatprep.subr.bf16.mxu0 %v1546
    %2366 = vmatpush1.bf16.msra.mxu0 %v1545
    %2367 = vmatprep.subr.bf16.mxu0 %v1550
    %2368 = vmatpush1.bf16.msra.mxu0 %v1549
    %2369 = vmatprep.subr.bf16.mxu0 %v1554
    %2370 = vmatpush1.bf16.msra.mxu0 %v1553
    %2371 = vmatprep.subr.bf16.mxu0 %v1558
    %2372 = vmatpush1.bf16.msra.mxu0 %v1557
    %2373 = vmatprep.subr.bf16.mxu0 %v1562
    %2374 = vmatpush1.bf16.msra.mxu0 %v1561
    %2375 = vmatprep.subr.bf16.mxu0 %v1566
    %2376 = vmatpush1.bf16.msra.mxu0 %v1565
    %2377 = vmatprep.subr.bf16.mxu0 %v1570
    %2378 = vmatpush1.bf16.msra.mxu0 %v1569
    %2379 = vmatprep.subr.bf16.mxu0 %v1574
    %2380 = vmatpush1.bf16.msra.mxu0 %v1573
    %2381 = vmatprep.mubr.bf16.mxu0 %v2307
    %2382 = vmatmul.mubr.bf16.gmra.mrb[0].mxu0 %v2306
    %v2383 = vpop.f32.mrb[0].mxu0
    %v2384 = vadd.f32 %v1310, %v2383
    %v2385 = vpop.f32.mrb[0].mxu0
    %v2386 = vadd.f32 %v1314, %v2385
    %v2387 = vpop.f32.mrb[0].mxu0
    %v2388 = vpop.f32.mrb[0].mxu0
    %2389 = vdwg.mxu0
    %s2390 = scalar_lea.vmem [#allocation2], 128
    %v2391 = vld [vmem:[%s2390] sm:$0xff]
    %v2392 = vld [vmem:[%s2390 + $0x8] sm:$0xff]
    %v2393 = vld [vmem:[%s2390 + $0x10] sm:$0xff]
    %v2394 = vld [vmem:[%s2390 + $0x18] sm:$0xff]
    %2395 = vmatprep.subr.bf16.mxu0 %v1058
    %2396 = vmatpush1.bf16.msra.mxu0 %v1057
    %2397 = vmatprep.subr.bf16.mxu0 %v1062
    %2398 = vmatpush1.bf16.msra.mxu0 %v1061
    %2399 = vmatprep.subr.bf16.mxu0 %v1066
    %2400 = vmatpush1.bf16.msra.mxu0 %v1065
    %2401 = vmatprep.subr.bf16.mxu0 %v1070
    %2402 = vmatpush1.bf16.msra.mxu0 %v1069
    %2403 = vmatprep.subr.bf16.mxu0 %v1074
    %2404 = vmatpush1.bf16.msra.mxu0 %v1073
    %2405 = vmatprep.subr.bf16.mxu0 %v1078
    %2406 = vmatpush1.bf16.msra.mxu0 %v1077
    %2407 = vmatprep.subr.bf16.mxu0 %v1082
    %2408 = vmatpush1.bf16.msra.mxu0 %v1081
    %2409 = vmatprep.subr.bf16.mxu0 %v1086
    %2410 = vmatpush1.bf16.msra.mxu0 %v1085
    %2411 = vmatprep.subr.bf16.mxu0 0
    %2412 = vmatpush1.bf16.msra.mxu0 0
    %2413 = vmatprep.subr.bf16.mxu0 0
    %2414 = vmatpush1.bf16.msra.mxu0 0
    %2415 = vmatprep.subr.bf16.mxu0 0
    %2416 = vmatpush1.bf16.msra.mxu0 0
    %2417 = vmatprep.subr.bf16.mxu0 0
    %2418 = vmatpush1.bf16.msra.mxu0 0
    %2419 = vmatprep.subr.bf16.mxu0 0
    %2420 = vmatpush1.bf16.msra.mxu0 0
    %2421 = vmatprep.subr.bf16.mxu0 0
    %2422 = vmatpush1.bf16.msra.mxu0 0
    %2423 = vmatprep.subr.bf16.mxu0 0
    %2424 = vmatpush1.bf16.msra.mxu0 0
    %2425 = vmatprep.subr.bf16.mxu0 0
    %2426 = vmatpush1.bf16.msra.mxu0 0
    %2427 = vmatprep.mubr.bf16.mxu0 0
    %2428 = vmatmul.mubr.bf16.gmra.mrb[0].mxu0 %v2306
    %v2429 = vpop.f32.mrb[0].mxu0
    %v2430 = vadd.f32 0.0, %v2429
    %v2431 = vpop.f32.mrb[0].mxu0
    %v2432 = vadd.f32 0.0, %v2431
    %v2433 = vpop.f32.mrb[0].mxu0
    %v2434 = vpop.f32.mrb[0].mxu0
    %2435 = vdwg.mxu0
    %2436 = vmatprep.subr.bf16.mxu0 %v1060
    %2437 = vmatpush1.bf16.msra.mxu0 %v1059
    %2438 = vmatprep.subr.bf16.mxu0 %v1064
    %2439 = vmatpush1.bf16.msra.mxu0 %v1063
    %2440 = vmatprep.subr.bf16.mxu0 %v1068
    %2441 = vmatpush1.bf16.msra.mxu0 %v1067
    %2442 = vmatprep.subr.bf16.mxu0 %v1072
    %2443 = vmatpush1.bf16.msra.mxu0 %v1071
    %2444 = vmatprep.subr.bf16.mxu0 %v1076
    %2445 = vmatpush1.bf16.msra.mxu0 %v1075
    %2446 = vmatprep.subr.bf16.mxu0 %v1080
    %2447 = vmatpush1.bf16.msra.mxu0 %v1079
    %2448 = vmatprep.subr.bf16.mxu0 %v1084
    %2449 = vmatpush1.bf16.msra.mxu0 %v1083
    %2450 = vmatprep.subr.bf16.mxu0 %v1088
    %2451 = vmatpush1.bf16.msra.mxu0 %v1087
    %2452 = vmatprep.subr.bf16.mxu0 0
    %2453 = vmatpush1.bf16.msra.mxu0 0
    %2454 = vmatprep.subr.bf16.mxu0 0
    %2455 = vmatpush1.bf16.msra.mxu0 0
    %2456 = vmatprep.subr.bf16.mxu0 0
    %2457 = vmatpush1.bf16.msra.mxu0 0
    %2458 = vmatprep.subr.bf16.mxu0 0
    %2459 = vmatpush1.bf16.msra.mxu0 0
    %2460 = vmatprep.subr.bf16.mxu0 0
    %2461 = vmatpush1.bf16.msra.mxu0 0
    %2462 = vmatprep.subr.bf16.mxu0 0
    %2463 = vmatpush1.bf16.msra.mxu0 0
    %2464 = vmatprep.subr.bf16.mxu0 0
    %2465 = vmatpush1.bf16.msra.mxu0 0
    %2466 = vmatprep.subr.bf16.mxu0 0
    %2467 = vmatpush1.bf16.msra.mxu0 0
    %2468 = vmatprep.mubr.bf16.mxu0 0
    %2469 = vmatmul.mubr.bf16.gmra.mrb[0].mxu0 %v2306
    %v2470 = vpop.f32.mrb[0].mxu0
    %v2471 = vadd.f32 0.0, %v2470
    %v2472 = vpop.f32.mrb[0].mxu0
    %v2473 = vadd.f32 0.0, %v2472
    %v2474 = vpop.f32.mrb[0].mxu0
    %v2475 = vpop.f32.mrb[0].mxu0
    %2476 = vdwg.mxu0
    %v2477 = vadd.f32 %v2391, %v2430
    %v2478 = vadd.f32 %v2392, %v2432
    %v2479 = vadd.f32 %v2393, %v2471
    %v2480 = vadd.f32 %v2394, %v2473
    %v2481 = vxor.u32 %v2343, 2147483648
    %v2482 = vxor.u32 %v2345, 2147483648
    %v2483 = vxor.u32 %v2384, 2147483648
    %v2484 = vmul.f32 %v2481, 1.442695
    %v2485 = vpow.pop %v2484
    %v2486 = vmul.f32 %v2482, 1.442695
    %v2487 = vpow.pop %v2486
    %v2488 = vmul.f32 %v2483, 1.442695
    %v2489 = vpow.pop %v2488
    %v2490 = vadd.f32 %v2485, 1.0
    %v2491 = vadd.f32 %v2487, 1.0
    %v2492 = vadd.f32 %v2489, 1.0
    %v2493 = vrcp.pop %v2490
    %v2494 = vmul.f32 1.0, %v2493
    %v2495 = vrcp.pop %v2491
    %v2496 = vmul.f32 1.0, %v2495
    %v2497 = vrcp.pop %v2492
    %v2498 = vmul.f32 1.0, %v2497
    %v2499 = vtanh.pop %v2386
    %v2500 = vmul.f32 %v2496, %v2279
    %v2501 = vmul.f32 %v2494, %v2499
    %v2502 = vadd.f32 %v2500, %v2501
    %v2503 = vtanh.pop %v2502
    %v2504 = vmul.f32 %v2498, %v2503
    %v2505 = vxor.u32 %v2477, 2147483648
    %v2506 = vxor.u32 %v2478, 2147483648
    %v2507 = vxor.u32 %v2479, 2147483648
    %v2508 = vmul.f32 %v2505, 1.442695
    %v2509 = vpow.pop %v2508
    %v2510 = vmul.f32 %v2506, 1.442695
    %v2511 = vpow.pop %v2510
    %v2512 = vmul.f32 %v2507, 1.442695
    %v2513 = vpow.pop %v2512
    %v2514 = vadd.f32 %v2509, 1.0
    %v2515 = vadd.f32 %v2511, 1.0
    %v2516 = vadd.f32 %v2513, 1.0
    %v2517 = vrcp.pop %v2514
    %v2518 = vmul.f32 1.0, %v2517
    %v2519 = vrcp.pop %v2515
    %v2520 = vmul.f32 1.0, %v2519
    %v2521 = vrcp.pop %v2516
    %v2522 = vmul.f32 1.0, %v2521
    %v2523 = vtanh.pop %v2480
    %v2524 = vmul.f32 %v2520, %v2303
    %v2525 = vmul.f32 %v2518, %v2523
    %v2526 = vadd.f32 %v2524, %v2525
    %v2527 = vtanh.pop %v2526
    %v2528 = vmul.f32 %v2522, %v2527
    %v2529 = vpack.c.bf16 %v2528, %v2528
    %v2530 = vpack.c.bf16 %v2504, %v2504
    %2531 = vmatprep.subr.bf16.mxu0 %v1512
    %2532 = vmatpush1.bf16.msra.mxu0 %v1511
    %2533 = vmatprep.subr.bf16.mxu0 %v1516
    %2534 = vmatpush1.bf16.msra.mxu0 %v1515
    %2535 = vmatprep.subr.bf16.mxu0 %v1520
    %2536 = vmatpush1.bf16.msra.mxu0 %v1519
    %2537 = vmatprep.subr.bf16.mxu0 %v1524
    %2538 = vmatpush1.bf16.msra.mxu0 %v1523
    %2539 = vmatprep.subr.bf16.mxu0 %v1528
    %2540 = vmatpush1.bf16.msra.mxu0 %v1527
    %2541 = vmatprep.subr.bf16.mxu0 %v1532
    %2542 = vmatpush1.bf16.msra.mxu0 %v1531
    %2543 = vmatprep.subr.bf16.mxu0 %v1536
    %2544 = vmatpush1.bf16.msra.mxu0 %v1535
    %2545 = vmatprep.subr.bf16.mxu0 %v1540
    %2546 = vmatpush1.bf16.msra.mxu0 %v1539
    %2547 = vmatprep.subr.bf16.mxu0 %v1544
    %2548 = vmatpush1.bf16.msra.mxu0 %v1543
    %2549 = vmatprep.subr.bf16.mxu0 %v1548
    %2550 = vmatpush1.bf16.msra.mxu0 %v1547
    %2551 = vmatprep.subr.bf16.mxu0 %v1552
    %2552 = vmatpush1.bf16.msra.mxu0 %v1551
    %2553 = vmatprep.subr.bf16.mxu0 %v1556
    %2554 = vmatpush1.bf16.msra.mxu0 %v1555
    %2555 = vmatprep.subr.bf16.mxu0 %v1560
    %2556 = vmatpush1.bf16.msra.mxu0 %v1559
    %2557 = vmatprep.subr.bf16.mxu0 %v1564
    %2558 = vmatpush1.bf16.msra.mxu0 %v1563
    %2559 = vmatprep.subr.bf16.mxu0 %v1568
    %2560 = vmatpush1.bf16.msra.mxu0 %v1567
    %2561 = vmatprep.subr.bf16.mxu0 %v1572
    %2562 = vmatpush1.bf16.msra.mxu0 %v1571
    %2563 = vmatprep.mubr.bf16.mxu0 %v2530
    %2564 = vmatmul.mubr.bf16.gmra.mrb[0].mxu0 %v2529
    %v2565 = vpop.f32.mrb[0].mxu0
    %v2566 = vadd.f32 %v1302, %v2565
    %v2567 = vpop.f32.mrb[0].mxu0
    %v2568 = vadd.f32 %v1306, %v2567
    %v2569 = vpop.f32.mrb[0].mxu0
    %v2570 = vpop.f32.mrb[0].mxu0
    %2571 = vdwg.mxu0
    %2572 = vmatprep.subr.bf16.mxu0 %v1514
    %2573 = vmatpush1.bf16.msra.mxu0 %v1513
    %2574 = vmatprep.subr.bf16.mxu0 %v1518
    %2575 = vmatpush1.bf16.msra.mxu0 %v1517
    %2576 = vmatprep.subr.bf16.mxu0 %v1522
    %2577 = vmatpush1.bf16.msra.mxu0 %v1521
    %2578 = vmatprep.subr.bf16.mxu0 %v1526
    %2579 = vmatpush1.bf16.msra.mxu0 %v1525
    %2580 = vmatprep.subr.bf16.mxu0 %v1530
    %2581 = vmatpush1.bf16.msra.mxu0 %v1529
    %2582 = vmatprep.subr.bf16.mxu0 %v1534
    %2583 = vmatpush1.bf16.msra.mxu0 %v1533
    %2584 = vmatprep.subr.bf16.mxu0 %v1538
    %2585 = vmatpush1.bf16.msra.mxu0 %v1537
    %2586 = vmatprep.subr.bf16.mxu0 %v1542
    %2587 = vmatpush1.bf16.msra.mxu0 %v1541
    %2588 = vmatprep.subr.bf16.mxu0 %v1546
    %2589 = vmatpush1.bf16.msra.mxu0 %v1545
    %2590 = vmatprep.subr.bf16.mxu0 %v1550
    %2591 = vmatpush1.bf16.msra.mxu0 %v1549
    %2592 = vmatprep.subr.bf16.mxu0 %v1554
    %2593 = vmatpush1.bf16.msra.mxu0 %v1553
    %2594 = vmatprep.subr.bf16.mxu0 %v1558
    %2595 = vmatpush1.bf16.msra.mxu0 %v1557
    %2596 = vmatprep.subr.bf16.mxu0 %v1562
    %2597 = vmatpush1.bf16.msra.mxu0 %v1561
    %2598 = vmatprep.subr.bf16.mxu0 %v1566
    %2599 = vmatpush1.bf16.msra.mxu0 %v1565
    %2600 = vmatprep.subr.bf16.mxu0 %v1570
    %2601 = vmatpush1.bf16.msra.mxu0 %v1569
    %2602 = vmatprep.subr.bf16.mxu0 %v1574
    %2603 = vmatpush1.bf16.msra.mxu0 %v1573
    %2604 = vmatprep.mubr.bf16.mxu0 %v2530
    %2605 = vmatmul.mubr.bf16.gmra.mrb[0].mxu0 %v2529
    %v2606 = vpop.f32.mrb[0].mxu0
    %v2607 = vadd.f32 %v1310, %v2606
    %v2608 = vpop.f32.mrb[0].mxu0
    %v2609 = vadd.f32 %v1314, %v2608
    %v2610 = vpop.f32.mrb[0].mxu0
    %v2611 = vpop.f32.mrb[0].mxu0
    %2612 = vdwg.mxu0
    %s2613 = scalar_lea.vmem [#allocation2], 160
    %v2614 = vld [vmem:[%s2613] sm:$0xff]
    %v2615 = vld [vmem:[%s2613 + $0x8] sm:$0xff]
    %v2616 = vld [vmem:[%s2613 + $0x10] sm:$0xff]
    %v2617 = vld [vmem:[%s2613 + $0x18] sm:$0xff]
    %2618 = vmatprep.subr.bf16.mxu0 %v1058
    %2619 = vmatpush1.bf16.msra.mxu0 %v1057
    %2620 = vmatprep.subr.bf16.mxu0 %v1062
    %2621 = vmatpush1.bf16.msra.mxu0 %v1061
    %2622 = vmatprep.subr.bf16.mxu0 %v1066
    %2623 = vmatpush1.bf16.msra.mxu0 %v1065
    %2624 = vmatprep.subr.bf16.mxu0 %v1070
    %2625 = vmatpush1.bf16.msra.mxu0 %v1069
    %2626 = vmatprep.subr.bf16.mxu0 %v1074
    %2627 = vmatpush1.bf16.msra.mxu0 %v1073
    %2628 = vmatprep.subr.bf16.mxu0 %v1078
    %2629 = vmatpush1.bf16.msra.mxu0 %v1077
    %2630 = vmatprep.subr.bf16.mxu0 %v1082
    %2631 = vmatpush1.bf16.msra.mxu0 %v1081
    %2632 = vmatprep.subr.bf16.mxu0 %v1086
    %2633 = vmatpush1.bf16.msra.mxu0 %v1085
    %2634 = vmatprep.subr.bf16.mxu0 0
    %2635 = vmatpush1.bf16.msra.mxu0 0
    %2636 = vmatprep.subr.bf16.mxu0 0
    %2637 = vmatpush1.bf16.msra.mxu0 0
    %2638 = vmatprep.subr.bf16.mxu0 0
    %2639 = vmatpush1.bf16.msra.mxu0 0
    %2640 = vmatprep.subr.bf16.mxu0 0
    %2641 = vmatpush1.bf16.msra.mxu0 0
    %2642 = vmatprep.subr.bf16.mxu0 0
    %2643 = vmatpush1.bf16.msra.mxu0 0
    %2644 = vmatprep.subr.bf16.mxu0 0
    %2645 = vmatpush1.bf16.msra.mxu0 0
    %2646 = vmatprep.subr.bf16.mxu0 0
    %2647 = vmatpush1.bf16.msra.mxu0 0
    %2648 = vmatprep.subr.bf16.mxu0 0
    %2649 = vmatpush1.bf16.msra.mxu0 0
    %2650 = vmatprep.mubr.bf16.mxu0 0
    %2651 = vmatmul.mubr.bf16.gmra.mrb[0].mxu0 %v2529
    %v2652 = vpop.f32.mrb[0].mxu0
    %v2653 = vadd.f32 0.0, %v2652
    %v2654 = vpop.f32.mrb[0].mxu0
    %v2655 = vadd.f32 0.0, %v2654
    %v2656 = vpop.f32.mrb[0].mxu0
    %v2657 = vpop.f32.mrb[0].mxu0
    %2658 = vdwg.mxu0
    %2659 = vmatprep.subr.bf16.mxu0 %v1060
    %2660 = vmatpush1.bf16.msra.mxu0 %v1059
    %2661 = vmatprep.subr.bf16.mxu0 %v1064
    %2662 = vmatpush1.bf16.msra.mxu0 %v1063
    %2663 = vmatprep.subr.bf16.mxu0 %v1068
    %2664 = vmatpush1.bf16.msra.mxu0 %v1067
    %2665 = vmatprep.subr.bf16.mxu0 %v1072
    %2666 = vmatpush1.bf16.msra.mxu0 %v1071
    %2667 = vmatprep.subr.bf16.mxu0 %v1076
    %2668 = vmatpush1.bf16.msra.mxu0 %v1075
    %2669 = vmatprep.subr.bf16.mxu0 %v1080
    %2670 = vmatpush1.bf16.msra.mxu0 %v1079
    %2671 = vmatprep.subr.bf16.mxu0 %v1084
    %2672 = vmatpush1.bf16.msra.mxu0 %v1083
    %2673 = vmatprep.subr.bf16.mxu0 %v1088
    %2674 = vmatpush1.bf16.msra.mxu0 %v1087
    %2675 = vmatprep.subr.bf16.mxu0 0
    %2676 = vmatpush1.bf16.msra.mxu0 0
    %2677 = vmatprep.subr.bf16.mxu0 0
    %2678 = vmatpush1.bf16.msra.mxu0 0
    %2679 = vmatprep.subr.bf16.mxu0 0
    %2680 = vmatpush1.bf16.msra.mxu0 0
    %2681 = vmatprep.subr.bf16.mxu0 0
    %2682 = vmatpush1.bf16.msra.mxu0 0
    %2683 = vmatprep.subr.bf16.mxu0 0
    %2684 = vmatpush1.bf16.msra.mxu0 0
    %2685 = vmatprep.subr.bf16.mxu0 0
    %2686 = vmatpush1.bf16.msra.mxu0 0
    %2687 = vmatprep.subr.bf16.mxu0 0
    %2688 = vmatpush1.bf16.msra.mxu0 0
    %2689 = vmatprep.subr.bf16.mxu0 0
    %2690 = vmatpush1.bf16.msra.mxu0 0
    %2691 = vmatprep.mubr.bf16.mxu0 0
    %2692 = vmatmul.mubr.bf16.gmra.mrb[0].mxu0 %v2529
    %v2693 = vpop.f32.mrb[0].mxu0
    %v2694 = vadd.f32 0.0, %v2693
    %v2695 = vpop.f32.mrb[0].mxu0
    %v2696 = vadd.f32 0.0, %v2695
    %v2697 = vpop.f32.mrb[0].mxu0
    %v2698 = vpop.f32.mrb[0].mxu0
    %2699 = vdwg.mxu0
    %v2700 = vadd.f32 %v2614, %v2653
    %v2701 = vadd.f32 %v2615, %v2655
    %v2702 = vadd.f32 %v2616, %v2694
    %v2703 = vadd.f32 %v2617, %v2696
    %v2704 = vxor.u32 %v2566, 2147483648
    %v2705 = vxor.u32 %v2568, 2147483648
    %v2706 = vxor.u32 %v2607, 2147483648
    %v2707 = vmul.f32 %v2704, 1.442695
    %v2708 = vpow.pop %v2707
    %v2709 = vmul.f32 %v2705, 1.442695
    %v2710 = vpow.pop %v2709
    %v2711 = vmul.f32 %v2706, 1.442695
    %v2712 = vpow.pop %v2711
    %v2713 = vadd.f32 %v2708, 1.0
    %v2714 = vadd.f32 %v2710, 1.0
    %v2715 = vadd.f32 %v2712, 1.0
    %v2716 = vrcp.pop %v2713
    %v2717 = vmul.f32 1.0, %v2716
    %v2718 = vrcp.pop %v2714
    %v2719 = vmul.f32 1.0, %v2718
    %v2720 = vrcp.pop %v2715
    %v2721 = vmul.f32 1.0, %v2720
    %v2722 = vtanh.pop %v2609
    %v2723 = vmul.f32 %v2719, %v2502
    %v2724 = vmul.f32 %v2717, %v2722
    %v2725 = vadd.f32 %v2723, %v2724
    %v2726 = vtanh.pop %v2725
    %v2727 = vmul.f32 %v2721, %v2726
    %v2728 = vxor.u32 %v2700, 2147483648
    %v2729 = vxor.u32 %v2701, 2147483648
    %v2730 = vxor.u32 %v2702, 2147483648
    %v2731 = vmul.f32 %v2728, 1.442695
    %v2732 = vpow.pop %v2731
    %v2733 = vmul.f32 %v2729, 1.442695
    %v2734 = vpow.pop %v2733
    %v2735 = vmul.f32 %v2730, 1.442695
    %v2736 = vpow.pop %v2735
    %v2737 = vadd.f32 %v2732, 1.0
    %v2738 = vadd.f32 %v2734, 1.0
    %v2739 = vadd.f32 %v2736, 1.0
    %v2740 = vrcp.pop %v2737
    %v2741 = vmul.f32 1.0, %v2740
    %v2742 = vrcp.pop %v2738
    %v2743 = vmul.f32 1.0, %v2742
    %v2744 = vrcp.pop %v2739
    %v2745 = vmul.f32 1.0, %v2744
    %v2746 = vtanh.pop %v2703
    %v2747 = vmul.f32 %v2743, %v2526
    %v2748 = vmul.f32 %v2741, %v2746
    %v2749 = vadd.f32 %v2747, %v2748
    %v2750 = vtanh.pop %v2749
    %v2751 = vmul.f32 %v2745, %v2750
    %v2752 = vpack.c.bf16 %v2751, %v2751
    %v2753 = vpack.c.bf16 %v2727, %v2727
    %2754 = vmatprep.subr.bf16.mxu0 %v1512
    %2755 = vmatpush1.bf16.msra.mxu0 %v1511
    %2756 = vmatprep.subr.bf16.mxu0 %v1516
    %2757 = vmatpush1.bf16.msra.mxu0 %v1515
    %2758 = vmatprep.subr.bf16.mxu0 %v1520
    %2759 = vmatpush1.bf16.msra.mxu0 %v1519
    %2760 = vmatprep.subr.bf16.mxu0 %v1524
    %2761 = vmatpush1.bf16.msra.mxu0 %v1523
    %2762 = vmatprep.subr.bf16.mxu0 %v1528
    %2763 = vmatpush1.bf16.msra.mxu0 %v1527
    %2764 = vmatprep.subr.bf16.mxu0 %v1532
    %2765 = vmatpush1.bf16.msra.mxu0 %v1531
    %2766 = vmatprep.subr.bf16.mxu0 %v1536
    %2767 = vmatpush1.bf16.msra.mxu0 %v1535
    %2768 = vmatprep.subr.bf16.mxu0 %v1540
    %2769 = vmatpush1.bf16.msra.mxu0 %v1539
    %2770 = vmatprep.subr.bf16.mxu0 %v1544
    %2771 = vmatpush1.bf16.msra.mxu0 %v1543
    %2772 = vmatprep.subr.bf16.mxu0 %v1548
    %2773 = vmatpush1.bf16.msra.mxu0 %v1547
    %2774 = vmatprep.subr.bf16.mxu0 %v1552
    %2775 = vmatpush1.bf16.msra.mxu0 %v1551
    %2776 = vmatprep.subr.bf16.mxu0 %v1556
    %2777 = vmatpush1.bf16.msra.mxu0 %v1555
    %2778 = vmatprep.subr.bf16.mxu0 %v1560
    %2779 = vmatpush1.bf16.msra.mxu0 %v1559
    %2780 = vmatprep.subr.bf16.mxu0 %v1564
    %2781 = vmatpush1.bf16.msra.mxu0 %v1563
    %2782 = vmatprep.subr.bf16.mxu0 %v1568
    %2783 = vmatpush1.bf16.msra.mxu0 %v1567
    %2784 = vmatprep.subr.bf16.mxu0 %v1572
    %2785 = vmatpush1.bf16.msra.mxu0 %v1571
    %2786 = vmatprep.mubr.bf16.mxu0 %v2753
    %2787 = vmatmul.mubr.bf16.gmra.mrb[0].mxu0 %v2752
    %v2788 = vpop.f32.mrb[0].mxu0
    %v2789 = vadd.f32 %v1302, %v2788
    %v2790 = vpop.f32.mrb[0].mxu0
    %v2791 = vadd.f32 %v1306, %v2790
    %v2792 = vpop.f32.mrb[0].mxu0
    %v2793 = vpop.f32.mrb[0].mxu0
    %2794 = vdwg.mxu0
    %2795 = vmatprep.subr.bf16.mxu0 %v1514
    %2796 = vmatpush1.bf16.msra.mxu0 %v1513
    %2797 = vmatprep.subr.bf16.mxu0 %v1518
    %2798 = vmatpush1.bf16.msra.mxu0 %v1517
    %2799 = vmatprep.subr.bf16.mxu0 %v1522
    %2800 = vmatpush1.bf16.msra.mxu0 %v1521
    %2801 = vmatprep.subr.bf16.mxu0 %v1526
    %2802 = vmatpush1.bf16.msra.mxu0 %v1525
    %2803 = vmatprep.subr.bf16.mxu0 %v1530
    %2804 = vmatpush1.bf16.msra.mxu0 %v1529
    %2805 = vmatprep.subr.bf16.mxu0 %v1534
    %2806 = vmatpush1.bf16.msra.mxu0 %v1533
    %2807 = vmatprep.subr.bf16.mxu0 %v1538
    %2808 = vmatpush1.bf16.msra.mxu0 %v1537
    %2809 = vmatprep.subr.bf16.mxu0 %v1542
    %2810 = vmatpush1.bf16.msra.mxu0 %v1541
    %2811 = vmatprep.subr.bf16.mxu0 %v1546
    %2812 = vmatpush1.bf16.msra.mxu0 %v1545
    %2813 = vmatprep.subr.bf16.mxu0 %v1550
    %2814 = vmatpush1.bf16.msra.mxu0 %v1549
    %2815 = vmatprep.subr.bf16.mxu0 %v1554
    %2816 = vmatpush1.bf16.msra.mxu0 %v1553
    %2817 = vmatprep.subr.bf16.mxu0 %v1558
    %2818 = vmatpush1.bf16.msra.mxu0 %v1557
    %2819 = vmatprep.subr.bf16.mxu0 %v1562
    %2820 = vmatpush1.bf16.msra.mxu0 %v1561
    %2821 = vmatprep.subr.bf16.mxu0 %v1566
    %2822 = vmatpush1.bf16.msra.mxu0 %v1565
    %2823 = vmatprep.subr.bf16.mxu0 %v1570
    %2824 = vmatpush1.bf16.msra.mxu0 %v1569
    %2825 = vmatprep.subr.bf16.mxu0 %v1574
    %2826 = vmatpush1.bf16.msra.mxu0 %v1573
    %2827 = vmatprep.mubr.bf16.mxu0 %v2753
    %2828 = vmatmul.mubr.bf16.gmra.mrb[0].mxu0 %v2752
    %v2829 = vpop.f32.mrb[0].mxu0
    %v2830 = vadd.f32 %v1310, %v2829
    %v2831 = vpop.f32.mrb[0].mxu0
    %v2832 = vadd.f32 %v1314, %v2831
    %v2833 = vpop.f32.mrb[0].mxu0
    %v2834 = vpop.f32.mrb[0].mxu0
    %2835 = vdwg.mxu0
    %s2836 = scalar_lea.vmem [#allocation2], 192
    %v2837 = vld [vmem:[%s2836] sm:$0xff]
    %v2838 = vld [vmem:[%s2836 + $0x8] sm:$0xff]
    %v2839 = vld [vmem:[%s2836 + $0x10] sm:$0xff]
    %v2840 = vld [vmem:[%s2836 + $0x18] sm:$0xff]
    %2841 = vmatprep.subr.bf16.mxu0 %v1058
    %2842 = vmatpush1.bf16.msra.mxu0 %v1057
    %2843 = vmatprep.subr.bf16.mxu0 %v1062
    %2844 = vmatpush1.bf16.msra.mxu0 %v1061
    %2845 = vmatprep.subr.bf16.mxu0 %v1066
    %2846 = vmatpush1.bf16.msra.mxu0 %v1065
    %2847 = vmatprep.subr.bf16.mxu0 %v1070
    %2848 = vmatpush1.bf16.msra.mxu0 %v1069
    %2849 = vmatprep.subr.bf16.mxu0 %v1074
    %2850 = vmatpush1.bf16.msra.mxu0 %v1073
    %2851 = vmatprep.subr.bf16.mxu0 %v1078
    %2852 = vmatpush1.bf16.msra.mxu0 %v1077
    %2853 = vmatprep.subr.bf16.mxu0 %v1082
    %2854 = vmatpush1.bf16.msra.mxu0 %v1081
    %2855 = vmatprep.subr.bf16.mxu0 %v1086
    %2856 = vmatpush1.bf16.msra.mxu0 %v1085
    %2857 = vmatprep.subr.bf16.mxu0 0
    %2858 = vmatpush1.bf16.msra.mxu0 0
    %2859 = vmatprep.subr.bf16.mxu0 0
    %2860 = vmatpush1.bf16.msra.mxu0 0
    %2861 = vmatprep.subr.bf16.mxu0 0
    %2862 = vmatpush1.bf16.msra.mxu0 0
    %2863 = vmatprep.subr.bf16.mxu0 0
    %2864 = vmatpush1.bf16.msra.mxu0 0
    %2865 = vmatprep.subr.bf16.mxu0 0
    %2866 = vmatpush1.bf16.msra.mxu0 0
    %2867 = vmatprep.subr.bf16.mxu0 0
    %2868 = vmatpush1.bf16.msra.mxu0 0
    %2869 = vmatprep.subr.bf16.mxu0 0
    %2870 = vmatpush1.bf16.msra.mxu0 0
    %2871 = vmatprep.subr.bf16.mxu0 0
    %2872 = vmatpush1.bf16.msra.mxu0 0
    %2873 = vmatprep.mubr.bf16.mxu0 0
    %2874 = vmatmul.mubr.bf16.gmra.mrb[0].mxu0 %v2752
    %v2875 = vpop.f32.mrb[0].mxu0
    %v2876 = vadd.f32 0.0, %v2875
    %v2877 = vpop.f32.mrb[0].mxu0
    %v2878 = vadd.f32 0.0, %v2877
    %v2879 = vpop.f32.mrb[0].mxu0
    %v2880 = vpop.f32.mrb[0].mxu0
    %2881 = vdwg.mxu0
    %2882 = vmatprep.subr.bf16.mxu0 %v1060
    %2883 = vmatpush1.bf16.msra.mxu0 %v1059
    %2884 = vmatprep.subr.bf16.mxu0 %v1064
    %2885 = vmatpush1.bf16.msra.mxu0 %v1063
    %2886 = vmatprep.subr.bf16.mxu0 %v1068
    %2887 = vmatpush1.bf16.msra.mxu0 %v1067
    %2888 = vmatprep.subr.bf16.mxu0 %v1072
    %2889 = vmatpush1.bf16.msra.mxu0 %v1071
    %2890 = vmatprep.subr.bf16.mxu0 %v1076
    %2891 = vmatpush1.bf16.msra.mxu0 %v1075
    %2892 = vmatprep.subr.bf16.mxu0 %v1080
    %2893 = vmatpush1.bf16.msra.mxu0 %v1079
    %2894 = vmatprep.subr.bf16.mxu0 %v1084
    %2895 = vmatpush1.bf16.msra.mxu0 %v1083
    %2896 = vmatprep.subr.bf16.mxu0 %v1088
    %2897 = vmatpush1.bf16.msra.mxu0 %v1087
    %2898 = vmatprep.subr.bf16.mxu0 0
    %2899 = vmatpush1.bf16.msra.mxu0 0
    %2900 = vmatprep.subr.bf16.mxu0 0
    %2901 = vmatpush1.bf16.msra.mxu0 0
    %2902 = vmatprep.subr.bf16.mxu0 0
    %2903 = vmatpush1.bf16.msra.mxu0 0
    %2904 = vmatprep.subr.bf16.mxu0 0
    %2905 = vmatpush1.bf16.msra.mxu0 0
    %2906 = vmatprep.subr.bf16.mxu0 0
    %2907 = vmatpush1.bf16.msra.mxu0 0
    %2908 = vmatprep.subr.bf16.mxu0 0
    %2909 = vmatpush1.bf16.msra.mxu0 0
    %2910 = vmatprep.subr.bf16.mxu0 0
    %2911 = vmatpush1.bf16.msra.mxu0 0
    %2912 = vmatprep.subr.bf16.mxu0 0
    %2913 = vmatpush1.bf16.msra.mxu0 0
    %2914 = vmatprep.mubr.bf16.mxu0 0
    %2915 = vmatmul.mubr.bf16.gmra.mrb[0].mxu0 %v2752
    %v2916 = vpop.f32.mrb[0].mxu0
    %v2917 = vadd.f32 0.0, %v2916
    %v2918 = vpop.f32.mrb[0].mxu0
    %v2919 = vadd.f32 0.0, %v2918
    %v2920 = vpop.f32.mrb[0].mxu0
    %v2921 = vpop.f32.mrb[0].mxu0
    %2922 = vdwg.mxu0
    %v2923 = vadd.f32 %v2837, %v2876
    %v2924 = vadd.f32 %v2838, %v2878
    %v2925 = vadd.f32 %v2839, %v2917
    %v2926 = vadd.f32 %v2840, %v2919
    %v2927 = vxor.u32 %v2789, 2147483648
    %v2928 = vxor.u32 %v2791, 2147483648
    %v2929 = vxor.u32 %v2830, 2147483648
    %v2930 = vmul.f32 %v2927, 1.442695
    %v2931 = vpow.pop %v2930
    %v2932 = vmul.f32 %v2928, 1.442695
    %v2933 = vpow.pop %v2932
    %v2934 = vmul.f32 %v2929, 1.442695
    %v2935 = vpow.pop %v2934
    %v2936 = vadd.f32 %v2931, 1.0
    %v2937 = vadd.f32 %v2933, 1.0
    %v2938 = vadd.f32 %v2935, 1.0
    %v2939 = vrcp.pop %v2936
    %v2940 = vmul.f32 1.0, %v2939
    %v2941 = vrcp.pop %v2937
    %v2942 = vmul.f32 1.0, %v2941
    %v2943 = vrcp.pop %v2938
    %v2944 = vmul.f32 1.0, %v2943
    %v2945 = vtanh.pop %v2832
    %v2946 = vmul.f32 %v2942, %v2725
    %v2947 = vmul.f32 %v2940, %v2945
    %v2948 = vadd.f32 %v2946, %v2947
    %v2949 = vtanh.pop %v2948
    %v2950 = vmul.f32 %v2944, %v2949
    %v2951 = vxor.u32 %v2923, 2147483648
    %v2952 = vxor.u32 %v2924, 2147483648
    %v2953 = vxor.u32 %v2925, 2147483648
    %v2954 = vmul.f32 %v2951, 1.442695
    %v2955 = vpow.pop %v2954
    %v2956 = vmul.f32 %v2952, 1.442695
    %v2957 = vpow.pop %v2956
    %v2958 = vmul.f32 %v2953, 1.442695
    %v2959 = vpow.pop %v2958
    %v2960 = vadd.f32 %v2955, 1.0
    %v2961 = vadd.f32 %v2957, 1.0
    %v2962 = vadd.f32 %v2959, 1.0
    %v2963 = vrcp.pop %v2960
    %v2964 = vmul.f32 1.0, %v2963
    %v2965 = vrcp.pop %v2961
    %v2966 = vmul.f32 1.0, %v2965
    %v2967 = vrcp.pop %v2962
    %v2968 = vmul.f32 1.0, %v2967
    %v2969 = vtanh.pop %v2926
    %v2970 = vmul.f32 %v2966, %v2749
    %v2971 = vmul.f32 %v2964, %v2969
    %v2972 = vadd.f32 %v2970, %v2971
    %v2973 = vtanh.pop %v2972
    %v2974 = vmul.f32 %v2968, %v2973
    %v2975 = vpack.c.bf16 %v2974, %v2974
    %v2976 = vpack.c.bf16 %v2950, %v2950
    %2977 = vmatprep.subr.bf16.mxu0 %v1512
    %2978 = vmatpush1.bf16.msra.mxu0 %v1511
    %2979 = vmatprep.subr.bf16.mxu0 %v1516
    %2980 = vmatpush1.bf16.msra.mxu0 %v1515
    %2981 = vmatprep.subr.bf16.mxu0 %v1520
    %2982 = vmatpush1.bf16.msra.mxu0 %v1519
    %2983 = vmatprep.subr.bf16.mxu0 %v1524
    %2984 = vmatpush1.bf16.msra.mxu0 %v1523
    %2985 = vmatprep.subr.bf16.mxu0 %v1528
    %2986 = vmatpush1.bf16.msra.mxu0 %v1527
    %2987 = vmatprep.subr.bf16.mxu0 %v1532
    %2988 = vmatpush1.bf16.msra.mxu0 %v1531
    %2989 = vmatprep.subr.bf16.mxu0 %v1536
    %2990 = vmatpush1.bf16.msra.mxu0 %v1535
    %2991 = vmatprep.subr.bf16.mxu0 %v1540
    %2992 = vmatpush1.bf16.msra.mxu0 %v1539
    %2993 = vmatprep.subr.bf16.mxu0 %v1544
    %2994 = vmatpush1.bf16.msra.mxu0 %v1543
    %2995 = vmatprep.subr.bf16.mxu0 %v1548
    %2996 = vmatpush1.bf16.msra.mxu0 %v1547
    %2997 = vmatprep.subr.bf16.mxu0 %v1552
    %2998 = vmatpush1.bf16.msra.mxu0 %v1551
    %2999 = vmatprep.subr.bf16.mxu0 %v1556
    %3000 = vmatpush1.bf16.msra.mxu0 %v1555
    %3001 = vmatprep.subr.bf16.mxu0 %v1560
    %3002 = vmatpush1.bf16.msra.mxu0 %v1559
    %3003 = vmatprep.subr.bf16.mxu0 %v1564
    %3004 = vmatpush1.bf16.msra.mxu0 %v1563
    %3005 = vmatprep.subr.bf16.mxu0 %v1568
    %3006 = vmatpush1.bf16.msra.mxu0 %v1567
    %3007 = vmatprep.subr.bf16.mxu0 %v1572
    %3008 = vmatpush1.bf16.msra.mxu0 %v1571
    %3009 = vmatprep.mubr.bf16.mxu0 %v2976
    %3010 = vmatmul.mubr.bf16.gmra.mrb[0].mxu0 %v2975
    %v3011 = vpop.f32.mrb[0].mxu0
    %v3012 = vadd.f32 %v1302, %v3011
    %v3013 = vpop.f32.mrb[0].mxu0
    %v3014 = vadd.f32 %v1306, %v3013
    %v3015 = vpop.f32.mrb[0].mxu0
    %v3016 = vpop.f32.mrb[0].mxu0
    %3017 = vdwg.mxu0
    %3018 = vmatprep.subr.bf16.mxu0 %v1514
    %3019 = vmatpush1.bf16.msra.mxu0 %v1513
    %3020 = vmatprep.subr.bf16.mxu0 %v1518
    %3021 = vmatpush1.bf16.msra.mxu0 %v1517
    %3022 = vmatprep.subr.bf16.mxu0 %v1522
    %3023 = vmatpush1.bf16.msra.mxu0 %v1521
    %3024 = vmatprep.subr.bf16.mxu0 %v1526
    %3025 = vmatpush1.bf16.msra.mxu0 %v1525
    %3026 = vmatprep.subr.bf16.mxu0 %v1530
    %3027 = vmatpush1.bf16.msra.mxu0 %v1529
    %3028 = vmatprep.subr.bf16.mxu0 %v1534
    %3029 = vmatpush1.bf16.msra.mxu0 %v1533
    %3030 = vmatprep.subr.bf16.mxu0 %v1538
    %3031 = vmatpush1.bf16.msra.mxu0 %v1537
    %3032 = vmatprep.subr.bf16.mxu0 %v1542
    %3033 = vmatpush1.bf16.msra.mxu0 %v1541
    %3034 = vmatprep.subr.bf16.mxu0 %v1546
    %3035 = vmatpush1.bf16.msra.mxu0 %v1545
    %3036 = vmatprep.subr.bf16.mxu0 %v1550
    %3037 = vmatpush1.bf16.msra.mxu0 %v1549
    %3038 = vmatprep.subr.bf16.mxu0 %v1554
    %3039 = vmatpush1.bf16.msra.mxu0 %v1553
    %3040 = vmatprep.subr.bf16.mxu0 %v1558
    %3041 = vmatpush1.bf16.msra.mxu0 %v1557
    %3042 = vmatprep.subr.bf16.mxu0 %v1562
    %3043 = vmatpush1.bf16.msra.mxu0 %v1561
    %3044 = vmatprep.subr.bf16.mxu0 %v1566
    %3045 = vmatpush1.bf16.msra.mxu0 %v1565
    %3046 = vmatprep.subr.bf16.mxu0 %v1570
    %3047 = vmatpush1.bf16.msra.mxu0 %v1569
    %3048 = vmatprep.subr.bf16.mxu0 %v1574
    %3049 = vmatpush1.bf16.msra.mxu0 %v1573
    %3050 = vmatprep.mubr.bf16.mxu0 %v2976
    %3051 = vmatmul.mubr.bf16.gmra.mrb[0].mxu0 %v2975
    %v3052 = vpop.f32.mrb[0].mxu0
    %v3053 = vadd.f32 %v1310, %v3052
    %v3054 = vpop.f32.mrb[0].mxu0
    %v3055 = vadd.f32 %v1314, %v3054
    %v3056 = vpop.f32.mrb[0].mxu0
    %v3057 = vpop.f32.mrb[0].mxu0
    %3058 = vdwg.mxu0
    %s3059 = scalar_lea.vmem [#allocation2], 224
    %v3060 = vld [vmem:[%s3059] sm:$0xff]
    %v3061 = vld [vmem:[%s3059 + $0x8] sm:$0xff]
    %v3062 = vld [vmem:[%s3059 + $0x10] sm:$0xff]
    %v3063 = vld [vmem:[%s3059 + $0x18] sm:$0xff]
    %3064 = vmatprep.subr.bf16.mxu0 %v1058
    %3065 = vmatpush1.bf16.msra.mxu0 %v1057
    %3066 = vmatprep.subr.bf16.mxu0 %v1062
    %3067 = vmatpush1.bf16.msra.mxu0 %v1061
    %3068 = vmatprep.subr.bf16.mxu0 %v1066
    %3069 = vmatpush1.bf16.msra.mxu0 %v1065
    %3070 = vmatprep.subr.bf16.mxu0 %v1070
    %3071 = vmatpush1.bf16.msra.mxu0 %v1069
    %3072 = vmatprep.subr.bf16.mxu0 %v1074
    %3073 = vmatpush1.bf16.msra.mxu0 %v1073
    %3074 = vmatprep.subr.bf16.mxu0 %v1078
    %3075 = vmatpush1.bf16.msra.mxu0 %v1077
    %3076 = vmatprep.subr.bf16.mxu0 %v1082
    %3077 = vmatpush1.bf16.msra.mxu0 %v1081
    %3078 = vmatprep.subr.bf16.mxu0 %v1086
    %3079 = vmatpush1.bf16.msra.mxu0 %v1085
    %3080 = vmatprep.subr.bf16.mxu0 0
    %3081 = vmatpush1.bf16.msra.mxu0 0
    %3082 = vmatprep.subr.bf16.mxu0 0
    %3083 = vmatpush1.bf16.msra.mxu0 0
    %3084 = vmatprep.subr.bf16.mxu0 0
    %3085 = vmatpush1.bf16.msra.mxu0 0
    %3086 = vmatprep.subr.bf16.mxu0 0
    %3087 = vmatpush1.bf16.msra.mxu0 0
    %3088 = vmatprep.subr.bf16.mxu0 0
    %3089 = vmatpush1.bf16.msra.mxu0 0
    %3090 = vmatprep.subr.bf16.mxu0 0
    %3091 = vmatpush1.bf16.msra.mxu0 0
    %3092 = vmatprep.subr.bf16.mxu0 0
    %3093 = vmatpush1.bf16.msra.mxu0 0
    %3094 = vmatprep.subr.bf16.mxu0 0
    %3095 = vmatpush1.bf16.msra.mxu0 0
    %3096 = vmatprep.mubr.bf16.mxu0 0
    %3097 = vmatmul.mubr.bf16.gmra.mrb[0].mxu0 %v2975
    %v3098 = vpop.f32.mrb[0].mxu0
    %v3099 = vadd.f32 0.0, %v3098
    %v3100 = vpop.f32.mrb[0].mxu0
    %v3101 = vadd.f32 0.0, %v3100
    %v3102 = vpop.f32.mrb[0].mxu0
    %v3103 = vpop.f32.mrb[0].mxu0
    %3104 = vdwg.mxu0
    %3105 = vmatprep.subr.bf16.mxu0 %v1060
    %3106 = vmatpush1.bf16.msra.mxu0 %v1059
    %3107 = vmatprep.subr.bf16.mxu0 %v1064
    %3108 = vmatpush1.bf16.msra.mxu0 %v1063
    %3109 = vmatprep.subr.bf16.mxu0 %v1068
    %3110 = vmatpush1.bf16.msra.mxu0 %v1067
    %3111 = vmatprep.subr.bf16.mxu0 %v1072
    %3112 = vmatpush1.bf16.msra.mxu0 %v1071
    %3113 = vmatprep.subr.bf16.mxu0 %v1076
    %3114 = vmatpush1.bf16.msra.mxu0 %v1075
    %3115 = vmatprep.subr.bf16.mxu0 %v1080
    %3116 = vmatpush1.bf16.msra.mxu0 %v1079
    %3117 = vmatprep.subr.bf16.mxu0 %v1084
    %3118 = vmatpush1.bf16.msra.mxu0 %v1083
    %3119 = vmatprep.subr.bf16.mxu0 %v1088
    %3120 = vmatpush1.bf16.msra.mxu0 %v1087
    %3121 = vmatprep.subr.bf16.mxu0 0
    %3122 = vmatpush1.bf16.msra.mxu0 0
    %3123 = vmatprep.subr.bf16.mxu0 0
    %3124 = vmatpush1.bf16.msra.mxu0 0
    %3125 = vmatprep.subr.bf16.mxu0 0
    %3126 = vmatpush1.bf16.msra.mxu0 0
    %3127 = vmatprep.subr.bf16.mxu0 0
    %3128 = vmatpush1.bf16.msra.mxu0 0
    %3129 = vmatprep.subr.bf16.mxu0 0
    %3130 = vmatpush1.bf16.msra.mxu0 0
    %3131 = vmatprep.subr.bf16.mxu0 0
    %3132 = vmatpush1.bf16.msra.mxu0 0
    %3133 = vmatprep.subr.bf16.mxu0 0
    %3134 = vmatpush1.bf16.msra.mxu0 0
    %3135 = vmatprep.subr.bf16.mxu0 0
    %3136 = vmatpush1.bf16.msra.mxu0 0
    %3137 = vmatprep.mubr.bf16.mxu0 0
    %3138 = vmatmul.mubr.bf16.gmra.mrb[0].mxu0 %v2975
    %v3139 = vpop.f32.mrb[0].mxu0
    %v3140 = vadd.f32 0.0, %v3139
    %v3141 = vpop.f32.mrb[0].mxu0
    %v3142 = vadd.f32 0.0, %v3141
    %v3143 = vpop.f32.mrb[0].mxu0
    %v3144 = vpop.f32.mrb[0].mxu0
    %3145 = vdwg.mxu0
    %v3146 = vadd.f32 %v3060, %v3099
    %v3147 = vadd.f32 %v3061, %v3101
    %v3148 = vadd.f32 %v3062, %v3140
    %v3149 = vadd.f32 %v3063, %v3142
    %v3150 = vxor.u32 %v3012, 2147483648
    %v3151 = vxor.u32 %v3014, 2147483648
    %v3152 = vxor.u32 %v3053, 2147483648
    %v3153 = vmul.f32 %v3150, 1.442695
    %v3154 = vpow.pop %v3153
    %v3155 = vmul.f32 %v3151, 1.442695
    %v3156 = vpow.pop %v3155
    %v3157 = vmul.f32 %v3152, 1.442695
    %v3158 = vpow.pop %v3157
    %v3159 = vadd.f32 %v3154, 1.0
    %v3160 = vadd.f32 %v3156, 1.0
    %v3161 = vadd.f32 %v3158, 1.0
    %v3162 = vrcp.pop %v3159
    %v3163 = vmul.f32 1.0, %v3162
    %v3164 = vrcp.pop %v3160
    %v3165 = vmul.f32 1.0, %v3164
    %v3166 = vrcp.pop %v3161
    %v3167 = vmul.f32 1.0, %v3166
    %v3168 = vtanh.pop %v3055
    %v3169 = vmul.f32 %v3165, %v2948
    %v3170 = vmul.f32 %v3163, %v3168
    %v3171 = vadd.f32 %v3169, %v3170
    %v3172 = vtanh.pop %v3171
    %v3173 = vmul.f32 %v3167, %v3172
    %v3174 = vxor.u32 %v3146, 2147483648
    %v3175 = vxor.u32 %v3147, 2147483648
    %v3176 = vxor.u32 %v3148, 2147483648
    %v3177 = vmul.f32 %v3174, 1.442695
    %v3178 = vpow.pop %v3177
    %v3179 = vmul.f32 %v3175, 1.442695
    %v3180 = vpow.pop %v3179
    %v3181 = vmul.f32 %v3176, 1.442695
    %v3182 = vpow.pop %v3181
    %v3183 = vadd.f32 %v3178, 1.0
    %v3184 = vadd.f32 %v3180, 1.0
    %v3185 = vadd.f32 %v3182, 1.0
    %v3186 = vrcp.pop %v3183
    %v3187 = vmul.f32 1.0, %v3186
    %v3188 = vrcp.pop %v3184
    %v3189 = vmul.f32 1.0, %v3188
    %v3190 = vrcp.pop %v3185
    %v3191 = vmul.f32 1.0, %v3190
    %v3192 = vtanh.pop %v3149
    %v3193 = vmul.f32 %v3189, %v2972
    %v3194 = vmul.f32 %v3187, %v3192
    %v3195 = vadd.f32 %v3193, %v3194
    %v3196 = vtanh.pop %v3195
    %v3197 = vmul.f32 %v3191, %v3196
    %v3198 = vpack.c.bf16 %v3197, %v3197
    %v3199 = vpack.c.bf16 %v3173, %v3173
    %3200 = vmatprep.subr.bf16.mxu0 %v1512
    %3201 = vmatpush1.bf16.msra.mxu0 %v1511
    %3202 = vmatprep.subr.bf16.mxu0 %v1516
    %3203 = vmatpush1.bf16.msra.mxu0 %v1515
    %3204 = vmatprep.subr.bf16.mxu0 %v1520
    %3205 = vmatpush1.bf16.msra.mxu0 %v1519
    %3206 = vmatprep.subr.bf16.mxu0 %v1524
    %3207 = vmatpush1.bf16.msra.mxu0 %v1523
    %3208 = vmatprep.subr.bf16.mxu0 %v1528
    %3209 = vmatpush1.bf16.msra.mxu0 %v1527
    %3210 = vmatprep.subr.bf16.mxu0 %v1532
    %3211 = vmatpush1.bf16.msra.mxu0 %v1531
    %3212 = vmatprep.subr.bf16.mxu0 %v1536
    %3213 = vmatpush1.bf16.msra.mxu0 %v1535
    %3214 = vmatprep.subr.bf16.mxu0 %v1540
    %3215 = vmatpush1.bf16.msra.mxu0 %v1539
    %3216 = vmatprep.subr.bf16.mxu0 %v1544
    %3217 = vmatpush1.bf16.msra.mxu0 %v1543
    %3218 = vmatprep.subr.bf16.mxu0 %v1548
    %3219 = vmatpush1.bf16.msra.mxu0 %v1547
    %3220 = vmatprep.subr.bf16.mxu0 %v1552
    %3221 = vmatpush1.bf16.msra.mxu0 %v1551
    %3222 = vmatprep.subr.bf16.mxu0 %v1556
    %3223 = vmatpush1.bf16.msra.mxu0 %v1555
    %3224 = vmatprep.subr.bf16.mxu0 %v1560
    %3225 = vmatpush1.bf16.msra.mxu0 %v1559
    %3226 = vmatprep.subr.bf16.mxu0 %v1564
    %3227 = vmatpush1.bf16.msra.mxu0 %v1563
    %3228 = vmatprep.subr.bf16.mxu0 %v1568
    %3229 = vmatpush1.bf16.msra.mxu0 %v1567
    %3230 = vmatprep.subr.bf16.mxu0 %v1572
    %3231 = vmatpush1.bf16.msra.mxu0 %v1571
    %3232 = vmatprep.mubr.bf16.mxu0 %v3199
    %3233 = vmatmul.mubr.bf16.gmra.mrb[0].mxu0 %v3198
    %v3234 = vpop.f32.mrb[0].mxu0
    %v3235 = vadd.f32 %v1302, %v3234
    %v3236 = vpop.f32.mrb[0].mxu0
    %v3237 = vadd.f32 %v1306, %v3236
    %v3238 = vpop.f32.mrb[0].mxu0
    %v3239 = vpop.f32.mrb[0].mxu0
    %3240 = vdwg.mxu0
    %3241 = vmatprep.subr.bf16.mxu0 %v1514
    %3242 = vmatpush1.bf16.msra.mxu0 %v1513
    %3243 = vmatprep.subr.bf16.mxu0 %v1518
    %3244 = vmatpush1.bf16.msra.mxu0 %v1517
    %3245 = vmatprep.subr.bf16.mxu0 %v1522
    %3246 = vmatpush1.bf16.msra.mxu0 %v1521
    %3247 = vmatprep.subr.bf16.mxu0 %v1526
    %3248 = vmatpush1.bf16.msra.mxu0 %v1525
    %3249 = vmatprep.subr.bf16.mxu0 %v1530
    %3250 = vmatpush1.bf16.msra.mxu0 %v1529
    %3251 = vmatprep.subr.bf16.mxu0 %v1534
    %3252 = vmatpush1.bf16.msra.mxu0 %v1533
    %3253 = vmatprep.subr.bf16.mxu0 %v1538
    %3254 = vmatpush1.bf16.msra.mxu0 %v1537
    %3255 = vmatprep.subr.bf16.mxu0 %v1542
    %3256 = vmatpush1.bf16.msra.mxu0 %v1541
    %3257 = vmatprep.subr.bf16.mxu0 %v1546
    %3258 = vmatpush1.bf16.msra.mxu0 %v1545
    %3259 = vmatprep.subr.bf16.mxu0 %v1550
    %3260 = vmatpush1.bf16.msra.mxu0 %v1549
    %3261 = vmatprep.subr.bf16.mxu0 %v1554
    %3262 = vmatpush1.bf16.msra.mxu0 %v1553
    %3263 = vmatprep.subr.bf16.mxu0 %v1558
    %3264 = vmatpush1.bf16.msra.mxu0 %v1557
    %3265 = vmatprep.subr.bf16.mxu0 %v1562
    %3266 = vmatpush1.bf16.msra.mxu0 %v1561
    %3267 = vmatprep.subr.bf16.mxu0 %v1566
    %3268 = vmatpush1.bf16.msra.mxu0 %v1565
    %3269 = vmatprep.subr.bf16.mxu0 %v1570
    %3270 = vmatpush1.bf16.msra.mxu0 %v1569
    %3271 = vmatprep.subr.bf16.mxu0 %v1574
    %3272 = vmatpush1.bf16.msra.mxu0 %v1573
    %3273 = vmatprep.mubr.bf16.mxu0 %v3199
    %3274 = vmatmul.mubr.bf16.gmra.mrb[0].mxu0 %v3198
    %v3275 = vpop.f32.mrb[0].mxu0
    %v3276 = vadd.f32 %v1310, %v3275
    %v3277 = vpop.f32.mrb[0].mxu0
    %v3278 = vadd.f32 %v1314, %v3277
    %v3279 = vpop.f32.mrb[0].mxu0
    %v3280 = vpop.f32.mrb[0].mxu0
    %3281 = vdwg.mxu0
    %v3282 = vxor.u32 %v3235, 2147483648
    %v3283 = vxor.u32 %v3237, 2147483648
    %v3284 = vxor.u32 %v3276, 2147483648
    %v3285 = vmul.f32 %v3282, 1.442695
    %v3286 = vpow.pop %v3285
    %v3287 = vmul.f32 %v3283, 1.442695
    %v3288 = vpow.pop %v3287
    %v3289 = vmul.f32 %v3284, 1.442695
    %v3290 = vpow.pop %v3289
    %v3291 = vadd.f32 %v3286, 1.0
    %v3292 = vadd.f32 %v3288, 1.0
    %v3293 = vadd.f32 %v3290, 1.0
    %v3294 = vrcp.pop %v3291
    %v3295 = vmul.f32 1.0, %v3294
    %v3296 = vrcp.pop %v3292
    %v3297 = vmul.f32 1.0, %v3296
    %v3298 = vrcp.pop %v3293
    %v3299 = vmul.f32 1.0, %v3298
    %v3300 = vtanh.pop %v3278
    %v3301 = vmul.f32 %v3297, %v3171
    %v3302 = vmul.f32 %v3295, %v3300
    %v3303 = vadd.f32 %v3301, %v3302
    %v3304 = vtanh.pop %v3303
    %v3305 = vmul.f32 %v3299, %v3304
    %3306 = vst [vmem:[#allocation17] sm:$0xff] %v3197
    %3307 = vst [vmem:[#allocation18] sm:$0xff] %v3195
    %s3308 = scalar_lea.vmem [#allocation17], 8
    %3309 = vst [vmem:[%s3308] sm:$0xff] %v3305
    %s3310 = scalar_lea.vmem [#allocation18], 8
    %3311 = vst [vmem:[%s3310] sm:$0xff] %v3303
    %v3312 = vpack.c.bf16 %v3305, %v3305
    %v3313 = vld [vmem:[%s13] sm:$0xff]
    %v3314 = vld [vmem:[%s13 + $0x8] sm:$0xff]
    %v3315 = vld [vmem:[%s13 + $0x10] sm:$0xff]
    %v3316 = vld [vmem:[%s13 + $0x18] sm:$0xff]
    %v3317 = vld [vmem:[%s13 + $0x20] sm:$0xff]
    %v3318 = vld [vmem:[%s13 + $0x28] sm:$0xff]
    %v3319 = vld [vmem:[%s13 + $0x30] sm:$0xff]
    %v3320 = vld [vmem:[%s13 + $0x38] sm:$0xff]
    %v3321 = vld [vmem:[%s13 + $0x40] sm:$0xff]
    %v3322 = vld [vmem:[%s13 + $0x48] sm:$0xff]
    %v3323 = vld [vmem:[%s13 + $0x50] sm:$0xff]
    %v3324 = vld [vmem:[%s13 + $0x58] sm:$0xff]
    %v3325 = vld [vmem:[%s13 + $0x60] sm:$0xff]
    %v3326 = vld [vmem:[%s13 + $0x68] sm:$0xff]
    %v3327 = vld [vmem:[%s13 + $0x70] sm:$0xff]
    %v3328 = vld [vmem:[%s13 + $0x78] sm:$0xff]
    %v3345 = vunpack.c.l.b16 %v3313
    %v3346 = vunpack.c.h.b16 %v3313
    %v3347 = vunpack.c.l.b16 %v3314
    %v3348 = vunpack.c.h.b16 %v3314
    %v3349 = vunpack.c.l.b16 %v3315
    %v3350 = vunpack.c.h.b16 %v3315
    %v3351 = vunpack.c.l.b16 %v3316
    %v3352 = vunpack.c.h.b16 %v3316
    %v3353 = vunpack.c.l.b16 %v3317
    %v3354 = vunpack.c.h.b16 %v3317
    %v3355 = vunpack.c.l.b16 %v3318
    %v3356 = vunpack.c.h.b16 %v3318
    %v3357 = vunpack.c.l.b16 %v3319
    %v3358 = vunpack.c.h.b16 %v3319
    %v3359 = vunpack.c.l.b16 %v3320
    %v3360 = vunpack.c.h.b16 %v3320
    %v3361 = vunpack.c.l.b16 %v3321
    %v3362 = vunpack.c.h.b16 %v3321
    %v3363 = vunpack.c.l.b16 %v3322
    %v3364 = vunpack.c.h.b16 %v3322
    %v3365 = vunpack.c.l.b16 %v3323
    %v3366 = vunpack.c.h.b16 %v3323
    %v3367 = vunpack.c.l.b16 %v3324
    %v3368 = vunpack.c.h.b16 %v3324
    %v3369 = vunpack.c.l.b16 %v3325
    %v3370 = vunpack.c.h.b16 %v3325
    %v3371 = vunpack.c.l.b16 %v3326
    %v3372 = vunpack.c.h.b16 %v3326
    %v3373 = vunpack.c.l.b16 %v3327
    %v3374 = vunpack.c.h.b16 %v3327
    %v3375 = vunpack.c.l.b16 %v3328
    %v3376 = vunpack.c.h.b16 %v3328
    %v3377 = vpack.c.b16 %v3347, %v3345
    %v3378 = vpack.c.b16 %v3348, %v3346
    %v3379 = vpack.c.b16 %v3351, %v3349
    %v3380 = vpack.c.b16 %v3352, %v3350
    %v3381 = vpack.c.b16 %v3355, %v3353
    %v3382 = vpack.c.b16 %v3356, %v3354
    %v3383 = vpack.c.b16 %v3359, %v3357
    %v3384 = vpack.c.b16 %v3360, %v3358
    %v3385 = vpack.c.b16 %v3363, %v3361
    %v3386 = vpack.c.b16 %v3364, %v3362
    %v3387 = vpack.c.b16 %v3367, %v3365
    %v3388 = vpack.c.b16 %v3368, %v3366
    %v3389 = vpack.c.b16 %v3371, %v3369
    %v3390 = vpack.c.b16 %v3372, %v3370
    %v3391 = vpack.c.b16 %v3375, %v3373
    %v3392 = vpack.c.b16 %v3376, %v3374
    %3409 = vmatprep.subr.bf16.mxu0 %v3378
    %3410 = vmatpush1.bf16.msra.mxu0 %v3377
    %3411 = vmatprep.subr.bf16.mxu0 %v3380
    %3412 = vmatpush1.bf16.msra.mxu0 %v3379
    %3413 = vmatprep.subr.bf16.mxu0 %v3382
    %3414 = vmatpush1.bf16.msra.mxu0 %v3381
    %3415 = vmatprep.subr.bf16.mxu0 %v3384
    %3416 = vmatpush1.bf16.msra.mxu0 %v3383
    %3417 = vmatprep.subr.bf16.mxu0 %v3386
    %3418 = vmatpush1.bf16.msra.mxu0 %v3385
    %3419 = vmatprep.subr.bf16.mxu0 %v3388
    %3420 = vmatpush1.bf16.msra.mxu0 %v3387
    %3421 = vmatprep.subr.bf16.mxu0 %v3390
    %3422 = vmatpush1.bf16.msra.mxu0 %v3389
    %3423 = vmatprep.subr.bf16.mxu0 %v3392
    %3424 = vmatpush1.bf16.msra.mxu0 %v3391
    %3425 = vmatprep.subr.bf16.mxu0 0
    %3426 = vmatpush1.bf16.msra.mxu0 0
    %3427 = vmatprep.subr.bf16.mxu0 0
    %3428 = vmatpush1.bf16.msra.mxu0 0
    %3429 = vmatprep.subr.bf16.mxu0 0
    %3430 = vmatpush1.bf16.msra.mxu0 0
    %3431 = vmatprep.subr.bf16.mxu0 0
    %3432 = vmatpush1.bf16.msra.mxu0 0
    %3433 = vmatprep.subr.bf16.mxu0 0
    %3434 = vmatpush1.bf16.msra.mxu0 0
    %3435 = vmatprep.subr.bf16.mxu0 0
    %3436 = vmatpush1.bf16.msra.mxu0 0
    %3437 = vmatprep.subr.bf16.mxu0 0
    %3438 = vmatpush1.bf16.msra.mxu0 0
    %3439 = vmatprep.subr.bf16.mxu0 0
    %3440 = vmatpush1.bf16.msra.mxu0 0
    %3441 = vmatprep.mubr.bf16.mxu0 0
    %3442 = vmatmul.mubr.bf16.gmra.mrb[0].mxu0 %v3312
    %v3443 = vpop.f32.mrb[0].mxu0
    %v3444 = vadd.f32 %v371, %v3443
    %v3445 = vpop.f32.mrb[0].mxu0
    %v3446 = vadd.f32 %v373, %v3445
    %v3447 = vpop.f32.mrb[0].mxu0
    %v3448 = vpop.f32.mrb[0].mxu0
    %3449 = vdwg.mxu0
    %v3450 = vmax.f32 %v3444, 0.0
    %v3451 = vmax.f32 %v3446, 0.0
    %v3452 = vpack.c.bf16 %v3450, %v3450
    %v3453 = vpack.c.bf16 %v3451, %v3451
    %v3454 = vld [vmem:[#allocation15] sm:$0xf]
    %v3455 = vld [vmem:[#allocation15 + $0x4] sm:$0xf]
    %v3456 = vld [vmem:[#allocation15 + $0x8] sm:$0xf]
    %v3457 = vld [vmem:[#allocation15 + $0xc] sm:$0xf]
    %v3458 = vld [vmem:[#allocation15 + $0x10] sm:$0xf]
    %v3459 = vld [vmem:[#allocation15 + $0x14] sm:$0xf]
    %v3460 = vld [vmem:[#allocation15 + $0x18] sm:$0xf]
    %v3461 = vld [vmem:[#allocation15 + $0x1c] sm:$0xf]
    %v3462 = vld [vmem:[#allocation15 + $0x20] sm:$0xf]
    %v3463 = vld [vmem:[#allocation15 + $0x24] sm:$0xf]
    %v3464 = vld [vmem:[#allocation15 + $0x28] sm:$0xf]
    %v3465 = vld [vmem:[#allocation15 + $0x2c] sm:$0xf]
    %v3466 = vld [vmem:[#allocation15 + $0x30] sm:$0xf]
    %v3467 = vld [vmem:[#allocation15 + $0x34] sm:$0xf]
    %v3468 = vld [vmem:[#allocation15 + $0x38] sm:$0xf]
    %v3469 = vld [vmem:[#allocation15 + $0x3c] sm:$0xf]
    %v3470 = vld [vmem:[#allocation15 + $0x40] sm:$0xf]
    %v3471 = vld [vmem:[#allocation15 + $0x44] sm:$0xf]
    %v3472 = vld [vmem:[#allocation15 + $0x48] sm:$0xf]
    %v3473 = vld [vmem:[#allocation15 + $0x4c] sm:$0xf]
    %v3474 = vld [vmem:[#allocation15 + $0x50] sm:$0xf]
    %v3475 = vld [vmem:[#allocation15 + $0x54] sm:$0xf]
    %v3476 = vld [vmem:[#allocation15 + $0x58] sm:$0xf]
    %v3477 = vld [vmem:[#allocation15 + $0x5c] sm:$0xf]
    %v3478 = vld [vmem:[#allocation15 + $0x60] sm:$0xf]
    %v3479 = vld [vmem:[#allocation15 + $0x64] sm:$0xf]
    %v3480 = vld [vmem:[#allocation15 + $0x68] sm:$0xf]
    %v3481 = vld [vmem:[#allocation15 + $0x6c] sm:$0xf]
    %v3482 = vld [vmem:[#allocation15 + $0x70] sm:$0xf]
    %v3483 = vld [vmem:[#allocation15 + $0x74] sm:$0xf]
    %v3484 = vld [vmem:[#allocation15 + $0x78] sm:$0xf]
    %v3485 = vld [vmem:[#allocation15 + $0x7c] sm:$0xf]
    %v3486 = vld [vmem:[%s17] sm:$0x1]
    %v3488 = vlaneseq
    %v3489 = vshrl.u32 %v3488, 7
    %v3490 = vsub.s32 0, %v3489
    %v3491 = vrot.slane %v3486, %v3490
    %v3525 = vunpack.c.l.b16 %v3454
    %v3526 = vunpack.c.l.b16 %v3455
    %v3527 = vunpack.c.l.b16 %v3456
    %v3528 = vunpack.c.l.b16 %v3457
    %v3529 = vunpack.c.l.b16 %v3458
    %v3530 = vunpack.c.l.b16 %v3459
    %v3531 = vunpack.c.l.b16 %v3460
    %v3532 = vunpack.c.l.b16 %v3461
    %v3533 = vunpack.c.l.b16 %v3462
    %v3534 = vunpack.c.l.b16 %v3463
    %v3535 = vunpack.c.l.b16 %v3464
    %v3536 = vunpack.c.l.b16 %v3465
    %v3537 = vunpack.c.l.b16 %v3466
    %v3538 = vunpack.c.l.b16 %v3467
    %v3539 = vunpack.c.l.b16 %v3468
    %v3540 = vunpack.c.l.b16 %v3469
    %v3541 = vunpack.c.l.b16 %v3470
    %v3542 = vunpack.c.l.b16 %v3471
    %v3543 = vunpack.c.l.b16 %v3472
    %v3544 = vunpack.c.l.b16 %v3473
    %v3545 = vunpack.c.l.b16 %v3474
    %v3546 = vunpack.c.l.b16 %v3475
    %v3547 = vunpack.c.l.b16 %v3476
    %v3548 = vunpack.c.l.b16 %v3477
    %v3549 = vunpack.c.l.b16 %v3478
    %v3550 = vunpack.c.l.b16 %v3479
    %v3551 = vunpack.c.l.b16 %v3480
    %v3552 = vunpack.c.l.b16 %v3481
    %v3553 = vunpack.c.l.b16 %v3482
    %v3554 = vunpack.c.l.b16 %v3483
    %v3555 = vunpack.c.l.b16 %v3484
    %v3556 = vunpack.c.l.b16 %v3485
    %v3557 = vpack.c.b16 %v3526, %v3525
    %v3558 = vpack.c.b16 %v3528, %v3527
    %v3559 = vpack.c.b16 %v3530, %v3529
    %v3560 = vpack.c.b16 %v3532, %v3531
    %v3561 = vpack.c.b16 %v3534, %v3533
    %v3562 = vpack.c.b16 %v3536, %v3535
    %v3563 = vpack.c.b16 %v3538, %v3537
    %v3564 = vpack.c.b16 %v3540, %v3539
    %v3565 = vpack.c.b16 %v3542, %v3541
    %v3566 = vpack.c.b16 %v3544, %v3543
    %v3567 = vpack.c.b16 %v3546, %v3545
    %v3568 = vpack.c.b16 %v3548, %v3547
    %v3569 = vpack.c.b16 %v3550, %v3549
    %v3570 = vpack.c.b16 %v3552, %v3551
    %v3571 = vpack.c.b16 %v3554, %v3553
    %v3572 = vpack.c.b16 %v3556, %v3555
    %3589 = vmatprep.subr.bf16.mxu0 0
    %3590 = vmatpush1.bf16.msra.mxu0 %v3557
    %3591 = vmatprep.subr.bf16.mxu0 0
    %3592 = vmatpush1.bf16.msra.mxu0 %v3558
    %3593 = vmatprep.subr.bf16.mxu0 0
    %3594 = vmatpush1.bf16.msra.mxu0 %v3559
    %3595 = vmatprep.subr.bf16.mxu0 0
    %3596 = vmatpush1.bf16.msra.mxu0 %v3560
    %3597 = vmatprep.subr.bf16.mxu0 0
    %3598 = vmatpush1.bf16.msra.mxu0 %v3561
    %3599 = vmatprep.subr.bf16.mxu0 0
    %3600 = vmatpush1.bf16.msra.mxu0 %v3562
    %3601 = vmatprep.subr.bf16.mxu0 0
    %3602 = vmatpush1.bf16.msra.mxu0 %v3563
    %3603 = vmatprep.subr.bf16.mxu0 0
    %3604 = vmatpush1.bf16.msra.mxu0 %v3564
    %3605 = vmatprep.subr.bf16.mxu0 0
    %3606 = vmatpush1.bf16.msra.mxu0 %v3565
    %3607 = vmatprep.subr.bf16.mxu0 0
    %3608 = vmatpush1.bf16.msra.mxu0 %v3566
    %3609 = vmatprep.subr.bf16.mxu0 0
    %3610 = vmatpush1.bf16.msra.mxu0 %v3567
    %3611 = vmatprep.subr.bf16.mxu0 0
    %3612 = vmatpush1.bf16.msra.mxu0 %v3568
    %3613 = vmatprep.subr.bf16.mxu0 0
    %3614 = vmatpush1.bf16.msra.mxu0 %v3569
    %3615 = vmatprep.subr.bf16.mxu0 0
    %3616 = vmatpush1.bf16.msra.mxu0 %v3570
    %3617 = vmatprep.subr.bf16.mxu0 0
    %3618 = vmatpush1.bf16.msra.mxu0 %v3571
    %3619 = vmatprep.subr.bf16.mxu0 0
    %3620 = vmatpush1.bf16.msra.mxu0 %v3572
    %3621 = vmatprep.mubr.bf16.mxu0 %v3453
    %3622 = vmatmul.mubr.bf16.gmra.mrb[0].mxu0 %v3452
    %v3623 = vpop.f32.mrb[0].mxu0
    %v3624 = vadd.f32 %v3491, %v3623
    %v3625 = vpop.f32.mrb[0].mxu0
    %v3626 = vpop.f32.mrb[0].mxu0
    %v3627 = vpop.f32.mrb[0].mxu0
    %3628 = vdwg.mxu0
    %3629 = vst [vmem:[%s18] sm:$0xff] %v3624
    // Predicated region
    $region106: #{critic_forward.1} parent=1 // pred_check
      _
    $region107: #{critic_forward.1} parent=1 // pred_check_branch
      %3631 = sbr.rel (0) target = $region109
    $region108: #{critic_forward.1} parent=1 // pred_region
      _
    $region109: #{critic_forward.1} parent=1 // pred_fallthru
      _
    // Predicated region
    $region110: #{critic_forward.1} parent=1 // pred_check
      _
    $region111: #{critic_forward.1} parent=1 // pred_check_branch
      %3633 = sbr.rel (0) target = $region113
    $region112: #{critic_forward.1} parent=1 // pred_region
      %s3635 = ssub.s32 256, 256
      %3636 = vsyncadd [#allocation5], %s3635
      %s3637 = sshll.u32 [#allocation17], 4
      %s3638 = int_to_ptr.vmem [resolvable:$true] %s3637
      %3643 = dma.vmem_to_hbm [thread:$0]  %s3638, 256, %s19, [#allocation5], 128, 128, 8
    $region113: #{critic_forward.1} parent=1 // pred_fallthru
      _
    // Predicated region
    $region114: #{critic_forward.1} parent=1 // pred_check
      _
    $region115: #{critic_forward.1} parent=1 // pred_check_branch
      %3645 = sbr.rel (0) target = $region117
    $region116: #{critic_forward.1} parent=1 // pred_region
      %s3647 = ssub.s32 256, 256
      %3648 = vsyncadd [#allocation19], %s3647
      %s3649 = sshll.u32 [#allocation18], 4
      %s3650 = int_to_ptr.vmem [resolvable:$true] %s3649
      %3655 = dma.vmem_to_hbm [thread:$0]  %s3650, 256, %s20, [#allocation19], 128, 128, 8
    $region117: #{critic_forward.1} parent=1 // pred_fallthru
      _
    // Predicated region
    $region118: #{critic_forward.1} parent=1 // pred_check
      _
    $region119: #{critic_forward.1} parent=1 // pred_check_branch
      %3657 = sbr.rel (0) target = $region121
    $region120: #{critic_forward.1} parent=1 // pred_region
      _
    $region121: #{critic_forward.1} parent=1 // pred_fallthru
      _
    // Predicated region
    $region122: #{critic_forward.1} parent=1 // pred_check
      _
    $region123: #{critic_forward.1} parent=1 // pred_check_branch
      %3659 = sbr.rel (0) target = $region125
    $region124: #{critic_forward.1} parent=1 // pred_region
      %3660 = dma.done [#allocation5], 256
    $region125: #{critic_forward.1} parent=1 // pred_fallthru
      _
    // Predicated region
    $region126: #{critic_forward.1} parent=1 // pred_check
      _
    $region127: #{critic_forward.1} parent=1 // pred_check_branch
      %3662 = sbr.rel (0) target = $region129
    $region128: #{critic_forward.1} parent=1 // pred_region
      %3663 = dma.done [#allocation19], 256
    $region129: #{critic_forward.1} parent=1 // pred_fallthru
      _
    %3664 = vsyncpa [#allocation4], 1
    %3665 = vsyncpa [#allocation7], 1
    %3666 = vsyncpa [#allocation10], 1
    %3667 = vsyncpa [#allocation13], 1
    %3668 = vsyncpa [#allocation16], 1
    %3669 = vsyncpa [#allocation5], 1
    %3670 = vsyncpa [#allocation19], 1

</llo_original>
